<compile_context>
chip_gen: v7x
topology: tpu7x:2x2x1
jax: 0.10.0
libtpu: 0.0.40
codegen_flags: <defaults>
</compile_context>

<pallas_src>
import functools

import jax
import jax.numpy as jnp
from jax.experimental import pallas as pl
from jax.experimental.pallas import tpu as pltpu

EMBD_DIM = 128
FF_DIM = 2048          # PyTorch TransformerEncoderLayer default dim_feedforward
LN_EPS = 1e-5
OUT_PAD = 128          # lane-dense padded width for the final fc output


def _mm(a, b):
    """(M,K) x (K,N) on the MXU: bf16 operands, f32 accumulation."""
    return jax.lax.dot_general(
        a.astype(jnp.bfloat16), b.astype(jnp.bfloat16),
        (((1,), (0,)), ((), ())), preferred_element_type=jnp.float32)


def _layer_norm(x, w, b):
    mu = jnp.mean(x, axis=-1, keepdims=True)
    xc = x - mu
    var = jnp.mean(xc * xc, axis=-1, keepdims=True)
    return xc * jax.lax.rsqrt(var + LN_EPS) * w + b


def transformer_kernel(
    x_ref,
    emb_w_ref, emb_b_ref,
    in_w_ref, in_b_ref,
    outp_w_ref, outp_b_ref,
    ln1_w_ref, ln1_b_ref,
    ln2_w_ref, ln2_b_ref,
    ff1_w_ref, ff1_b_ref,
    ff2_w_ref, ff2_b_ref,
    fc_w_ref, fc_b_ref,
    o_ref,
    h_ref,                       # persistent VMEM scratch: (S, E) f32 activation
    *, nhead,
):
    E = EMBD_DIM
    Dh = E // nhead
    scale = 1.0 / (Dh ** 0.5)
    layer = pl.program_id(0)

    @pl.when(layer == 0)
    def _():
        # embedding linear (S, input_dim) -> (S, E), first grid step only
        h_ref[...] = _mm(x_ref[...], emb_w_ref[...]) + emb_b_ref[...]

    x = h_ref[...]
    S = x.shape[0]

    # ---- multi-head self attention (seq dim == original batch dim, N==1) ----
    qkv = _mm(x, in_w_ref[...]) + in_b_ref[...]            # (S, 3E)
    q = qkv[:, 0:E] * scale                                # fold 1/sqrt(Dh) into q
    k = qkv[:, E:2 * E]
    v = qkv[:, 2 * E:3 * E]
    ow = outp_w_ref[...]                                   # (E, E)  (in, out)

    attn = jnp.zeros((S, E), jnp.float32)
    for h in range(nhead):                                 # static head loop
        sl = slice(h * Dh, (h + 1) * Dh)
        s = jax.lax.dot_general(                           # (S, S) scores
            q[:, sl].astype(jnp.bfloat16), k[:, sl].astype(jnp.bfloat16),
            (((1,), (1,)), ((), ())), preferred_element_type=jnp.float32)
        s = s - jnp.max(s, axis=-1, keepdims=True)
        p = jnp.exp(s)
        p = p * pl.reciprocal(jnp.sum(p, axis=-1, keepdims=True), approx=True)
        ctx_h = _mm(p, v[:, sl])                           # (S, Dh)
        attn = attn + _mm(ctx_h, ow[sl, :])                # fold head into out-proj
    attn = attn + outp_b_ref[...]

    # post-LN residual blocks (PyTorch default norm_first=False)
    x = _layer_norm(x + attn, ln1_w_ref[...], ln1_b_ref[...])

    hid = jnp.maximum(_mm(x, ff1_w_ref[...]) + ff1_b_ref[...], 0.0)
    ff = _mm(hid, ff2_w_ref[...]) + ff2_b_ref[...]
    x = _layer_norm(x + ff, ln2_w_ref[...], ln2_b_ref[...])

    h_ref[...] = x

    @pl.when(layer == pl.num_programs(0) - 1)
    def _():
        # mean(dim=1) over the size-1 dim is identity; final fc (lane-padded).
        o_ref[...] = _mm(x, fc_w_ref[...]) + fc_b_ref[...]


def transformer_forward(x, params, *, nhead, nlayers):
    S, input_dim = x.shape
    out_dim = params["fc_w"].shape[0]
    E, F = EMBD_DIM, FF_DIM
    bf16 = jnp.bfloat16

    # ---- wrapper-side layout prep: transpose to (in, out), cast big weights ----
    emb_w = params["emb_w"].T.astype(bf16)                              # (in, E)
    in_w = jnp.transpose(params["in_w"], (0, 2, 1)).astype(bf16)        # (L, E, 3E)
    outp_w = jnp.transpose(params["outp_w"], (0, 2, 1)).astype(bf16)    # (L, E, E)
    ff1_w = jnp.transpose(params["ff1_w"], (0, 2, 1)).astype(bf16)      # (L, E, F)
    ff2_w = jnp.transpose(params["ff2_w"], (0, 2, 1)).astype(bf16)      # (L, F, E)
    fc_w = jnp.zeros((E, OUT_PAD), jnp.float32)
    fc_w = fc_w.at[:, :out_dim].set(params["fc_w"].T).astype(bf16)      # (E, 128)
    fc_b = jnp.zeros((1, OUT_PAD), jnp.float32)
    fc_b = fc_b.at[:, :out_dim].set(params["fc_b"])

    args = (
        x,
        emb_w, params["emb_b"],
        in_w, params["in_b"],
        outp_w, params["outp_b"],
        params["ln1_w"], params["ln1_b"],
        params["ln2_w"], params["ln2_b"],
        ff1_w, params["ff1_b"],
        ff2_w, params["ff2_b"],
        fc_w, fc_b,
    )

    # per-layer blocks: leading L dim blocked at size 1 and squeezed (None)
    def layer_spec(*trailing):
        return pl.BlockSpec((None,) + trailing, lambda l: (l, 0, 0))

    def const_spec(*shape):
        return pl.BlockSpec(shape, lambda l: (0, 0))

    grid_spec = pltpu.PrefetchScalarGridSpec(
        num_scalar_prefetch=0,
        grid=(nlayers,),
        in_specs=[
            const_spec(S, input_dim),        # x
            const_spec(input_dim, E),        # emb_w
            const_spec(1, E),                # emb_b
            layer_spec(E, 3 * E),            # in_w
            layer_spec(1, 3 * E),            # in_b
            layer_spec(E, E),                # outp_w
            layer_spec(1, E),                # outp_b
            layer_spec(1, E),                # ln1_w
            layer_spec(1, E),                # ln1_b
            layer_spec(1, E),                # ln2_w
            layer_spec(1, E),                # ln2_b
            layer_spec(E, F),                # ff1_w
            layer_spec(1, F),                # ff1_b
            layer_spec(F, E),                # ff2_w
            layer_spec(1, E),                # ff2_b
            const_spec(E, OUT_PAD),          # fc_w
            const_spec(1, OUT_PAD),          # fc_b
        ],
        out_specs=pl.BlockSpec((S, OUT_PAD), lambda l: (0, 0)),
        scratch_shapes=[pltpu.VMEM((S, E), jnp.float32)],
    )

    kernel = functools.partial(transformer_kernel, nhead=nhead)
    out_padded = pl.pallas_call(
        kernel,
        out_shape=jax.ShapeDtypeStruct((S, OUT_PAD), jnp.float32),
        grid_spec=grid_spec,
        compiler_params=pltpu.CompilerParams(
            dimension_semantics=("arbitrary",),      # layers are sequential
            vmem_limit_bytes=16 * 1024 * 1024,
        ),
    )(*args)
    return out_padded[:, :out_dim]


# ---------------------------- pure-JAX reference ----------------------------
def reference_forward(x, params, *, nhead, nlayers):
    E = EMBD_DIM
    Dh = E // nhead
    scale = 1.0 / (Dh ** 0.5)

    def lin(x, w, b):
        return x @ w.T + b

    def ln(x, w, b):
        mu = jnp.mean(x, axis=-1, keepdims=True)
        var = jnp.mean((x - mu) ** 2, axis=-1, keepdims=True)
        return (x - mu) / jnp.sqrt(var + LN_EPS) * w + b

    h = lin(x, params["emb_w"], params["emb_b"])
    for l in range(nlayers):
        qkv = lin(h, params["in_w"][l], params["in_b"][l])
        q, k, v = qkv[:, :E], qkv[:, E:2 * E], qkv[:, 2 * E:]
        outs = []
        for hd in range(nhead):
            sl = slice(hd * Dh, (hd + 1) * Dh)
            s = (q[:, sl] @ k[:, sl].T) * scale
            p = jax.nn.softmax(s, axis=-1)
            outs.append(p @ v[:, sl])
        ctx = jnp.concatenate(outs, axis=-1)
        attn_out = lin(ctx, params["outp_w"][l], params["outp_b"][l])
        h = ln(h + attn_out, params["ln1_w"][l], params["ln1_b"][l])
        ff = lin(jnp.maximum(lin(h, params["ff1_w"][l], params["ff1_b"][l]), 0.0),
                 params["ff2_w"][l], params["ff2_b"][l])
        h = ln(h + ff, params["ln2_w"][l], params["ln2_b"][l])
    return lin(h, params["fc_w"], params["fc_b"])


# ------------------------------- param init ---------------------------------
def init_params(key, input_dim, output_dim, nlayers):
    E, F = EMBD_DIM, FF_DIM
    ks = list(jax.random.split(key, 16))

    def rnd(k, shape, s=0.05):
        return (jax.random.normal(k, shape, jnp.float32) * s).astype(jnp.float32)

    L = nlayers
    params = {
        "emb_w": rnd(ks[0], (E, input_dim)),
        "emb_b": rnd(ks[1], (1, E)),
        "in_w": rnd(ks[2], (L, 3 * E, E)),
        "in_b": rnd(ks[3], (L, 1, 3 * E)),
        "outp_w": rnd(ks[4], (L, E, E)),
        "outp_b": rnd(ks[5], (L, 1, E)),
        "ln1_w": jnp.ones((L, 1, E), jnp.float32) + rnd(ks[6], (L, 1, E), 0.01),
        "ln1_b": rnd(ks[7], (L, 1, E), 0.01),
        "ln2_w": jnp.ones((L, 1, E), jnp.float32) + rnd(ks[8], (L, 1, E), 0.01),
        "ln2_b": rnd(ks[9], (L, 1, E), 0.01),
        "ff1_w": rnd(ks[10], (L, F, E)),
        "ff1_b": rnd(ks[11], (L, 1, F)),
        "ff2_w": rnd(ks[12], (L, E, F)),
        "ff2_b": rnd(ks[13], (L, 1, E)),
        "fc_w": rnd(ks[14], (output_dim, E)),
        "fc_b": rnd(ks[15], (1, output_dim)),
    }
    return params


if __name__ == "__main__":
    # small shapes consistent with the module's forward
    batch = 8           # becomes the transformer seq length (after unsqueeze(1))
    input_dim = 32
    output_dim = 16
    nhead = 4
    num_encoder_layers = 2

    root = jax.random.PRNGKey(0)
    kx, kp = jax.random.split(root)
    x = jax.random.normal(kx, (batch, input_dim), jnp.float32)
    params = init_params(kp, input_dim, output_dim, num_encoder_layers)

    out = transformer_forward(x, params, nhead=nhead, nlayers=num_encoder_layers)
    out = jax.block_until_ready(out)

    ref = reference_forward(x, params, nhead=nhead, nlayers=num_encoder_layers)
    assert out.shape == (batch, output_dim)
    # Tolerance loosened vs the f32 reference because the kernel casts weights
    # and matmul inputs to bf16 (DMA-bound regime; review item 2).
    err = float(jnp.max(jnp.abs(out - ref)))
    assert jnp.allclose(out, ref, atol=5e-2, rtol=5e-2), f"max abs diff = {err}"
    print("KERNEL_OK")
</pallas_src>

<mosaic_0001>
module attributes {stable_mosaic.version = 11 : i64} {
  func.func @transformer_kernel(%arg0: i32, %arg1: memref<8x32xf32, #tpu.memory_space<vmem>>, %arg2: memref<32x128xbf16, #tpu.memory_space<vmem>>, %arg3: memref<1x128xf32, #tpu.memory_space<vmem>>, %arg4: memref<1x128x384xbf16, #tpu.memory_space<vmem>>, %arg5: memref<1x1x384xf32, #tpu.memory_space<vmem>>, %arg6: memref<1x128x128xbf16, #tpu.memory_space<vmem>>, %arg7: memref<1x1x128xf32, #tpu.memory_space<vmem>>, %arg8: memref<1x1x128xf32, #tpu.memory_space<vmem>>, %arg9: memref<1x1x128xf32, #tpu.memory_space<vmem>>, %arg10: memref<1x1x128xf32, #tpu.memory_space<vmem>>, %arg11: memref<1x1x128xf32, #tpu.memory_space<vmem>>, %arg12: memref<1x128x2048xbf16, #tpu.memory_space<vmem>>, %arg13: memref<1x1x2048xf32, #tpu.memory_space<vmem>>, %arg14: memref<1x2048x128xbf16, #tpu.memory_space<vmem>>, %arg15: memref<1x1x128xf32, #tpu.memory_space<vmem>>, %arg16: memref<128x128xbf16, #tpu.memory_space<vmem>>, %arg17: memref<1x128xf32, #tpu.memory_space<vmem>>, %arg18: memref<8x128xf32, #tpu.memory_space<vmem>>, %arg19: memref<8x128xf32, #tpu.memory_space<vmem>>) attributes {dimension_semantics = [#tpu.dimension_semantics<arbitrary>], iteration_bounds = array<i64: 2>, scalar_prefetch = 0 : i64, scratch_operands = 1 : i64, tpu.core_type = #tpu.core_type<tc>, window_params = [{pipeline_mode = #tpu.pipeline_mode<synchronous>, transform_indices = @transform_0, window_bounds = array<i64: 8, 32>}, {pipeline_mode = #tpu.pipeline_mode<synchronous>, transform_indices = @transform_1, window_bounds = array<i64: 32, 128>}, {pipeline_mode = #tpu.pipeline_mode<synchronous>, transform_indices = @transform_2, window_bounds = array<i64: 1, 128>}, {transform_indices = @transform_3, window_bounds = array<i64: 1, 128, 384>}, {transform_indices = @transform_4, window_bounds = array<i64: 1, 1, 384>}, {transform_indices = @transform_5, window_bounds = array<i64: 1, 128, 128>}, {transform_indices = @transform_6, window_bounds = array<i64: 1, 1, 128>}, {transform_indices = @transform_7, window_bounds = array<i64: 1, 1, 128>}, {transform_indices = @transform_8, window_bounds = array<i64: 1, 1, 128>}, {transform_indices = @transform_9, window_bounds = array<i64: 1, 1, 128>}, {transform_indices = @transform_10, window_bounds = array<i64: 1, 1, 128>}, {transform_indices = @transform_11, window_bounds = array<i64: 1, 128, 2048>}, {transform_indices = @transform_12, window_bounds = array<i64: 1, 1, 2048>}, {transform_indices = @transform_13, window_bounds = array<i64: 1, 2048, 128>}, {transform_indices = @transform_14, window_bounds = array<i64: 1, 1, 128>}, {pipeline_mode = #tpu.pipeline_mode<synchronous>, transform_indices = @transform_15, window_bounds = array<i64: 128, 128>}, {pipeline_mode = #tpu.pipeline_mode<synchronous>, transform_indices = @transform_16, window_bounds = array<i64: 1, 128>}, {pipeline_mode = #tpu.pipeline_mode<synchronous>, transform_indices = @transform_17, window_bounds = array<i64: 8, 128>}]} {
    %c0_i32 = arith.constant 0 : i32
    %0 = arith.cmpi eq, %arg0, %c0_i32 : i32
    %1 = arith.extui %0 : i1 to i32
    %c0_i32_0 = arith.constant 0 : i32
    %2 = arith.cmpi ne, %1, %c0_i32_0 : i32
    scf.if %2 {
      %c0_76 = arith.constant 0 : index
      %c0_77 = arith.constant 0 : index
      %188 = vector.load %arg1[%c0_76, %c0_77] : memref<8x32xf32, #tpu.memory_space<vmem>>, vector<8x32xf32>
      %c0_78 = arith.constant 0 : index
      %c0_79 = arith.constant 0 : index
      %189 = vector.load %arg2[%c0_78, %c0_79] : memref<32x128xbf16, #tpu.memory_space<vmem>>, vector<32x128xbf16>
      %190 = arith.truncf %188 : vector<8x32xf32> to vector<8x32xbf16>
      %cst_80 = arith.constant dense<0.000000e+00> : vector<8x128xf32>
      %191 = tpu.matmul %190, %189, %cst_80 {dimension_numbers = #tpu.dot_dimension_numbers<[1], [0], [0], [1], [0, 0, 1, 1], [], []>} : vector<8x32xbf16>, vector<32x128xbf16>, vector<8x128xf32> -> vector<8x128xf32>
      %c0_81 = arith.constant 0 : index
      %c0_82 = arith.constant 0 : index
      %192 = vector.load %arg3[%c0_81, %c0_82] : memref<1x128xf32, #tpu.memory_space<vmem>>, vector<1x128xf32>
      %193 = vector.broadcast %192 : vector<1x128xf32> to vector<8x128xf32>
      %194 = arith.addf %191, %193 : vector<8x128xf32>
      %c0_83 = arith.constant 0 : index
      %c0_84 = arith.constant 0 : index
      %195 = vector.load %arg19[%c0_83, %c0_84] : memref<8x128xf32, #tpu.memory_space<vmem>>, vector<8x128xf32>
      tpu.vector_store %arg19[%c0_83, %c0_84], %194 {strides = array<i32>} : memref<8x128xf32, #tpu.memory_space<vmem>>, vector<8x128xf32>,
    } else {
    }
    %c0 = arith.constant 0 : index
    %c0_1 = arith.constant 0 : index
    %3 = vector.load %arg19[%c0, %c0_1] : memref<8x128xf32, #tpu.memory_space<vmem>>, vector<8x128xf32>
    %c0_2 = arith.constant 0 : index
    %c0_3 = arith.constant 0 : index
    %c0_4 = arith.constant 0 : index
    %4 = vector.load %arg4[%c0_2, %c0_3, %c0_4] : memref<1x128x384xbf16, #tpu.memory_space<vmem>>, vector<1x128x384xbf16>
    %5 = vector.shape_cast %4 : vector<1x128x384xbf16> to vector<128x384xbf16>
    %6 = arith.truncf %3 : vector<8x128xf32> to vector<8x128xbf16>
    %cst = arith.constant dense<0.000000e+00> : vector<8x384xf32>
    %7 = tpu.matmul %6, %5, %cst {dimension_numbers = #tpu.dot_dimension_numbers<[1], [0], [0], [1], [0, 0, 1, 1], [], []>} : vector<8x128xbf16>, vector<128x384xbf16>, vector<8x384xf32> -> vector<8x384xf32>
    %c0_5 = arith.constant 0 : index
    %c0_6 = arith.constant 0 : index
    %c0_7 = arith.constant 0 : index
    %8 = vector.load %arg5[%c0_5, %c0_6, %c0_7] : memref<1x1x384xf32, #tpu.memory_space<vmem>>, vector<1x1x384xf32>
    %9 = vector.shape_cast %8 : vector<1x1x384xf32> to vector<1x384xf32>
    %10 = vector.broadcast %9 : vector<1x384xf32> to vector<8x384xf32>
    %11 = arith.addf %7, %10 : vector<8x384xf32>
    %12 = vector.extract_strided_slice %11 {offsets = [0, 0], sizes = [8, 128], strides = [1, 1]} : vector<8x384xf32> to vector<8x128xf32>
    %cst_8 = arith.constant 0.176776692 : f32
    %13 = vector.broadcast %cst_8 : f32 to vector<8x128xf32>
    %14 = arith.mulf %12, %13 : vector<8x128xf32>
    %15 = vector.extract_strided_slice %11 {offsets = [0, 128], sizes = [8, 128], strides = [1, 1]} : vector<8x384xf32> to vector<8x128xf32>
    %16 = vector.extract_strided_slice %11 {offsets = [0, 256], sizes = [8, 128], strides = [1, 1]} : vector<8x384xf32> to vector<8x128xf32>
    %c0_9 = arith.constant 0 : index
    %c0_10 = arith.constant 0 : index
    %c0_11 = arith.constant 0 : index
    %17 = vector.load %arg6[%c0_9, %c0_10, %c0_11] : memref<1x128x128xbf16, #tpu.memory_space<vmem>>, vector<1x128x128xbf16>
    %18 = vector.shape_cast %17 : vector<1x128x128xbf16> to vector<128x128xbf16>
    %cst_12 = arith.constant 0.000000e+00 : f32
    %19 = vector.broadcast %cst_12 : f32 to vector<8x128xf32>
    %20 = vector.extract_strided_slice %14 {offsets = [0, 0], sizes = [8, 32], strides = [1, 1]} : vector<8x128xf32> to vector<8x32xf32>
    %21 = arith.truncf %20 : vector<8x32xf32> to vector<8x32xbf16>
    %22 = vector.extract_strided_slice %15 {offsets = [0, 0], sizes = [8, 32], strides = [1, 1]} : vector<8x128xf32> to vector<8x32xf32>
    %23 = arith.truncf %22 : vector<8x32xf32> to vector<8x32xbf16>
    %cst_13 = arith.constant dense<0.000000e+00> : vector<8x8xf32>
    %24 = tpu.matmul %21, %23, %cst_13 {dimension_numbers = #tpu.dot_dimension_numbers<[1], [1], [0], [0], [0, 0, 1, 0], [], []>} : vector<8x32xbf16>, vector<8x32xbf16>, vector<8x8xf32> -> vector<8x8xf32>
    %cst_14 = arith.constant dense<0xFF800000> : vector<8xf32>
    %25 = vector.multi_reduction <maximumf>, %24, %cst_14 [1] : vector<8x8xf32> to vector<8xf32>
    %26 = vector.shape_cast %25 : vector<8xf32> to vector<8x1xf32>
    %27 = vector.broadcast %26 : vector<8x1xf32> to vector<8x8xf32>
    %28 = arith.subf %24, %27 : vector<8x8xf32>
    %29 = math.exp %28 : vector<8x8xf32>
    %cst_15 = arith.constant dense<0.000000e+00> : vector<8xf32>
    %30 = vector.multi_reduction <add>, %29, %cst_15 [1] : vector<8x8xf32> to vector<8xf32>
    %31 = vector.shape_cast %30 : vector<8xf32> to vector<8x1xf32>
    %32 = tpu.reciprocal %31 {approx = true} : vector<8x1xf32> -> vector<8x1xf32>
    %33 = vector.broadcast %32 : vector<8x1xf32> to vector<8x8xf32>
    %34 = arith.mulf %29, %33 : vector<8x8xf32>
    %35 = vector.extract_strided_slice %16 {offsets = [0, 0], sizes = [8, 32], strides = [1, 1]} : vector<8x128xf32> to vector<8x32xf32>
    %36 = arith.truncf %34 : vector<8x8xf32> to vector<8x8xbf16>
    %37 = arith.truncf %35 : vector<8x32xf32> to vector<8x32xbf16>
    %cst_16 = arith.constant dense<0.000000e+00> : vector<8x32xf32>
    %38 = tpu.matmul %36, %37, %cst_16 {dimension_numbers = #tpu.dot_dimension_numbers<[1], [0], [0], [1], [0, 0, 1, 1], [], []>} : vector<8x8xbf16>, vector<8x32xbf16>, vector<8x32xf32> -> vector<8x32xf32>
    %39 = vector.extract_strided_slice %18 {offsets = [0, 0], sizes = [32, 128], strides = [1, 1]} : vector<128x128xbf16> to vector<32x128xbf16>
    %40 = arith.truncf %38 : vector<8x32xf32> to vector<8x32xbf16>
    %cst_17 = arith.constant dense<0.000000e+00> : vector<8x128xf32>
    %41 = tpu.matmul %40, %39, %cst_17 {dimension_numbers = #tpu.dot_dimension_numbers<[1], [0], [0], [1], [0, 0, 1, 1], [], []>} : vector<8x32xbf16>, vector<32x128xbf16>, vector<8x128xf32> -> vector<8x128xf32>
    %42 = arith.addf %19, %41 : vector<8x128xf32>
    %43 = vector.extract_strided_slice %14 {offsets = [0, 32], sizes = [8, 32], strides = [1, 1]} : vector<8x128xf32> to vector<8x32xf32>
    %44 = arith.truncf %43 : vector<8x32xf32> to vector<8x32xbf16>
    %45 = vector.extract_strided_slice %15 {offsets = [0, 32], sizes = [8, 32], strides = [1, 1]} : vector<8x128xf32> to vector<8x32xf32>
    %46 = arith.truncf %45 : vector<8x32xf32> to vector<8x32xbf16>
    %cst_18 = arith.constant dense<0.000000e+00> : vector<8x8xf32>
    %47 = tpu.matmul %44, %46, %cst_18 {dimension_numbers = #tpu.dot_dimension_numbers<[1], [1], [0], [0], [0, 0, 1, 0], [], []>} : vector<8x32xbf16>, vector<8x32xbf16>, vector<8x8xf32> -> vector<8x8xf32>
    %cst_19 = arith.constant dense<0xFF800000> : vector<8xf32>
    %48 = vector.multi_reduction <maximumf>, %47, %cst_19 [1] : vector<8x8xf32> to vector<8xf32>
    %49 = vector.shape_cast %48 : vector<8xf32> to vector<8x1xf32>
    %50 = vector.broadcast %49 : vector<8x1xf32> to vector<8x8xf32>
    %51 = arith.subf %47, %50 : vector<8x8xf32>
    %52 = math.exp %51 : vector<8x8xf32>
    %cst_20 = arith.constant dense<0.000000e+00> : vector<8xf32>
    %53 = vector.multi_reduction <add>, %52, %cst_20 [1] : vector<8x8xf32> to vector<8xf32>
    %54 = vector.shape_cast %53 : vector<8xf32> to vector<8x1xf32>
    %55 = tpu.reciprocal %54 {approx = true} : vector<8x1xf32> -> vector<8x1xf32>
    %56 = vector.broadcast %55 : vector<8x1xf32> to vector<8x8xf32>
    %57 = arith.mulf %52, %56 : vector<8x8xf32>
    %58 = vector.extract_strided_slice %16 {offsets = [0, 32], sizes = [8, 32], strides = [1, 1]} : vector<8x128xf32> to vector<8x32xf32>
    %59 = arith.truncf %57 : vector<8x8xf32> to vector<8x8xbf16>
    %60 = arith.truncf %58 : vector<8x32xf32> to vector<8x32xbf16>
    %cst_21 = arith.constant dense<0.000000e+00> : vector<8x32xf32>
    %61 = tpu.matmul %59, %60, %cst_21 {dimension_numbers = #tpu.dot_dimension_numbers<[1], [0], [0], [1], [0, 0, 1, 1], [], []>} : vector<8x8xbf16>, vector<8x32xbf16>, vector<8x32xf32> -> vector<8x32xf32>
    %62 = vector.extract_strided_slice %18 {offsets = [32, 0], sizes = [32, 128], strides = [1, 1]} : vector<128x128xbf16> to vector<32x128xbf16>
    %63 = arith.truncf %61 : vector<8x32xf32> to vector<8x32xbf16>
    %cst_22 = arith.constant dense<0.000000e+00> : vector<8x128xf32>
    %64 = tpu.matmul %63, %62, %cst_22 {dimension_numbers = #tpu.dot_dimension_numbers<[1], [0], [0], [1], [0, 0, 1, 1], [], []>} : vector<8x32xbf16>, vector<32x128xbf16>, vector<8x128xf32> -> vector<8x128xf32>
    %65 = arith.addf %42, %64 : vector<8x128xf32>
    %66 = vector.extract_strided_slice %14 {offsets = [0, 64], sizes = [8, 32], strides = [1, 1]} : vector<8x128xf32> to vector<8x32xf32>
    %67 = arith.truncf %66 : vector<8x32xf32> to vector<8x32xbf16>
    %68 = vector.extract_strided_slice %15 {offsets = [0, 64], sizes = [8, 32], strides = [1, 1]} : vector<8x128xf32> to vector<8x32xf32>
    %69 = arith.truncf %68 : vector<8x32xf32> to vector<8x32xbf16>
    %cst_23 = arith.constant dense<0.000000e+00> : vector<8x8xf32>
    %70 = tpu.matmul %67, %69, %cst_23 {dimension_numbers = #tpu.dot_dimension_numbers<[1], [1], [0], [0], [0, 0, 1, 0], [], []>} : vector<8x32xbf16>, vector<8x32xbf16>, vector<8x8xf32> -> vector<8x8xf32>
    %cst_24 = arith.constant dense<0xFF800000> : vector<8xf32>
    %71 = vector.multi_reduction <maximumf>, %70, %cst_24 [1] : vector<8x8xf32> to vector<8xf32>
    %72 = vector.shape_cast %71 : vector<8xf32> to vector<8x1xf32>
    %73 = vector.broadcast %72 : vector<8x1xf32> to vector<8x8xf32>
    %74 = arith.subf %70, %73 : vector<8x8xf32>
    %75 = math.exp %74 : vector<8x8xf32>
    %cst_25 = arith.constant dense<0.000000e+00> : vector<8xf32>
    %76 = vector.multi_reduction <add>, %75, %cst_25 [1] : vector<8x8xf32> to vector<8xf32>
    %77 = vector.shape_cast %76 : vector<8xf32> to vector<8x1xf32>
    %78 = tpu.reciprocal %77 {approx = true} : vector<8x1xf32> -> vector<8x1xf32>
    %79 = vector.broadcast %78 : vector<8x1xf32> to vector<8x8xf32>
    %80 = arith.mulf %75, %79 : vector<8x8xf32>
    %81 = vector.extract_strided_slice %16 {offsets = [0, 64], sizes = [8, 32], strides = [1, 1]} : vector<8x128xf32> to vector<8x32xf32>
    %82 = arith.truncf %80 : vector<8x8xf32> to vector<8x8xbf16>
    %83 = arith.truncf %81 : vector<8x32xf32> to vector<8x32xbf16>
    %cst_26 = arith.constant dense<0.000000e+00> : vector<8x32xf32>
    %84 = tpu.matmul %82, %83, %cst_26 {dimension_numbers = #tpu.dot_dimension_numbers<[1], [0], [0], [1], [0, 0, 1, 1], [], []>} : vector<8x8xbf16>, vector<8x32xbf16>, vector<8x32xf32> -> vector<8x32xf32>
    %85 = vector.extract_strided_slice %18 {offsets = [64, 0], sizes = [32, 128], strides = [1, 1]} : vector<128x128xbf16> to vector<32x128xbf16>
    %86 = arith.truncf %84 : vector<8x32xf32> to vector<8x32xbf16>
    %cst_27 = arith.constant dense<0.000000e+00> : vector<8x128xf32>
    %87 = tpu.matmul %86, %85, %cst_27 {dimension_numbers = #tpu.dot_dimension_numbers<[1], [0], [0], [1], [0, 0, 1, 1], [], []>} : vector<8x32xbf16>, vector<32x128xbf16>, vector<8x128xf32> -> vector<8x128xf32>
    %88 = arith.addf %65, %87 : vector<8x128xf32>
    %89 = vector.extract_strided_slice %14 {offsets = [0, 96], sizes = [8, 32], strides = [1, 1]} : vector<8x128xf32> to vector<8x32xf32>
    %90 = arith.truncf %89 : vector<8x32xf32> to vector<8x32xbf16>
    %91 = vector.extract_strided_slice %15 {offsets = [0, 96], sizes = [8, 32], strides = [1, 1]} : vector<8x128xf32> to vector<8x32xf32>
    %92 = arith.truncf %91 : vector<8x32xf32> to vector<8x32xbf16>
    %cst_28 = arith.constant dense<0.000000e+00> : vector<8x8xf32>
    %93 = tpu.matmul %90, %92, %cst_28 {dimension_numbers = #tpu.dot_dimension_numbers<[1], [1], [0], [0], [0, 0, 1, 0], [], []>} : vector<8x32xbf16>, vector<8x32xbf16>, vector<8x8xf32> -> vector<8x8xf32>
    %cst_29 = arith.constant dense<0xFF800000> : vector<8xf32>
    %94 = vector.multi_reduction <maximumf>, %93, %cst_29 [1] : vector<8x8xf32> to vector<8xf32>
    %95 = vector.shape_cast %94 : vector<8xf32> to vector<8x1xf32>
    %96 = vector.broadcast %95 : vector<8x1xf32> to vector<8x8xf32>
    %97 = arith.subf %93, %96 : vector<8x8xf32>
    %98 = math.exp %97 : vector<8x8xf32>
    %cst_30 = arith.constant dense<0.000000e+00> : vector<8xf32>
    %99 = vector.multi_reduction <add>, %98, %cst_30 [1] : vector<8x8xf32> to vector<8xf32>
    %100 = vector.shape_cast %99 : vector<8xf32> to vector<8x1xf32>
    %101 = tpu.reciprocal %100 {approx = true} : vector<8x1xf32> -> vector<8x1xf32>
    %102 = vector.broadcast %101 : vector<8x1xf32> to vector<8x8xf32>
    %103 = arith.mulf %98, %102 : vector<8x8xf32>
    %104 = vector.extract_strided_slice %16 {offsets = [0, 96], sizes = [8, 32], strides = [1, 1]} : vector<8x128xf32> to vector<8x32xf32>
    %105 = arith.truncf %103 : vector<8x8xf32> to vector<8x8xbf16>
    %106 = arith.truncf %104 : vector<8x32xf32> to vector<8x32xbf16>
    %cst_31 = arith.constant dense<0.000000e+00> : vector<8x32xf32>
    %107 = tpu.matmul %105, %106, %cst_31 {dimension_numbers = #tpu.dot_dimension_numbers<[1], [0], [0], [1], [0, 0, 1, 1], [], []>} : vector<8x8xbf16>, vector<8x32xbf16>, vector<8x32xf32> -> vector<8x32xf32>
    %108 = vector.extract_strided_slice %18 {offsets = [96, 0], sizes = [32, 128], strides = [1, 1]} : vector<128x128xbf16> to vector<32x128xbf16>
    %109 = arith.truncf %107 : vector<8x32xf32> to vector<8x32xbf16>
    %cst_32 = arith.constant dense<0.000000e+00> : vector<8x128xf32>
    %110 = tpu.matmul %109, %108, %cst_32 {dimension_numbers = #tpu.dot_dimension_numbers<[1], [0], [0], [1], [0, 0, 1, 1], [], []>} : vector<8x32xbf16>, vector<32x128xbf16>, vector<8x128xf32> -> vector<8x128xf32>
    %111 = arith.addf %88, %110 : vector<8x128xf32>
    %c0_33 = arith.constant 0 : index
    %c0_34 = arith.constant 0 : index
    %c0_35 = arith.constant 0 : index
    %112 = vector.load %arg7[%c0_33, %c0_34, %c0_35] : memref<1x1x128xf32, #tpu.memory_space<vmem>>, vector<1x1x128xf32>
    %113 = vector.shape_cast %112 : vector<1x1x128xf32> to vector<1x128xf32>
    %114 = vector.broadcast %113 : vector<1x128xf32> to vector<8x128xf32>
    %115 = arith.addf %111, %114 : vector<8x128xf32>
    %116 = arith.addf %3, %115 : vector<8x128xf32>
    %c0_36 = arith.constant 0 : index
    %c0_37 = arith.constant 0 : index
    %c0_38 = arith.constant 0 : index
    %117 = vector.load %arg8[%c0_36, %c0_37, %c0_38] : memref<1x1x128xf32, #tpu.memory_space<vmem>>, vector<1x1x128xf32>
    %118 = vector.shape_cast %117 : vector<1x1x128xf32> to vector<1x128xf32>
    %c0_39 = arith.constant 0 : index
    %c0_40 = arith.constant 0 : index
    %c0_41 = arith.constant 0 : index
    %119 = vector.load %arg9[%c0_39, %c0_40, %c0_41] : memref<1x1x128xf32, #tpu.memory_space<vmem>>, vector<1x1x128xf32>
    %120 = vector.shape_cast %119 : vector<1x1x128xf32> to vector<1x128xf32>
    %cst_42 = arith.constant dense<0.000000e+00> : vector<8xf32>
    %121 = vector.multi_reduction <add>, %116, %cst_42 [1] : vector<8x128xf32> to vector<8xf32>
    %122 = vector.shape_cast %121 : vector<8xf32> to vector<8x1xf32>
    %cst_43 = arith.constant 1.280000e+02 : f32
    %123 = vector.broadcast %cst_43 : f32 to vector<8x1xf32>
    %124 = arith.divf %122, %123 : vector<8x1xf32>
    %125 = vector.broadcast %124 : vector<8x1xf32> to vector<8x128xf32>
    %126 = arith.subf %116, %125 : vector<8x128xf32>
    %127 = arith.mulf %126, %126 : vector<8x128xf32>
    %cst_44 = arith.constant dense<0.000000e+00> : vector<8xf32>
    %128 = vector.multi_reduction <add>, %127, %cst_44 [1] : vector<8x128xf32> to vector<8xf32>
    %129 = vector.shape_cast %128 : vector<8xf32> to vector<8x1xf32>
    %cst_45 = arith.constant 1.280000e+02 : f32
    %130 = vector.broadcast %cst_45 : f32 to vector<8x1xf32>
    %131 = arith.divf %129, %130 : vector<8x1xf32>
    %cst_46 = arith.constant 9.99999974E-6 : f32
    %132 = vector.broadcast %cst_46 : f32 to vector<8x1xf32>
    %133 = arith.addf %131, %132 : vector<8x1xf32>
    %134 = math.rsqrt %133 : vector<8x1xf32>
    %135 = vector.broadcast %134 : vector<8x1xf32> to vector<8x128xf32>
    %136 = arith.mulf %126, %135 : vector<8x128xf32>
    %137 = vector.broadcast %118 : vector<1x128xf32> to vector<8x128xf32>
    %138 = arith.mulf %136, %137 : vector<8x128xf32>
    %139 = vector.broadcast %120 : vector<1x128xf32> to vector<8x128xf32>
    %140 = arith.addf %138, %139 : vector<8x128xf32>
    %c0_47 = arith.constant 0 : index
    %c0_48 = arith.constant 0 : index
    %c0_49 = arith.constant 0 : index
    %141 = vector.load %arg12[%c0_47, %c0_48, %c0_49] : memref<1x128x2048xbf16, #tpu.memory_space<vmem>>, vector<1x128x2048xbf16>
    %142 = vector.shape_cast %141 : vector<1x128x2048xbf16> to vector<128x2048xbf16>
    %143 = arith.truncf %140 : vector<8x128xf32> to vector<8x128xbf16>
    %cst_50 = arith.constant dense<0.000000e+00> : vector<8x2048xf32>
    %144 = tpu.matmul %143, %142, %cst_50 {dimension_numbers = #tpu.dot_dimension_numbers<[1], [0], [0], [1], [0, 0, 1, 1], [], []>} : vector<8x128xbf16>, vector<128x2048xbf16>, vector<8x2048xf32> -> vector<8x2048xf32>
    %c0_51 = arith.constant 0 : index
    %c0_52 = arith.constant 0 : index
    %c0_53 = arith.constant 0 : index
    %145 = vector.load %arg13[%c0_51, %c0_52, %c0_53] : memref<1x1x2048xf32, #tpu.memory_space<vmem>>, vector<1x1x2048xf32>
    %146 = vector.shape_cast %145 : vector<1x1x2048xf32> to vector<1x2048xf32>
    %147 = vector.broadcast %146 : vector<1x2048xf32> to vector<8x2048xf32>
    %148 = arith.addf %144, %147 : vector<8x2048xf32>
    %cst_54 = arith.constant 0.000000e+00 : f32
    %149 = vector.broadcast %cst_54 : f32 to vector<8x2048xf32>
    %150 = arith.maximumf %148, %149 : vector<8x2048xf32>
    %c0_55 = arith.constant 0 : index
    %c0_56 = arith.constant 0 : index
    %c0_57 = arith.constant 0 : index
    %151 = vector.load %arg14[%c0_55, %c0_56, %c0_57] : memref<1x2048x128xbf16, #tpu.memory_space<vmem>>, vector<1x2048x128xbf16>
    %152 = vector.shape_cast %151 : vector<1x2048x128xbf16> to vector<2048x128xbf16>
    %153 = arith.truncf %150 : vector<8x2048xf32> to vector<8x2048xbf16>
    %cst_58 = arith.constant dense<0.000000e+00> : vector<8x128xf32>
    %154 = tpu.matmul %153, %152, %cst_58 {dimension_numbers = #tpu.dot_dimension_numbers<[1], [0], [0], [1], [0, 0, 1, 1], [], []>} : vector<8x2048xbf16>, vector<2048x128xbf16>, vector<8x128xf32> -> vector<8x128xf32>
    %c0_59 = arith.constant 0 : index
    %c0_60 = arith.constant 0 : index
    %c0_61 = arith.constant 0 : index
    %155 = vector.load %arg15[%c0_59, %c0_60, %c0_61] : memref<1x1x128xf32, #tpu.memory_space<vmem>>, vector<1x1x128xf32>
    %156 = vector.shape_cast %155 : vector<1x1x128xf32> to vector<1x128xf32>
    %157 = vector.broadcast %156 : vector<1x128xf32> to vector<8x128xf32>
    %158 = arith.addf %154, %157 : vector<8x128xf32>
    %159 = arith.addf %140, %158 : vector<8x128xf32>
    %c0_62 = arith.constant 0 : index
    %c0_63 = arith.constant 0 : index
    %c0_64 = arith.constant 0 : index
    %160 = vector.load %arg10[%c0_62, %c0_63, %c0_64] : memref<1x1x128xf32, #tpu.memory_space<vmem>>, vector<1x1x128xf32>
    %161 = vector.shape_cast %160 : vector<1x1x128xf32> to vector<1x128xf32>
    %c0_65 = arith.constant 0 : index
    %c0_66 = arith.constant 0 : index
    %c0_67 = arith.constant 0 : index
    %162 = vector.load %arg11[%c0_65, %c0_66, %c0_67] : memref<1x1x128xf32, #tpu.memory_space<vmem>>, vector<1x1x128xf32>
    %163 = vector.shape_cast %162 : vector<1x1x128xf32> to vector<1x128xf32>
    %cst_68 = arith.constant dense<0.000000e+00> : vector<8xf32>
    %164 = vector.multi_reduction <add>, %159, %cst_68 [1] : vector<8x128xf32> to vector<8xf32>
    %165 = vector.shape_cast %164 : vector<8xf32> to vector<8x1xf32>
    %cst_69 = arith.constant 1.280000e+02 : f32
    %166 = vector.broadcast %cst_69 : f32 to vector<8x1xf32>
    %167 = arith.divf %165, %166 : vector<8x1xf32>
    %168 = vector.broadcast %167 : vector<8x1xf32> to vector<8x128xf32>
    %169 = arith.subf %159, %168 : vector<8x128xf32>
    %170 = arith.mulf %169, %169 : vector<8x128xf32>
    %cst_70 = arith.constant dense<0.000000e+00> : vector<8xf32>
    %171 = vector.multi_reduction <add>, %170, %cst_70 [1] : vector<8x128xf32> to vector<8xf32>
    %172 = vector.shape_cast %171 : vector<8xf32> to vector<8x1xf32>
    %cst_71 = arith.constant 1.280000e+02 : f32
    %173 = vector.broadcast %cst_71 : f32 to vector<8x1xf32>
    %174 = arith.divf %172, %173 : vector<8x1xf32>
    %cst_72 = arith.constant 9.99999974E-6 : f32
    %175 = vector.broadcast %cst_72 : f32 to vector<8x1xf32>
    %176 = arith.addf %174, %175 : vector<8x1xf32>
    %177 = math.rsqrt %176 : vector<8x1xf32>
    %178 = vector.broadcast %177 : vector<8x1xf32> to vector<8x128xf32>
    %179 = arith.mulf %169, %178 : vector<8x128xf32>
    %180 = vector.broadcast %161 : vector<1x128xf32> to vector<8x128xf32>
    %181 = arith.mulf %179, %180 : vector<8x128xf32>
    %182 = vector.broadcast %163 : vector<1x128xf32> to vector<8x128xf32>
    %183 = arith.addf %181, %182 : vector<8x128xf32>
    %c0_73 = arith.constant 0 : index
    %c0_74 = arith.constant 0 : index
    %184 = vector.load %arg19[%c0_73, %c0_74] : memref<8x128xf32, #tpu.memory_space<vmem>>, vector<8x128xf32>
    tpu.vector_store %arg19[%c0_73, %c0_74], %183 {strides = array<i32>} : memref<8x128xf32, #tpu.memory_space<vmem>>, vector<8x128xf32>,
    %c1_i32 = arith.constant 1 : i32
    %185 = arith.cmpi eq, %arg0, %c1_i32 : i32
    %186 = arith.extui %185 : i1 to i32
    %c0_i32_75 = arith.constant 0 : i32
    %187 = arith.cmpi ne, %186, %c0_i32_75 : i32
    scf.if %187 {
      %c0_76 = arith.constant 0 : index
      %c0_77 = arith.constant 0 : index
      %188 = vector.load %arg16[%c0_76, %c0_77] : memref<128x128xbf16, #tpu.memory_space<vmem>>, vector<128x128xbf16>
      %189 = arith.truncf %183 : vector<8x128xf32> to vector<8x128xbf16>
      %cst_78 = arith.constant dense<0.000000e+00> : vector<8x128xf32>
      %190 = tpu.matmul %189, %188, %cst_78 {dimension_numbers = #tpu.dot_dimension_numbers<[1], [0], [0], [1], [0, 0, 1, 1], [], []>} : vector<8x128xbf16>, vector<128x128xbf16>, vector<8x128xf32> -> vector<8x128xf32>
      %c0_79 = arith.constant 0 : index
      %c0_80 = arith.constant 0 : index
      %191 = vector.load %arg17[%c0_79, %c0_80] : memref<1x128xf32, #tpu.memory_space<vmem>>, vector<1x128xf32>
      %192 = vector.broadcast %191 : vector<1x128xf32> to vector<8x128xf32>
      %193 = arith.addf %190, %192 : vector<8x128xf32>
      %c0_81 = arith.constant 0 : index
      %c0_82 = arith.constant 0 : index
      %194 = vector.load %arg18[%c0_81, %c0_82] : memref<8x128xf32, #tpu.memory_space<vmem>>, vector<8x128xf32>
      tpu.vector_store %arg18[%c0_81, %c0_82], %193 {strides = array<i32>} : memref<8x128xf32, #tpu.memory_space<vmem>>, vector<8x128xf32>,
    } else {
    }
    return
  }
  func.func @transform_0(%arg0: i32) -> (i32, i32) {
    %c0_i32 = arith.constant 0 : i32
    %c0_i32_0 = arith.constant 0 : i32
    %c0_i32_1 = arith.constant 0 : i32
    return %c0_i32, %c0_i32_0 : i32, i32
  }
  func.func @transform_1(%arg0: i32) -> (i32, i32) {
    %c0_i32 = arith.constant 0 : i32
    %c0_i32_0 = arith.constant 0 : i32
    %c0_i32_1 = arith.constant 0 : i32
    return %c0_i32, %c0_i32_0 : i32, i32
  }
  func.func @transform_2(%arg0: i32) -> (i32, i32) {
    %c0_i32 = arith.constant 0 : i32
    %c0_i32_0 = arith.constant 0 : i32
    %c0_i32_1 = arith.constant 0 : i32
    return %c0_i32, %c0_i32_0 : i32, i32
  }
  func.func @transform_3(%arg0: i32) -> (i32, i32, i32) {
    %c0_i32 = arith.constant 0 : i32
    %c0_i32_0 = arith.constant 0 : i32
    %c0_i32_1 = arith.constant 0 : i32
    return %arg0, %c0_i32, %c0_i32_0 : i32, i32, i32
  }
  func.func @transform_4(%arg0: i32) -> (i32, i32, i32) {
    %c0_i32 = arith.constant 0 : i32
    %c0_i32_0 = arith.constant 0 : i32
    %c0_i32_1 = arith.constant 0 : i32
    return %arg0, %c0_i32, %c0_i32_0 : i32, i32, i32
  }
  func.func @transform_5(%arg0: i32) -> (i32, i32, i32) {
    %c0_i32 = arith.constant 0 : i32
    %c0_i32_0 = arith.constant 0 : i32
    %c0_i32_1 = arith.constant 0 : i32
    return %arg0, %c0_i32, %c0_i32_0 : i32, i32, i32
  }
  func.func @transform_6(%arg0: i32) -> (i32, i32, i32) {
    %c0_i32 = arith.constant 0 : i32
    %c0_i32_0 = arith.constant 0 : i32
    %c0_i32_1 = arith.constant 0 : i32
    return %arg0, %c0_i32, %c0_i32_0 : i32, i32, i32
  }
  func.func @transform_7(%arg0: i32) -> (i32, i32, i32) {
    %c0_i32 = arith.constant 0 : i32
    %c0_i32_0 = arith.constant 0 : i32
    %c0_i32_1 = arith.constant 0 : i32
    return %arg0, %c0_i32, %c0_i32_0 : i32, i32, i32
  }
  func.func @transform_8(%arg0: i32) -> (i32, i32, i32) {
    %c0_i32 = arith.constant 0 : i32
    %c0_i32_0 = arith.constant 0 : i32
    %c0_i32_1 = arith.constant 0 : i32
    return %arg0, %c0_i32, %c0_i32_0 : i32, i32, i32
  }
  func.func @transform_9(%arg0: i32) -> (i32, i32, i32) {
    %c0_i32 = arith.constant 0 : i32
    %c0_i32_0 = arith.constant 0 : i32
    %c0_i32_1 = arith.constant 0 : i32
    return %arg0, %c0_i32, %c0_i32_0 : i32, i32, i32
  }
  func.func @transform_10(%arg0: i32) -> (i32, i32, i32) {
    %c0_i32 = arith.constant 0 : i32
    %c0_i32_0 = arith.constant 0 : i32
    %c0_i32_1 = arith.constant 0 : i32
    return %arg0, %c0_i32, %c0_i32_0 : i32, i32, i32
  }
  func.func @transform_11(%arg0: i32) -> (i32, i32, i32) {
    %c0_i32 = arith.constant 0 : i32
    %c0_i32_0 = arith.constant 0 : i32
    %c0_i32_1 = arith.constant 0 : i32
    return %arg0, %c0_i32, %c0_i32_0 : i32, i32, i32
  }
  func.func @transform_12(%arg0: i32) -> (i32, i32, i32) {
    %c0_i32 = arith.constant 0 : i32
    %c0_i32_0 = arith.constant 0 : i32
    %c0_i32_1 = arith.constant 0 : i32
    return %arg0, %c0_i32, %c0_i32_0 : i32, i32, i32
  }
  func.func @transform_13(%arg0: i32) -> (i32, i32, i32) {
    %c0_i32 = arith.constant 0 : i32
    %c0_i32_0 = arith.constant 0 : i32
    %c0_i32_1 = arith.constant 0 : i32
    return %arg0, %c0_i32, %c0_i32_0 : i32, i32, i32
  }
  func.func @transform_14(%arg0: i32) -> (i32, i32, i32) {
    %c0_i32 = arith.constant 0 : i32
    %c0_i32_0 = arith.constant 0 : i32
    %c0_i32_1 = arith.constant 0 : i32
    return %arg0, %c0_i32, %c0_i32_0 : i32, i32, i32
  }
  func.func @transform_15(%arg0: i32) -> (i32, i32) {
    %c0_i32 = arith.constant 0 : i32
    %c0_i32_0 = arith.constant 0 : i32
    %c0_i32_1 = arith.constant 0 : i32
    return %c0_i32, %c0_i32_0 : i32, i32
  }
  func.func @transform_16(%arg0: i32) -> (i32, i32) {
    %c0_i32 = arith.constant 0 : i32
    %c0_i32_0 = arith.constant 0 : i32
    %c0_i32_1 = arith.constant 0 : i32
    return %c0_i32, %c0_i32_0 : i32, i32
  }
  func.func @transform_17(%arg0: i32) -> (i32, i32) {
    %c0_i32 = arith.constant 0 : i32
    %c0_i32_0 = arith.constant 0 : i32
    %c0_i32_1 = arith.constant 0 : i32
    return %c0_i32, %c0_i32_0 : i32, i32
  }
}

</mosaic_0001>

<llo_original>
// kernel: tpu_custom_call.1
$region0: #{tpu_custom_call.1}
  #allocation0 [shape = 'u32[]', space=smem, size = 0x4, offset = 0x4, fixed_abs, tag = 'smem constant byte address 0x4 - core index']
  #allocation1 [shape = 'u32[144,128]{1,0:T(1,128)}', space=vmem, size = 0x12000, scoped, tag = 'internal scratch']
  #allocation2 [shape = 'f32[8,128]{1,0:T(8,128)}', space=vmem, size = 0x1000, scoped, tag = 'scratch operand']
  %s0 = inlined_call_operand.hbm [shape: f32[8,32], index: 0, kind: input, shape index: {}]
  %s1 = inlined_call_operand.hbm [shape: bf16[32,128], index: 1, kind: input, shape index: {}]
  %s2 = inlined_call_operand.vmem [shape: f32[1,128], index: 2, kind: input, shape index: {}]
  %s3 = inlined_call_operand.hbm [shape: bf16[2,128,384], index: 3, kind: input, shape index: {}]
  %s4 = inlined_call_operand.vmem [shape: f32[2,1,384], index: 4, kind: input, shape index: {}]
  %s5 = inlined_call_operand.hbm [shape: bf16[2,128,128], index: 5, kind: input, shape index: {}]
  %s6 = inlined_call_operand.vmem [shape: f32[2,1,128], index: 6, kind: input, shape index: {}]
  %s7 = inlined_call_operand.vmem [shape: f32[2,1,128], index: 7, kind: input, shape index: {}]
  %s8 = inlined_call_operand.vmem [shape: f32[2,1,128], index: 8, kind: input, shape index: {}]
  %s9 = inlined_call_operand.hbm [shape: f32[2,1,128], index: 9, kind: input, shape index: {}]
  %s10 = inlined_call_operand.hbm [shape: f32[2,1,128], index: 10, kind: input, shape index: {}]
  %s11 = inlined_call_operand.hbm [shape: bf16[2,128,2048], index: 11, kind: input, shape index: {}]
  %s12 = inlined_call_operand.vmem [shape: f32[2,1,2048], index: 12, kind: input, shape index: {}]
  %s13 = inlined_call_operand.hbm [shape: bf16[2,2048,128], index: 13, kind: input, shape index: {}]
  %s14 = inlined_call_operand.vmem [shape: f32[2,1,128], index: 14, kind: input, shape index: {}]
  %s15 = inlined_call_operand.hbm [shape: bf16[128,128], index: 15, kind: input, shape index: {}]
  %s16 = inlined_call_operand.vmem [shape: f32[1,128], index: 16, kind: input, shape index: {}]
  %s17 = inlined_call_operand.hbm [shape: f32[8,128], index: 17, kind: output, shape index: {}]
  %s18 = sld [smem:[#allocation0]]
  $region145: #{tpu_custom_call.1} parent=0
    _
  %s20 = ssub.s32 1, %s18
  %s21 = scalar_select 0, %s20, %s18
  $region1: #{tpu_custom_call.1} parent=0
    #allocation3 [shape = 'u8[4096]{0}', space=vmem, size = 0x1000, scoped, tag = 'input window, operand 0, single buffered']
    #allocation4 [shape = 's32[2]{0}', space=sflag, size = 0x8, scoped, tag = 'scoped memory for tpu_custom_call.1']
    #allocation5 [shape = 's32[2]{0}', space=sflag, size = 0x8, scoped, tag = 'scoped memory for tpu_custom_call.1']
    #allocation6 [shape = 'u8[8192]{0}', space=vmem, size = 0x2000, scoped, tag = 'input window, operand 1, single buffered']
    #allocation7 [shape = 's32[1]{0}', space=sflag, size = 0x4, scoped, tag = 'scoped memory for tpu_custom_call.1']
    #allocation8 [shape = 'u8[196608]{0}', space=vmem, size = 0x30000, scoped, tag = 'input window, operand 3']
    #allocation9 [shape = 'u8[65536]{0}', space=vmem, size = 0x10000, scoped, tag = 'input window, operand 5']
    #allocation10 [shape = 'u8[1024]{0}', space=vmem, size = 0x400, scoped, tag = 'input window, operand 9']
    #allocation11 [shape = 'u8[1024]{0}', space=vmem, size = 0x400, scoped, tag = 'input window, operand 10']
    #allocation12 [shape = 'u8[1048576]{0}', space=vmem, size = 0x100000, scoped, tag = 'input window, operand 11']
    #allocation13 [shape = 'u8[1048576]{0}', space=vmem, size = 0x100000, scoped, tag = 'input window, operand 13']
    #allocation14 [shape = 'u8[32768]{0}', space=vmem, size = 0x8000, scoped, tag = 'input window, operand 15, single buffered']
    #allocation15 [shape = 'u8[4096]{0}', space=vmem, size = 0x1000, scoped, tag = 'output window, operand 0, single buffered']
    %22 = vsyncpa [#allocation4], 0
    %23 = vsyncpa [#allocation7], 0
    %24 = vsyncpa [#allocation5], 0
    loop: start=0, step=1, limit=4
    $region2: #{tpu_custom_call.1} parent=1 // loop_pre_header
      _
    $region3: #{tpu_custom_call.1} parent=1 // loop_header
      %s26 = sphi 0, %s30
      %p27 = scmp.ge.s32.totalorder %s26, 4
      %s34 = sphi 0, %s34
      %s36 = sphi 0, %s34
      %s37 = sphi 0, %s36
      %s51 = sphi 0, %s37
      %s55 = sphi 0, %s55
      %s57 = sphi 0, %s55
      %s58 = sphi 0, %s57
      %s72 = sphi 0, %s58
      %s76 = sphi 0, %s76
      %s78 = sphi 0, %s76
      %s79 = sphi 0, %s78
      %s93 = sphi 0, %s79
      %s99 = sphi 0, %s101
      %s102 = sphi 0, %s99
      %s103 = sphi 0, %s102
      %s119 = sphi 0, %s103
      %s125 = sphi 0, %s127
      %s128 = sphi 0, %s125
      %s129 = sphi 0, %s128
      %s145 = sphi 0, %s129
      %s151 = sphi 0, %s153
      %s154 = sphi 0, %s151
      %s155 = sphi 0, %s154
      %s171 = sphi 0, %s155
      %s177 = sphi 0, %s179
      %s180 = sphi 0, %s177
      %s181 = sphi 0, %s180
      %s197 = sphi 0, %s181
      %s203 = sphi 0, %s205
      %s206 = sphi 0, %s203
      %s207 = sphi 0, %s206
      %s223 = sphi 0, %s207
      %s229 = sphi 0, %s231
      %s232 = sphi 0, %s229
      %s233 = sphi 0, %s232
      %s249 = sphi 0, %s233
      %s255 = sphi 0, %s257
      %s258 = sphi 0, %s255
      %s259 = sphi 0, %s258
      %s275 = sphi 0, %s259
      %s281 = sphi 0, %s283
      %s284 = sphi 0, %s281
      %s285 = sphi 0, %s284
      %s301 = sphi 0, %s285
      %s307 = sphi 0, %s309
      %s310 = sphi 0, %s307
      %s311 = sphi 0, %s310
      %s327 = sphi 0, %s311
      %s333 = sphi 0, %s335
      %s336 = sphi 0, %s333
      %s337 = sphi 0, %s336
      %s353 = sphi 0, %s337
      %s359 = sphi 0, %s361
      %s362 = sphi 0, %s359
      %s363 = sphi 0, %s362
      %s379 = sphi 0, %s363
      %s385 = sphi 0, %s387
      %s388 = sphi 0, %s385
      %s389 = sphi 0, %s388
      %s405 = sphi 0, %s389
      %s409 = sphi 0, %s409
      %s411 = sphi 0, %s409
      %s412 = sphi 0, %s411
      %s426 = sphi 0, %s412
      %s430 = sphi 0, %s430
      %s432 = sphi 0, %s430
      %s433 = sphi 0, %s432
      %s447 = sphi 0, %s433
      %s451 = sphi 0, %s451
      %s453 = sphi 0, %s451
      %s454 = sphi 0, %s453
      %s468 = sphi 0, %s454
    $region4: #{tpu_custom_call.1} parent=1 // loop_header_branch
      %29 = sbr.rel (%p27) target = $region8
    $region5: #{tpu_custom_call.1} parent=1 // loop_body
      %s31 = ssub.s32 %s26, 1
      %s32 = ssub.s32 %s26, 2
      %s33 = sadd.s32 %s26, 1
      %s35 = sadd.s32 %s34, 1
      %p38 = scmp.eq.s32.totalorder %s26, 1
      %p39 = scmp.ne.s32.totalorder %s34, %s36
      %p40 = scmp.eq.s32.totalorder %s26, 0
      %p41 = por %p39, %p40
      %p42 = scmp.ne.s32.totalorder %s34, %s36
      %p43 = scmp.eq.s32.totalorder %s31, 1
      %p44 = por %p42, %p43
      %p45 = scmp.ne.s32.totalorder %s36, %s37
      %p46 = scmp.eq.s32.totalorder %s31, 0
      %p47 = por %p45, %p46
      %p48 = scmp.ne.s32.totalorder %s36, %s37
      %p49 = scmp.eq.s32.totalorder %s32, 1
      %p50 = por %p48, %p49
      %p52 = scmp.ne.s32.totalorder %s37, %s51
      %p53 = scmp.eq.s32.totalorder %s32, 0
      %p54 = por %p52, %p53
      %s56 = sadd.s32 %s55, 1
      %p59 = scmp.eq.s32.totalorder %s26, 1
      %p60 = scmp.ne.s32.totalorder %s55, %s57
      %p61 = scmp.eq.s32.totalorder %s26, 0
      %p62 = por %p60, %p61
      %p63 = scmp.ne.s32.totalorder %s55, %s57
      %p64 = scmp.eq.s32.totalorder %s31, 1
      %p65 = por %p63, %p64
      %p66 = scmp.ne.s32.totalorder %s57, %s58
      %p67 = scmp.eq.s32.totalorder %s31, 0
      %p68 = por %p66, %p67
      %p69 = scmp.ne.s32.totalorder %s57, %s58
      %p70 = scmp.eq.s32.totalorder %s32, 1
      %p71 = por %p69, %p70
      %p73 = scmp.ne.s32.totalorder %s58, %s72
      %p74 = scmp.eq.s32.totalorder %s32, 0
      %p75 = por %p73, %p74
      %s77 = sadd.s32 %s76, 1
      %p80 = scmp.eq.s32.totalorder %s26, 1
      %p81 = scmp.ne.s32.totalorder %s76, %s78
      %p82 = scmp.eq.s32.totalorder %s26, 0
      %p83 = por %p81, %p82
      %p84 = scmp.ne.s32.totalorder %s76, %s78
      %p85 = scmp.eq.s32.totalorder %s31, 1
      %p86 = por %p84, %p85
      %p87 = scmp.ne.s32.totalorder %s78, %s79
      %p88 = scmp.eq.s32.totalorder %s31, 0
      %p89 = por %p87, %p88
      %p90 = scmp.ne.s32.totalorder %s78, %s79
      %p91 = scmp.eq.s32.totalorder %s32, 1
      %p92 = por %p90, %p91
      %p94 = scmp.ne.s32.totalorder %s79, %s93
      %p95 = scmp.eq.s32.totalorder %s32, 0
      %p96 = por %p94, %p95
      %s97 = ssub.s32 %s26, %s33
      %p98 = scmp.eq.s32.totalorder %s97, 0
      %s100 = sadd.s32 %s99, 1
      %s101 = scalar_select %p98, %s99, %s100
      %p104 = pneg %p98
      %p105 = scmp.eq.s32.totalorder %s26, 1
      %p106 = por %p104, %p105
      %p107 = scmp.ne.s32.totalorder %s99, %s102
      %p108 = scmp.eq.s32.totalorder %s26, 0
      %p109 = por %p107, %p108
      %p110 = scmp.ne.s32.totalorder %s99, %s102
      %p111 = scmp.eq.s32.totalorder %s31, 1
      %p112 = por %p110, %p111
      %p113 = scmp.ne.s32.totalorder %s102, %s103
      %p114 = scmp.eq.s32.totalorder %s31, 0
      %p115 = por %p113, %p114
      %p116 = scmp.ne.s32.totalorder %s102, %s103
      %p117 = scmp.eq.s32.totalorder %s32, 1
      %p118 = por %p116, %p117
      %p120 = scmp.ne.s32.totalorder %s103, %s119
      %p121 = scmp.eq.s32.totalorder %s32, 0
      %p122 = por %p120, %p121
      %s123 = ssub.s32 %s26, %s33
      %p124 = scmp.eq.s32.totalorder %s123, 0
      %s126 = sadd.s32 %s125, 1
      %s127 = scalar_select %p124, %s125, %s126
      %p130 = pneg %p124
      %p131 = scmp.eq.s32.totalorder %s26, 1
      %p132 = por %p130, %p131
      %p133 = scmp.ne.s32.totalorder %s125, %s128
      %p134 = scmp.eq.s32.totalorder %s26, 0
      %p135 = por %p133, %p134
      %p136 = scmp.ne.s32.totalorder %s125, %s128
      %p137 = scmp.eq.s32.totalorder %s31, 1
      %p138 = por %p136, %p137
      %p139 = scmp.ne.s32.totalorder %s128, %s129
      %p140 = scmp.eq.s32.totalorder %s31, 0
      %p141 = por %p139, %p140
      %p142 = scmp.ne.s32.totalorder %s128, %s129
      %p143 = scmp.eq.s32.totalorder %s32, 1
      %p144 = por %p142, %p143
      %p146 = scmp.ne.s32.totalorder %s129, %s145
      %p147 = scmp.eq.s32.totalorder %s32, 0
      %p148 = por %p146, %p147
      %s149 = ssub.s32 %s26, %s33
      %p150 = scmp.eq.s32.totalorder %s149, 0
      %s152 = sadd.s32 %s151, 1
      %s153 = scalar_select %p150, %s151, %s152
      %p156 = pneg %p150
      %p157 = scmp.eq.s32.totalorder %s26, 1
      %p158 = por %p156, %p157
      %p159 = scmp.ne.s32.totalorder %s151, %s154
      %p160 = scmp.eq.s32.totalorder %s26, 0
      %p161 = por %p159, %p160
      %p162 = scmp.ne.s32.totalorder %s151, %s154
      %p163 = scmp.eq.s32.totalorder %s31, 1
      %p164 = por %p162, %p163
      %p165 = scmp.ne.s32.totalorder %s154, %s155
      %p166 = scmp.eq.s32.totalorder %s31, 0
      %p167 = por %p165, %p166
      %p168 = scmp.ne.s32.totalorder %s154, %s155
      %p169 = scmp.eq.s32.totalorder %s32, 1
      %p170 = por %p168, %p169
      %p172 = scmp.ne.s32.totalorder %s155, %s171
      %p173 = scmp.eq.s32.totalorder %s32, 0
      %p174 = por %p172, %p173
      %s175 = ssub.s32 %s26, %s33
      %p176 = scmp.eq.s32.totalorder %s175, 0
      %s178 = sadd.s32 %s177, 1
      %s179 = scalar_select %p176, %s177, %s178
      %p182 = pneg %p176
      %p183 = scmp.eq.s32.totalorder %s26, 1
      %p184 = por %p182, %p183
      %p185 = scmp.ne.s32.totalorder %s177, %s180
      %p186 = scmp.eq.s32.totalorder %s26, 0
      %p187 = por %p185, %p186
      %p188 = scmp.ne.s32.totalorder %s177, %s180
      %p189 = scmp.eq.s32.totalorder %s31, 1
      %p190 = por %p188, %p189
      %p191 = scmp.ne.s32.totalorder %s180, %s181
      %p192 = scmp.eq.s32.totalorder %s31, 0
      %p193 = por %p191, %p192
      %p194 = scmp.ne.s32.totalorder %s180, %s181
      %p195 = scmp.eq.s32.totalorder %s32, 1
      %p196 = por %p194, %p195
      %p198 = scmp.ne.s32.totalorder %s181, %s197
      %p199 = scmp.eq.s32.totalorder %s32, 0
      %p200 = por %p198, %p199
      %s201 = ssub.s32 %s26, %s33
      %p202 = scmp.eq.s32.totalorder %s201, 0
      %s204 = sadd.s32 %s203, 1
      %s205 = scalar_select %p202, %s203, %s204
      %p208 = pneg %p202
      %p209 = scmp.eq.s32.totalorder %s26, 1
      %p210 = por %p208, %p209
      %p211 = scmp.ne.s32.totalorder %s203, %s206
      %p212 = scmp.eq.s32.totalorder %s26, 0
      %p213 = por %p211, %p212
      %p214 = scmp.ne.s32.totalorder %s203, %s206
      %p215 = scmp.eq.s32.totalorder %s31, 1
      %p216 = por %p214, %p215
      %p217 = scmp.ne.s32.totalorder %s206, %s207
      %p218 = scmp.eq.s32.totalorder %s31, 0
      %p219 = por %p217, %p218
      %p220 = scmp.ne.s32.totalorder %s206, %s207
      %p221 = scmp.eq.s32.totalorder %s32, 1
      %p222 = por %p220, %p221
      %p224 = scmp.ne.s32.totalorder %s207, %s223
      %p225 = scmp.eq.s32.totalorder %s32, 0
      %p226 = por %p224, %p225
      %s227 = ssub.s32 %s26, %s33
      %p228 = scmp.eq.s32.totalorder %s227, 0
      %s230 = sadd.s32 %s229, 1
      %s231 = scalar_select %p228, %s229, %s230
      %p234 = pneg %p228
      %p235 = scmp.eq.s32.totalorder %s26, 1
      %p236 = por %p234, %p235
      %p237 = scmp.ne.s32.totalorder %s229, %s232
      %p238 = scmp.eq.s32.totalorder %s26, 0
      %p239 = por %p237, %p238
      %p240 = scmp.ne.s32.totalorder %s229, %s232
      %p241 = scmp.eq.s32.totalorder %s31, 1
      %p242 = por %p240, %p241
      %p243 = scmp.ne.s32.totalorder %s232, %s233
      %p244 = scmp.eq.s32.totalorder %s31, 0
      %p245 = por %p243, %p244
      %p246 = scmp.ne.s32.totalorder %s232, %s233
      %p247 = scmp.eq.s32.totalorder %s32, 1
      %p248 = por %p246, %p247
      %p250 = scmp.ne.s32.totalorder %s233, %s249
      %p251 = scmp.eq.s32.totalorder %s32, 0
      %p252 = por %p250, %p251
      %s253 = ssub.s32 %s26, %s33
      %p254 = scmp.eq.s32.totalorder %s253, 0
      %s256 = sadd.s32 %s255, 1
      %s257 = scalar_select %p254, %s255, %s256
      %p260 = pneg %p254
      %p261 = scmp.eq.s32.totalorder %s26, 1
      %p262 = por %p260, %p261
      %p263 = scmp.ne.s32.totalorder %s255, %s258
      %p264 = scmp.eq.s32.totalorder %s26, 0
      %p265 = por %p263, %p264
      %p266 = scmp.ne.s32.totalorder %s255, %s258
      %p267 = scmp.eq.s32.totalorder %s31, 1
      %p268 = por %p266, %p267
      %p269 = scmp.ne.s32.totalorder %s258, %s259
      %p270 = scmp.eq.s32.totalorder %s31, 0
      %p271 = por %p269, %p270
      %p272 = scmp.ne.s32.totalorder %s258, %s259
      %p273 = scmp.eq.s32.totalorder %s32, 1
      %p274 = por %p272, %p273
      %p276 = scmp.ne.s32.totalorder %s259, %s275
      %p277 = scmp.eq.s32.totalorder %s32, 0
      %p278 = por %p276, %p277
      %s279 = ssub.s32 %s26, %s33
      %p280 = scmp.eq.s32.totalorder %s279, 0
      %s282 = sadd.s32 %s281, 1
      %s283 = scalar_select %p280, %s281, %s282
      %p286 = pneg %p280
      %p287 = scmp.eq.s32.totalorder %s26, 1
      %p288 = por %p286, %p287
      %p289 = scmp.ne.s32.totalorder %s281, %s284
      %p290 = scmp.eq.s32.totalorder %s26, 0
      %p291 = por %p289, %p290
      %p292 = scmp.ne.s32.totalorder %s281, %s284
      %p293 = scmp.eq.s32.totalorder %s31, 1
      %p294 = por %p292, %p293
      %p295 = scmp.ne.s32.totalorder %s284, %s285
      %p296 = scmp.eq.s32.totalorder %s31, 0
      %p297 = por %p295, %p296
      %p298 = scmp.ne.s32.totalorder %s284, %s285
      %p299 = scmp.eq.s32.totalorder %s32, 1
      %p300 = por %p298, %p299
      %p302 = scmp.ne.s32.totalorder %s285, %s301
      %p303 = scmp.eq.s32.totalorder %s32, 0
      %p304 = por %p302, %p303
      %s305 = ssub.s32 %s26, %s33
      %p306 = scmp.eq.s32.totalorder %s305, 0
      %s308 = sadd.s32 %s307, 1
      %s309 = scalar_select %p306, %s307, %s308
      %p312 = pneg %p306
      %p313 = scmp.eq.s32.totalorder %s26, 1
      %p314 = por %p312, %p313
      %p315 = scmp.ne.s32.totalorder %s307, %s310
      %p316 = scmp.eq.s32.totalorder %s26, 0
      %p317 = por %p315, %p316
      %p318 = scmp.ne.s32.totalorder %s307, %s310
      %p319 = scmp.eq.s32.totalorder %s31, 1
      %p320 = por %p318, %p319
      %p321 = scmp.ne.s32.totalorder %s310, %s311
      %p322 = scmp.eq.s32.totalorder %s31, 0
      %p323 = por %p321, %p322
      %p324 = scmp.ne.s32.totalorder %s310, %s311
      %p325 = scmp.eq.s32.totalorder %s32, 1
      %p326 = por %p324, %p325
      %p328 = scmp.ne.s32.totalorder %s311, %s327
      %p329 = scmp.eq.s32.totalorder %s32, 0
      %p330 = por %p328, %p329
      %s331 = ssub.s32 %s26, %s33
      %p332 = scmp.eq.s32.totalorder %s331, 0
      %s334 = sadd.s32 %s333, 1
      %s335 = scalar_select %p332, %s333, %s334
      %p338 = pneg %p332
      %p339 = scmp.eq.s32.totalorder %s26, 1
      %p340 = por %p338, %p339
      %p341 = scmp.ne.s32.totalorder %s333, %s336
      %p342 = scmp.eq.s32.totalorder %s26, 0
      %p343 = por %p341, %p342
      %p344 = scmp.ne.s32.totalorder %s333, %s336
      %p345 = scmp.eq.s32.totalorder %s31, 1
      %p346 = por %p344, %p345
      %p347 = scmp.ne.s32.totalorder %s336, %s337
      %p348 = scmp.eq.s32.totalorder %s31, 0
      %p349 = por %p347, %p348
      %p350 = scmp.ne.s32.totalorder %s336, %s337
      %p351 = scmp.eq.s32.totalorder %s32, 1
      %p352 = por %p350, %p351
      %p354 = scmp.ne.s32.totalorder %s337, %s353
      %p355 = scmp.eq.s32.totalorder %s32, 0
      %p356 = por %p354, %p355
      %s357 = ssub.s32 %s26, %s33
      %p358 = scmp.eq.s32.totalorder %s357, 0
      %s360 = sadd.s32 %s359, 1
      %s361 = scalar_select %p358, %s359, %s360
      %p364 = pneg %p358
      %p365 = scmp.eq.s32.totalorder %s26, 1
      %p366 = por %p364, %p365
      %p367 = scmp.ne.s32.totalorder %s359, %s362
      %p368 = scmp.eq.s32.totalorder %s26, 0
      %p369 = por %p367, %p368
      %p370 = scmp.ne.s32.totalorder %s359, %s362
      %p371 = scmp.eq.s32.totalorder %s31, 1
      %p372 = por %p370, %p371
      %p373 = scmp.ne.s32.totalorder %s362, %s363
      %p374 = scmp.eq.s32.totalorder %s31, 0
      %p375 = por %p373, %p374
      %p376 = scmp.ne.s32.totalorder %s362, %s363
      %p377 = scmp.eq.s32.totalorder %s32, 1
      %p378 = por %p376, %p377
      %p380 = scmp.ne.s32.totalorder %s363, %s379
      %p381 = scmp.eq.s32.totalorder %s32, 0
      %p382 = por %p380, %p381
      %s383 = ssub.s32 %s26, %s33
      %p384 = scmp.eq.s32.totalorder %s383, 0
      %s386 = sadd.s32 %s385, 1
      %s387 = scalar_select %p384, %s385, %s386
      %p390 = pneg %p384
      %p391 = scmp.eq.s32.totalorder %s26, 1
      %p392 = por %p390, %p391
      %p393 = scmp.ne.s32.totalorder %s385, %s388
      %p394 = scmp.eq.s32.totalorder %s26, 0
      %p395 = por %p393, %p394
      %p396 = scmp.ne.s32.totalorder %s385, %s388
      %p397 = scmp.eq.s32.totalorder %s31, 1
      %p398 = por %p396, %p397
      %p399 = scmp.ne.s32.totalorder %s388, %s389
      %p400 = scmp.eq.s32.totalorder %s31, 0
      %p401 = por %p399, %p400
      %p402 = scmp.ne.s32.totalorder %s388, %s389
      %p403 = scmp.eq.s32.totalorder %s32, 1
      %p404 = por %p402, %p403
      %p406 = scmp.ne.s32.totalorder %s389, %s405
      %p407 = scmp.eq.s32.totalorder %s32, 0
      %p408 = por %p406, %p407
      %s410 = sadd.s32 %s409, 1
      %p413 = scmp.eq.s32.totalorder %s26, 1
      %p414 = scmp.ne.s32.totalorder %s409, %s411
      %p415 = scmp.eq.s32.totalorder %s26, 0
      %p416 = por %p414, %p415
      %p417 = scmp.ne.s32.totalorder %s409, %s411
      %p418 = scmp.eq.s32.totalorder %s31, 1
      %p419 = por %p417, %p418
      %p420 = scmp.ne.s32.totalorder %s411, %s412
      %p421 = scmp.eq.s32.totalorder %s31, 0
      %p422 = por %p420, %p421
      %p423 = scmp.ne.s32.totalorder %s411, %s412
      %p424 = scmp.eq.s32.totalorder %s32, 1
      %p425 = por %p423, %p424
      %p427 = scmp.ne.s32.totalorder %s412, %s426
      %p428 = scmp.eq.s32.totalorder %s32, 0
      %p429 = por %p427, %p428
      %s431 = sadd.s32 %s430, 1
      %p434 = scmp.eq.s32.totalorder %s26, 1
      %p435 = scmp.ne.s32.totalorder %s430, %s432
      %p436 = scmp.eq.s32.totalorder %s26, 0
      %p437 = por %p435, %p436
      %p438 = scmp.ne.s32.totalorder %s430, %s432
      %p439 = scmp.eq.s32.totalorder %s31, 1
      %p440 = por %p438, %p439
      %p441 = scmp.ne.s32.totalorder %s432, %s433
      %p442 = scmp.eq.s32.totalorder %s31, 0
      %p443 = por %p441, %p442
      %p444 = scmp.ne.s32.totalorder %s432, %s433
      %p445 = scmp.eq.s32.totalorder %s32, 1
      %p446 = por %p444, %p445
      %p448 = scmp.ne.s32.totalorder %s433, %s447
      %p449 = scmp.eq.s32.totalorder %s32, 0
      %p450 = por %p448, %p449
      %s452 = sadd.s32 %s451, 1
      %p455 = scmp.eq.s32.totalorder %s26, 1
      %p456 = scmp.ne.s32.totalorder %s451, %s453
      %p457 = scmp.eq.s32.totalorder %s26, 0
      %p458 = por %p456, %p457
      %p459 = scmp.ne.s32.totalorder %s451, %s453
      %p460 = scmp.eq.s32.totalorder %s31, 1
      %p461 = por %p459, %p460
      %p462 = scmp.ne.s32.totalorder %s453, %s454
      %p463 = scmp.eq.s32.totalorder %s31, 0
      %p464 = por %p462, %p463
      %p465 = scmp.ne.s32.totalorder %s453, %s454
      %p466 = scmp.eq.s32.totalorder %s32, 1
      %p467 = por %p465, %p466
      %p469 = scmp.ne.s32.totalorder %s454, %s468
      %p470 = scmp.eq.s32.totalorder %s32, 0
      %p471 = por %p469, %p470
      %p472 = scmp.le.s32.totalorder 1, %s26
      %p473 = scmp.lt.s32.totalorder %s26, 3
      %p474 = pnand %p472, %p473
      %p475 = pneg %p474
      // Predicated region
      $region9: #{tpu_custom_call.1} parent=5 // pred_check
        _
      $region10: #{tpu_custom_call.1} parent=5 // pred_check_branch
        %477 = sbr.rel (%p474) target = $region12
      $region11: #{tpu_custom_call.1} parent=5 // pred_region
        %s478 = ssub.s32 %s26, 1
        // Predicated region
        $region13: #{tpu_custom_call.1} parent=11 // pred_check
          %p479 = pneg %p47
        $region14: #{tpu_custom_call.1} parent=11 // pred_check_branch
          %481 = sbr.rel (%p479) target = $region16
        $region15: #{tpu_custom_call.1} parent=11 // pred_region
          %s483 = ssub.s32 128, 128
          %484 = vsyncadd [#allocation4], %s483
          %s486 = sshll.u32 [#allocation3], 4
          %s487 = int_to_ptr.vmem [resolvable:$true] %s486
          %489 = dma.hbm_to_vmem [thread:$0]  %s0, 128, %s487, [#allocation4]
        $region16: #{tpu_custom_call.1} parent=11 // pred_fallthru
          _
        // Predicated region
        $region17: #{tpu_custom_call.1} parent=11 // pred_check
          %p490 = pneg %p68
        $region18: #{tpu_custom_call.1} parent=11 // pred_check_branch
          %492 = sbr.rel (%p490) target = $region20
        $region19: #{tpu_custom_call.1} parent=11 // pred_region
          %s494 = ssub.s32 256, 256
          %495 = vsyncadd [#allocation7], %s494
          %s496 = sshll.u32 [#allocation6], 4
          %s497 = int_to_ptr.vmem [resolvable:$true] %s496
          %502 = dma.hbm_to_vmem [thread:$0]  %s1, 256, %s497, [#allocation7], 64, 64, 4
        $region20: #{tpu_custom_call.1} parent=11 // pred_fallthru
          _
        // Predicated region
        $region21: #{tpu_custom_call.1} parent=11 // pred_check
          %p503 = pneg %p89
        $region22: #{tpu_custom_call.1} parent=11 // pred_check_branch
          %505 = sbr.rel (%p503) target = $region24
        $region23: #{tpu_custom_call.1} parent=11 // pred_region
          _
        $region24: #{tpu_custom_call.1} parent=11 // pred_fallthru
          _
        // Predicated region
        $region25: #{tpu_custom_call.1} parent=11 // pred_check
          %p506 = pneg %p422
        $region26: #{tpu_custom_call.1} parent=11 // pred_check_branch
          %508 = sbr.rel (%p506) target = $region28
        $region27: #{tpu_custom_call.1} parent=11 // pred_region
          %s510 = ssub.s32 1024, 1024
          %511 = vsyncadd [#allocation7], %s510
          %s512 = sshll.u32 [#allocation14], 4
          %s513 = int_to_ptr.vmem [resolvable:$true] %s512
          %518 = dma.hbm_to_vmem [thread:$0]  %s15, 1024, %s513, [#allocation7], 64, 64, 4
        $region28: #{tpu_custom_call.1} parent=11 // pred_fallthru
          _
        // Predicated region
        $region29: #{tpu_custom_call.1} parent=11 // pred_check
          %p519 = pneg %p443
        $region30: #{tpu_custom_call.1} parent=11 // pred_check_branch
          %521 = sbr.rel (%p519) target = $region32
        $region31: #{tpu_custom_call.1} parent=11 // pred_region
          _
        $region32: #{tpu_custom_call.1} parent=11 // pred_fallthru
          _
      $region12: #{tpu_custom_call.1} parent=5 // pred_fallthru
        _
      %p522 = scmp.lt.s32.totalorder %s26, 2
      // Predicated region
      $region33: #{tpu_custom_call.1} parent=5 // pred_check
        %p523 = pneg %p522
      $region34: #{tpu_custom_call.1} parent=5 // pred_check_branch
        %525 = sbr.rel (%p523) target = $region36
      $region35: #{tpu_custom_call.1} parent=5 // pred_region
        // Predicated region
        $region37: #{tpu_custom_call.1} parent=35 // pred_check
          %p526 = pneg %p109
        $region38: #{tpu_custom_call.1} parent=35 // pred_check_branch
          %528 = sbr.rel (%p526) target = $region40
        $region39: #{tpu_custom_call.1} parent=35 // pred_region
          %s529 = sand.u32 %s26, 1
          %s530 = scalar_lea.sflag [#allocation4], %s529
          %s531 = sand.u32 %s99, 1
          %s532 = smul.addr %s531, 192
          %s533 = scalar_lea.vmem [#allocation8], %s532
          %s535 = ssub.s32 3072, 3072
          %536 = vsyncadd %s530, %s535
          %s537 = smul.addr %s26, 48
          %s538 = smul.addr %s537, 64
          %s539 = scalar_lea.hbm %s3, %s538
          %s540 = sshll.u32 %s533, 4
          %s541 = int_to_ptr.vmem [resolvable:$true] %s540
          %546 = dma.hbm_to_vmem [thread:$0]  %s539, 3072, %s541, %s530, 192, 192, 12
        $region40: #{tpu_custom_call.1} parent=35 // pred_fallthru
          _
        // Predicated region
        $region41: #{tpu_custom_call.1} parent=35 // pred_check
          %p547 = pneg %p135
        $region42: #{tpu_custom_call.1} parent=35 // pred_check_branch
          %549 = sbr.rel (%p547) target = $region44
        $region43: #{tpu_custom_call.1} parent=35 // pred_region
          %p550 = scmp.lt.s32.totalorder %s26, 1
          %s551 = scalar_select %p550, %s26, 1
          %s552 = smul.addr %s551, 3
          %s553 = scalar_lea.vmem %s4, %s552
        $region44: #{tpu_custom_call.1} parent=35 // pred_fallthru
          _
        // Predicated region
        $region45: #{tpu_custom_call.1} parent=35 // pred_check
          %p554 = pneg %p161
        $region46: #{tpu_custom_call.1} parent=35 // pred_check_branch
          %556 = sbr.rel (%p554) target = $region48
        $region47: #{tpu_custom_call.1} parent=35 // pred_region
          %s557 = sand.u32 %s26, 1
          %s558 = scalar_lea.sflag [#allocation4], %s557
          %s559 = sand.u32 %s151, 1
          %s560 = smul.addr %s559, 64
          %s561 = scalar_lea.vmem [#allocation9], %s560
          %s563 = ssub.s32 1024, 1024
          %564 = vsyncadd %s558, %s563
          %s565 = smul.addr %s26, 16
          %s566 = smul.addr %s565, 64
          %s567 = scalar_lea.hbm %s5, %s566
          %s568 = sshll.u32 %s561, 4
          %s569 = int_to_ptr.vmem [resolvable:$true] %s568
          %574 = dma.hbm_to_vmem [thread:$0]  %s567, 1024, %s569, %s558, 64, 64, 4
        $region48: #{tpu_custom_call.1} parent=35 // pred_fallthru
          _
        // Predicated region
        $region49: #{tpu_custom_call.1} parent=35 // pred_check
          %p575 = pneg %p187
        $region50: #{tpu_custom_call.1} parent=35 // pred_check_branch
          %577 = sbr.rel (%p575) target = $region52
        $region51: #{tpu_custom_call.1} parent=35 // pred_region
          %p578 = scmp.lt.s32.totalorder %s26, 1
          %s579 = scalar_select %p578, %s26, 1
          %s580 = scalar_lea.vmem %s6, %s579
        $region52: #{tpu_custom_call.1} parent=35 // pred_fallthru
          _
        // Predicated region
        $region53: #{tpu_custom_call.1} parent=35 // pred_check
          %p581 = pneg %p213
        $region54: #{tpu_custom_call.1} parent=35 // pred_check_branch
          %583 = sbr.rel (%p581) target = $region56
        $region55: #{tpu_custom_call.1} parent=35 // pred_region
          %p584 = scmp.lt.s32.totalorder %s26, 1
          %s585 = scalar_select %p584, %s26, 1
          %s586 = scalar_lea.vmem %s7, %s585
        $region56: #{tpu_custom_call.1} parent=35 // pred_fallthru
          _
        // Predicated region
        $region57: #{tpu_custom_call.1} parent=35 // pred_check
          %p587 = pneg %p239
        $region58: #{tpu_custom_call.1} parent=35 // pred_check_branch
          %589 = sbr.rel (%p587) target = $region60
        $region59: #{tpu_custom_call.1} parent=35 // pred_region
          %p590 = scmp.lt.s32.totalorder %s26, 1
          %s591 = scalar_select %p590, %s26, 1
          %s592 = scalar_lea.vmem %s8, %s591
        $region60: #{tpu_custom_call.1} parent=35 // pred_fallthru
          _
        // Predicated region
        $region61: #{tpu_custom_call.1} parent=35 // pred_check
          %p593 = pneg %p265
        $region62: #{tpu_custom_call.1} parent=35 // pred_check_branch
          %595 = sbr.rel (%p593) target = $region64
        $region63: #{tpu_custom_call.1} parent=35 // pred_region
          %s596 = sand.u32 %s26, 1
          %s597 = scalar_lea.sflag [#allocation4], %s596
          %s598 = sand.u32 %s255, 1
          %s599 = scalar_lea.vmem [#allocation10], %s598
          %s601 = ssub.s32 16, 16
          %602 = vsyncadd %s597, %s601
          %s603 = smul.addr %s26, 16
          %s604 = scalar_lea.hbm %s9, %s603
          %s606 = sshll.u32 %s599, 4
          %s607 = int_to_ptr.vmem [resolvable:$true] %s606
          %609 = dma.hbm_to_vmem [thread:$0]  %s604, 16, %s607, %s597
        $region64: #{tpu_custom_call.1} parent=35 // pred_fallthru
          _
        // Predicated region
        $region65: #{tpu_custom_call.1} parent=35 // pred_check
          %p610 = pneg %p291
        $region66: #{tpu_custom_call.1} parent=35 // pred_check_branch
          %612 = sbr.rel (%p610) target = $region68
        $region67: #{tpu_custom_call.1} parent=35 // pred_region
          %s613 = sand.u32 %s26, 1
          %s614 = scalar_lea.sflag [#allocation4], %s613
          %s615 = sand.u32 %s281, 1
          %s616 = scalar_lea.vmem [#allocation11], %s615
          %s618 = ssub.s32 16, 16
          %619 = vsyncadd %s614, %s618
          %s620 = smul.addr %s26, 16
          %s621 = scalar_lea.hbm %s10, %s620
          %s623 = sshll.u32 %s616, 4
          %s624 = int_to_ptr.vmem [resolvable:$true] %s623
          %626 = dma.hbm_to_vmem [thread:$0]  %s621, 16, %s624, %s614
        $region68: #{tpu_custom_call.1} parent=35 // pred_fallthru
          _
        // Predicated region
        $region69: #{tpu_custom_call.1} parent=35 // pred_check
          %p627 = pneg %p317
        $region70: #{tpu_custom_call.1} parent=35 // pred_check_branch
          %629 = sbr.rel (%p627) target = $region72
        $region71: #{tpu_custom_call.1} parent=35 // pred_region
          %s630 = sand.u32 %s26, 1
          %s631 = scalar_lea.sflag [#allocation4], %s630
          %s632 = sand.u32 %s307, 1
          %s633 = smul.addr %s632, 1024
          %s634 = scalar_lea.vmem [#allocation12], %s633
          %s636 = ssub.s32 16384, 16384
          %637 = vsyncadd %s631, %s636
          %s638 = smul.addr %s26, 256
          %s639 = smul.addr %s638, 64
          %s640 = scalar_lea.hbm %s11, %s639
          %s641 = sshll.u32 %s634, 4
          %s642 = int_to_ptr.vmem [resolvable:$true] %s641
          %647 = dma.hbm_to_vmem [thread:$0]  %s640, 16384, %s642, %s631, 1024, 1024, 64
        $region72: #{tpu_custom_call.1} parent=35 // pred_fallthru
          _
        // Predicated region
        $region73: #{tpu_custom_call.1} parent=35 // pred_check
          %p648 = pneg %p343
        $region74: #{tpu_custom_call.1} parent=35 // pred_check_branch
          %650 = sbr.rel (%p648) target = $region76
        $region75: #{tpu_custom_call.1} parent=35 // pred_region
          %p651 = scmp.lt.s32.totalorder %s26, 1
          %s652 = scalar_select %p651, %s26, 1
          %s653 = smul.addr %s652, 16
          %s654 = scalar_lea.vmem %s12, %s653
        $region76: #{tpu_custom_call.1} parent=35 // pred_fallthru
          _
        // Predicated region
        $region77: #{tpu_custom_call.1} parent=35 // pred_check
          %p655 = pneg %p369
        $region78: #{tpu_custom_call.1} parent=35 // pred_check_branch
          %657 = sbr.rel (%p655) target = $region80
        $region79: #{tpu_custom_call.1} parent=35 // pred_region
          %s658 = sand.u32 %s26, 1
          %s659 = scalar_lea.sflag [#allocation4], %s658
          %s660 = sand.u32 %s359, 1
          %s661 = smul.addr %s660, 1024
          %s662 = scalar_lea.vmem [#allocation13], %s661
          %s664 = ssub.s32 16384, 16384
          %665 = vsyncadd %s659, %s664
          %s666 = smul.addr %s26, 256
          %s667 = smul.addr %s666, 64
          %s668 = scalar_lea.hbm %s13, %s667
          %s669 = sshll.u32 %s662, 4
          %s670 = int_to_ptr.vmem [resolvable:$true] %s669
          %675 = dma.hbm_to_vmem [thread:$0]  %s668, 16384, %s670, %s659, 64, 64, 4
        $region80: #{tpu_custom_call.1} parent=35 // pred_fallthru
          _
        // Predicated region
        $region81: #{tpu_custom_call.1} parent=35 // pred_check
          %p676 = pneg %p395
        $region82: #{tpu_custom_call.1} parent=35 // pred_check_branch
          %678 = sbr.rel (%p676) target = $region84
        $region83: #{tpu_custom_call.1} parent=35 // pred_region
          %p679 = scmp.lt.s32.totalorder %s26, 1
          %s680 = scalar_select %p679, %s26, 1
          %s681 = scalar_lea.vmem %s14, %s680
        $region84: #{tpu_custom_call.1} parent=35 // pred_fallthru
          _
      $region36: #{tpu_custom_call.1} parent=5 // pred_fallthru
        _
      %p682 = scmp.le.s32.totalorder 1, %s26
      %p683 = scmp.lt.s32.totalorder %s26, 3
      %p684 = pnand %p682, %p683
      %p685 = pneg %p684
      // Predicated region
      $region85: #{tpu_custom_call.1} parent=5 // pred_check
        _
      $region86: #{tpu_custom_call.1} parent=5 // pred_check_branch
        %687 = sbr.rel (%p684) target = $region88
      $region87: #{tpu_custom_call.1} parent=5 // pred_region
        %s688 = ssub.s32 %s26, 1
        // Predicated region
        $region89: #{tpu_custom_call.1} parent=87 // pred_check
          %p689 = pneg %p47
        $region90: #{tpu_custom_call.1} parent=87 // pred_check_branch
          %691 = sbr.rel (%p689) target = $region92
        $region91: #{tpu_custom_call.1} parent=87 // pred_region
          %692 = dma.done [#allocation4], 128
        $region92: #{tpu_custom_call.1} parent=87 // pred_fallthru
          _
        // Predicated region
        $region93: #{tpu_custom_call.1} parent=87 // pred_check
          %p693 = pneg %p68
        $region94: #{tpu_custom_call.1} parent=87 // pred_check_branch
          %695 = sbr.rel (%p693) target = $region96
        $region95: #{tpu_custom_call.1} parent=87 // pred_region
          %696 = dma.done [#allocation7], 256
        $region96: #{tpu_custom_call.1} parent=87 // pred_fallthru
          _
        %s697 = sand.u32 %s31, 1
        %s698 = scalar_lea.sflag [#allocation4], %s697
        %s699 = sand.u32 %s102, 1
        %s700 = smul.addr %s699, 192
        %s701 = scalar_lea.vmem [#allocation8], %s700
        // Predicated region
        $region97: #{tpu_custom_call.1} parent=87 // pred_check
          %p702 = pneg %p115
        $region98: #{tpu_custom_call.1} parent=87 // pred_check_branch
          %704 = sbr.rel (%p702) target = $region100
        $region99: #{tpu_custom_call.1} parent=87 // pred_region
          %705 = dma.done %s698, 3072
        $region100: #{tpu_custom_call.1} parent=87 // pred_fallthru
          _
        %s706 = sand.u32 %s31, 1
        %s707 = scalar_lea.sflag [#allocation4], %s706
        %s708 = sand.u32 %s154, 1
        %s709 = smul.addr %s708, 64
        %s710 = scalar_lea.vmem [#allocation9], %s709
        // Predicated region
        $region101: #{tpu_custom_call.1} parent=87 // pred_check
          %p711 = pneg %p167
        $region102: #{tpu_custom_call.1} parent=87 // pred_check_branch
          %713 = sbr.rel (%p711) target = $region104
        $region103: #{tpu_custom_call.1} parent=87 // pred_region
          %714 = dma.done %s707, 1024
        $region104: #{tpu_custom_call.1} parent=87 // pred_fallthru
          _
        %s715 = sand.u32 %s31, 1
        %s716 = scalar_lea.sflag [#allocation4], %s715
        %s717 = sand.u32 %s258, 1
        %s718 = scalar_lea.vmem [#allocation10], %s717
        // Predicated region
        $region105: #{tpu_custom_call.1} parent=87 // pred_check
          %p719 = pneg %p271
        $region106: #{tpu_custom_call.1} parent=87 // pred_check_branch
          %721 = sbr.rel (%p719) target = $region108
        $region107: #{tpu_custom_call.1} parent=87 // pred_region
          %722 = dma.done %s716, 16
        $region108: #{tpu_custom_call.1} parent=87 // pred_fallthru
          _
        %s723 = sand.u32 %s31, 1
        %s724 = scalar_lea.sflag [#allocation4], %s723
        %s725 = sand.u32 %s284, 1
        %s726 = scalar_lea.vmem [#allocation11], %s725
        // Predicated region
        $region109: #{tpu_custom_call.1} parent=87 // pred_check
          %p727 = pneg %p297
        $region110: #{tpu_custom_call.1} parent=87 // pred_check_branch
          %729 = sbr.rel (%p727) target = $region112
        $region111: #{tpu_custom_call.1} parent=87 // pred_region
          %730 = dma.done %s724, 16
        $region112: #{tpu_custom_call.1} parent=87 // pred_fallthru
          _
        %s731 = sand.u32 %s31, 1
        %s732 = scalar_lea.sflag [#allocation4], %s731
        %s733 = sand.u32 %s310, 1
        %s734 = smul.addr %s733, 1024
        %s735 = scalar_lea.vmem [#allocation12], %s734
        // Predicated region
        $region113: #{tpu_custom_call.1} parent=87 // pred_check
          %p736 = pneg %p323
        $region114: #{tpu_custom_call.1} parent=87 // pred_check_branch
          %738 = sbr.rel (%p736) target = $region116
        $region115: #{tpu_custom_call.1} parent=87 // pred_region
          %739 = dma.done %s732, 16384
        $region116: #{tpu_custom_call.1} parent=87 // pred_fallthru
          _
        %s740 = sand.u32 %s31, 1
        %s741 = scalar_lea.sflag [#allocation4], %s740
        %s742 = sand.u32 %s362, 1
        %s743 = smul.addr %s742, 1024
        %s744 = scalar_lea.vmem [#allocation13], %s743
        // Predicated region
        $region117: #{tpu_custom_call.1} parent=87 // pred_check
          %p745 = pneg %p375
        $region118: #{tpu_custom_call.1} parent=87 // pred_check_branch
          %747 = sbr.rel (%p745) target = $region120
        $region119: #{tpu_custom_call.1} parent=87 // pred_region
          %748 = dma.done %s741, 16384
        $region120: #{tpu_custom_call.1} parent=87 // pred_fallthru
          _
        // Predicated region
        $region121: #{tpu_custom_call.1} parent=87 // pred_check
          %p749 = pneg %p422
        $region122: #{tpu_custom_call.1} parent=87 // pred_check_branch
          %751 = sbr.rel (%p749) target = $region124
        $region123: #{tpu_custom_call.1} parent=87 // pred_region
          %752 = dma.done [#allocation7], 1024
        $region124: #{tpu_custom_call.1} parent=87 // pred_fallthru
          _
        %p753 = pneg %p47
        %p754 = pneg %p44
        %p755 = pneg %p68
        %p756 = pneg %p65
        %p757 = pneg %p89
        %p758 = pneg %p86
        %s759 = sand.u32 %s31, 1
        %s760 = scalar_lea.sflag [#allocation4], %s759
        %s761 = sand.u32 %s102, 1
        %s762 = smul.addr %s761, 192
        %s763 = scalar_lea.vmem [#allocation8], %s762
        %p764 = pneg %p115
        %p765 = pneg %p112
        %p766 = scmp.lt.s32.totalorder %s31, 1
        %s767 = scalar_select %p766, %s31, 1
        %s768 = smul.addr %s767, 3
        %s769 = scalar_lea.vmem %s4, %s768
        %p770 = pneg %p141
        %p771 = pneg %p138
        %s772 = sand.u32 %s31, 1
        %s773 = scalar_lea.sflag [#allocation4], %s772
        %s774 = sand.u32 %s154, 1
        %s775 = smul.addr %s774, 64
        %s776 = scalar_lea.vmem [#allocation9], %s775
        %p777 = pneg %p167
        %p778 = pneg %p164
        %p779 = scmp.lt.s32.totalorder %s31, 1
        %s780 = scalar_select %p779, %s31, 1
        %s781 = scalar_lea.vmem %s6, %s780
        %p782 = pneg %p193
        %p783 = pneg %p190
        %p784 = scmp.lt.s32.totalorder %s31, 1
        %s785 = scalar_select %p784, %s31, 1
        %s786 = scalar_lea.vmem %s7, %s785
        %p787 = pneg %p219
        %p788 = pneg %p216
        %p789 = scmp.lt.s32.totalorder %s31, 1
        %s790 = scalar_select %p789, %s31, 1
        %s791 = scalar_lea.vmem %s8, %s790
        %p792 = pneg %p245
        %p793 = pneg %p242
        %s794 = sand.u32 %s31, 1
        %s795 = scalar_lea.sflag [#allocation4], %s794
        %s796 = sand.u32 %s258, 1
        %s797 = scalar_lea.vmem [#allocation10], %s796
        %p798 = pneg %p271
        %p799 = pneg %p268
        %s800 = sand.u32 %s31, 1
        %s801 = scalar_lea.sflag [#allocation4], %s800
        %s802 = sand.u32 %s284, 1
        %s803 = scalar_lea.vmem [#allocation11], %s802
        %p804 = pneg %p297
        %p805 = pneg %p294
        %s806 = sand.u32 %s31, 1
        %s807 = scalar_lea.sflag [#allocation4], %s806
        %s808 = sand.u32 %s310, 1
        %s809 = smul.addr %s808, 1024
        %s810 = scalar_lea.vmem [#allocation12], %s809
        %p811 = pneg %p323
        %p812 = pneg %p320
        %p813 = scmp.lt.s32.totalorder %s31, 1
        %s814 = scalar_select %p813, %s31, 1
        %s815 = smul.addr %s814, 16
        %s816 = scalar_lea.vmem %s12, %s815
        %p817 = pneg %p349
        %p818 = pneg %p346
        %s819 = sand.u32 %s31, 1
        %s820 = scalar_lea.sflag [#allocation4], %s819
        %s821 = sand.u32 %s362, 1
        %s822 = smul.addr %s821, 1024
        %s823 = scalar_lea.vmem [#allocation13], %s822
        %p824 = pneg %p375
        %p825 = pneg %p372
        %p826 = scmp.lt.s32.totalorder %s31, 1
        %s827 = scalar_select %p826, %s31, 1
        %s828 = scalar_lea.vmem %s14, %s827
        %p829 = pneg %p401
        %p830 = pneg %p398
        %p831 = pneg %p422
        %p832 = pneg %p419
        %p833 = pneg %p443
        %p834 = pneg %p440
        %p835 = pneg %p464
        %p836 = pneg %p461
        %p837 = scmp.lt.s32.totalorder %s31, 1
        %s838 = scalar_select %p837, %s31, 1
        %s839 = smul.addr %s838, 3
        %s840 = scalar_lea.vmem %s4, %s839
        %p841 = scmp.lt.s32.totalorder %s31, 1
        %s842 = scalar_select %p841, %s31, 1
        %s843 = scalar_lea.vmem %s6, %s842
        %p844 = scmp.lt.s32.totalorder %s31, 1
        %s845 = scalar_select %p844, %s31, 1
        %s846 = scalar_lea.vmem %s7, %s845
        %p847 = scmp.lt.s32.totalorder %s31, 1
        %s848 = scalar_select %p847, %s31, 1
        %s849 = scalar_lea.vmem %s8, %s848
        %p850 = scmp.lt.s32.totalorder %s31, 1
        %s851 = scalar_select %p850, %s31, 1
        %s852 = smul.addr %s851, 16
        %s853 = scalar_lea.vmem %s12, %s852
        %p854 = scmp.lt.s32.totalorder %s31, 1
        %s855 = scalar_select %p854, %s31, 1
        %s856 = scalar_lea.vmem %s14, %s855
        %p858 = scmp.eq.s32.totalorder %s31, 0
        // Predicated region
        $region125: #{tpu_custom_call.1} parent=87 // pred_check
          %p859 = pneg %p858
        $region126: #{tpu_custom_call.1} parent=87 // pred_check_branch
          %861 = sbr.rel (%p859) target = $region128
        $region127: #{tpu_custom_call.1} parent=87 // pred_region
          %v862 = vld [vmem:[#allocation3] sm:$0xff]
          %v863 = vld [vmem:[#allocation6] sm:$0xf]
          %v864 = vld [vmem:[#allocation6 + $0x4] sm:$0xf]
          %v865 = vld [vmem:[#allocation6 + $0x8] sm:$0xf]
          %v866 = vld [vmem:[#allocation6 + $0xc] sm:$0xf]
          %v867 = vpack.c.bf16 %v862, %v862
          %v868 = vld [vmem:[%s2] sm:$0x1]
          %v870 = vlaneseq
          %v871 = vshrl.u32 %v870, 7
          %v872 = vsub.s32 0, %v871
          %v873 = vrot.slane %v868, %v872
          %v879 = vunpack.c.l.b16 %v863
          %v880 = vunpack.c.l.b16 %v864
          %v881 = vunpack.c.l.b16 %v865
          %v882 = vunpack.c.l.b16 %v866
          %v883 = vpack.c.b16 %v880, %v879
          %v884 = vpack.c.b16 %v882, %v881
          %vm887 = vcmask 261120
          %v889 = vsel %vm887, %v867, 0
          %891 = vmatprep.subr.bf16.mxu0 0
          %892 = vmatpush1.bf16.msra.mxu0 %v883
          %893 = vmatprep.subr.bf16.mxu0 0
          %894 = vmatpush1.bf16.msra.mxu0 %v884
          %895 = vmatprep.subr.bf16.mxu0 0
          %896 = vmatpush1.bf16.msra.mxu0 0
          %897 = vmatprep.subr.bf16.mxu0 0
          %898 = vmatpush1.bf16.msra.mxu0 0
          %899 = vmatprep.subr.bf16.mxu0 0
          %900 = vmatpush1.bf16.msra.mxu0 0
          %901 = vmatprep.subr.bf16.mxu0 0
          %902 = vmatpush1.bf16.msra.mxu0 0
          %903 = vmatprep.subr.bf16.mxu0 0
          %904 = vmatpush1.bf16.msra.mxu0 0
          %905 = vmatprep.subr.bf16.mxu0 0
          %906 = vmatpush1.bf16.msra.mxu0 0
          %907 = vmatprep.subr.bf16.mxu0 0
          %908 = vmatpush1.bf16.msra.mxu0 0
          %909 = vmatprep.subr.bf16.mxu0 0
          %910 = vmatpush1.bf16.msra.mxu0 0
          %911 = vmatprep.subr.bf16.mxu0 0
          %912 = vmatpush1.bf16.msra.mxu0 0
          %913 = vmatprep.subr.bf16.mxu0 0
          %914 = vmatpush1.bf16.msra.mxu0 0
          %915 = vmatprep.subr.bf16.mxu0 0
          %916 = vmatpush1.bf16.msra.mxu0 0
          %917 = vmatprep.subr.bf16.mxu0 0
          %918 = vmatpush1.bf16.msra.mxu0 0
          %919 = vmatprep.subr.bf16.mxu0 0
          %920 = vmatpush1.bf16.msra.mxu0 0
          %921 = vmatprep.subr.bf16.mxu0 0
          %922 = vmatpush1.bf16.msra.mxu0 0
          %923 = vmatprep.mubr.bf16.mxu0 0
          %924 = vmatmul.mubr.bf16.gmra.mrb[0].mxu0 %v889
          %v925 = vpop.f32.mrb[0].mxu0
          %v926 = vadd.f32 %v873, %v925
          %v927 = vpop.f32.mrb[0].mxu0
          %v928 = vpop.f32.mrb[0].mxu0
          %v929 = vpop.f32.mrb[0].mxu0
          %930 = vdwg.mxu0
          %931 = vst [vmem:[#allocation2] sm:$0xff] %v926
        $region128: #{tpu_custom_call.1} parent=87 // pred_fallthru
          _
        %v932 = vld [vmem:[#allocation2] sm:$0xff]
        %v933 = vld [vmem:[%s701] sm:$0xff]
        %v934 = vld [vmem:[%s701 + $0x8] sm:$0xf]
        %v935 = vld [vmem:[%s701 + $0xc] sm:$0xff]
        %v936 = vld [vmem:[%s701 + $0x14] sm:$0xf]
        %v937 = vld [vmem:[%s701 + $0x18] sm:$0xff]
        %v938 = vld [vmem:[%s701 + $0x20] sm:$0xf]
        %v939 = vld [vmem:[%s701 + $0x24] sm:$0xff]
        %v940 = vld [vmem:[%s701 + $0x2c] sm:$0xf]
        %v941 = vld [vmem:[%s701 + $0x30] sm:$0xff]
        %v942 = vld [vmem:[%s701 + $0x38] sm:$0xf]
        %v943 = vld [vmem:[%s701 + $0x3c] sm:$0xff]
        %v944 = vld [vmem:[%s701 + $0x44] sm:$0xf]
        %v945 = vld [vmem:[%s701 + $0x48] sm:$0xff]
        %v946 = vld [vmem:[%s701 + $0x50] sm:$0xf]
        %v947 = vld [vmem:[%s701 + $0x54] sm:$0xff]
        %v948 = vld [vmem:[%s701 + $0x5c] sm:$0xf]
        %v949 = vld [vmem:[%s701 + $0x60] sm:$0xff]
        %v950 = vld [vmem:[%s701 + $0x68] sm:$0xf]
        %v951 = vld [vmem:[%s701 + $0x6c] sm:$0xff]
        %v952 = vld [vmem:[%s701 + $0x74] sm:$0xf]
        %v953 = vld [vmem:[%s701 + $0x78] sm:$0xff]
        %v954 = vld [vmem:[%s701 + $0x80] sm:$0xf]
        %v955 = vld [vmem:[%s701 + $0x84] sm:$0xff]
        %v956 = vld [vmem:[%s701 + $0x8c] sm:$0xf]
        %v957 = vld [vmem:[%s701 + $0x90] sm:$0xff]
        %v958 = vld [vmem:[%s701 + $0x98] sm:$0xf]
        %v959 = vld [vmem:[%s701 + $0x9c] sm:$0xff]
        %v960 = vld [vmem:[%s701 + $0xa4] sm:$0xf]
        %v961 = vld [vmem:[%s701 + $0xa8] sm:$0xff]
        %v962 = vld [vmem:[%s701 + $0xb0] sm:$0xf]
        %v963 = vld [vmem:[%s701 + $0xb4] sm:$0xff]
        %v964 = vld [vmem:[%s701 + $0xbc] sm:$0xf]
        %v965 = vpack.c.bf16 %v932, %v932
        %v966 = vld [vmem:[%s840] sm:$0x7]
        %v968 = vlaneseq
        %v969 = vshrl.u32 %v968, 7
        %v970 = vsub.s32 0, %v969
        %v971 = vrot.slane %v966, %v970
        %v972 = vlaneseq
        %v973 = vshrl.u32 %v972, 7
        %v974 = vsub.s32 1, %v973
        %v975 = vrot.slane %v966, %v974
        %v976 = vlaneseq
        %v977 = vshrl.u32 %v976, 7
        %v978 = vsub.s32 2, %v977
        %v979 = vrot.slane %v966, %v978
        %v1015 = vunpack.c.l.b16 %v933
        %v1016 = vunpack.c.h.b16 %v933
        %v1017 = vunpack.c.l.b16 %v934
        %v1018 = vunpack.c.l.b16 %v935
        %v1019 = vunpack.c.h.b16 %v935
        %v1020 = vunpack.c.l.b16 %v936
        %v1021 = vunpack.c.l.b16 %v937
        %v1022 = vunpack.c.h.b16 %v937
        %v1023 = vunpack.c.l.b16 %v938
        %v1024 = vunpack.c.l.b16 %v939
        %v1025 = vunpack.c.h.b16 %v939
        %v1026 = vunpack.c.l.b16 %v940
        %v1027 = vunpack.c.l.b16 %v941
        %v1028 = vunpack.c.h.b16 %v941
        %v1029 = vunpack.c.l.b16 %v942
        %v1030 = vunpack.c.l.b16 %v943
        %v1031 = vunpack.c.h.b16 %v943
        %v1032 = vunpack.c.l.b16 %v944
        %v1033 = vunpack.c.l.b16 %v945
        %v1034 = vunpack.c.h.b16 %v945
        %v1035 = vunpack.c.l.b16 %v946
        %v1036 = vunpack.c.l.b16 %v947
        %v1037 = vunpack.c.h.b16 %v947
        %v1038 = vunpack.c.l.b16 %v948
        %v1039 = vunpack.c.l.b16 %v949
        %v1040 = vunpack.c.h.b16 %v949
        %v1041 = vunpack.c.l.b16 %v950
        %v1042 = vunpack.c.l.b16 %v951
        %v1043 = vunpack.c.h.b16 %v951
        %v1044 = vunpack.c.l.b16 %v952
        %v1045 = vunpack.c.l.b16 %v953
        %v1046 = vunpack.c.h.b16 %v953
        %v1047 = vunpack.c.l.b16 %v954
        %v1048 = vunpack.c.l.b16 %v955
        %v1049 = vunpack.c.h.b16 %v955
        %v1050 = vunpack.c.l.b16 %v956
        %v1051 = vunpack.c.l.b16 %v957
        %v1052 = vunpack.c.h.b16 %v957
        %v1053 = vunpack.c.l.b16 %v958
        %v1054 = vunpack.c.l.b16 %v959
        %v1055 = vunpack.c.h.b16 %v959
        %v1056 = vunpack.c.l.b16 %v960
        %v1057 = vunpack.c.l.b16 %v961
        %v1058 = vunpack.c.h.b16 %v961
        %v1059 = vunpack.c.l.b16 %v962
        %v1060 = vunpack.c.l.b16 %v963
        %v1061 = vunpack.c.h.b16 %v963
        %v1062 = vunpack.c.l.b16 %v964
        %v1063 = vpack.c.b16 %v1018, %v1015
        %v1064 = vpack.c.b16 %v1019, %v1016
        %v1065 = vpack.c.b16 %v1020, %v1017
        %v1066 = vpack.c.b16 %v1024, %v1021
        %v1067 = vpack.c.b16 %v1025, %v1022
        %v1068 = vpack.c.b16 %v1026, %v1023
        %v1069 = vpack.c.b16 %v1030, %v1027
        %v1070 = vpack.c.b16 %v1031, %v1028
        %v1071 = vpack.c.b16 %v1032, %v1029
        %v1072 = vpack.c.b16 %v1036, %v1033
        %v1073 = vpack.c.b16 %v1037, %v1034
        %v1074 = vpack.c.b16 %v1038, %v1035
        %v1075 = vpack.c.b16 %v1042, %v1039
        %v1076 = vpack.c.b16 %v1043, %v1040
        %v1077 = vpack.c.b16 %v1044, %v1041
        %v1078 = vpack.c.b16 %v1048, %v1045
        %v1079 = vpack.c.b16 %v1049, %v1046
        %v1080 = vpack.c.b16 %v1050, %v1047
        %v1081 = vpack.c.b16 %v1054, %v1051
        %v1082 = vpack.c.b16 %v1055, %v1052
        %v1083 = vpack.c.b16 %v1056, %v1053
        %v1084 = vpack.c.b16 %v1060, %v1057
        %v1085 = vpack.c.b16 %v1061, %v1058
        %v1086 = vpack.c.b16 %v1062, %v1059
        %1111 = vmatprep.subr.bf16.mxu0 %v1064
        %1112 = vmatpush1.bf16.msra.mxu0 %v1063
        %1113 = vmatprep.subr.bf16.mxu0 %v1067
        %1114 = vmatpush1.bf16.msra.mxu0 %v1066
        %1115 = vmatprep.subr.bf16.mxu0 %v1070
        %1116 = vmatpush1.bf16.msra.mxu0 %v1069
        %1117 = vmatprep.subr.bf16.mxu0 %v1073
        %1118 = vmatpush1.bf16.msra.mxu0 %v1072
        %1119 = vmatprep.subr.bf16.mxu0 %v1076
        %1120 = vmatpush1.bf16.msra.mxu0 %v1075
        %1121 = vmatprep.subr.bf16.mxu0 %v1079
        %1122 = vmatpush1.bf16.msra.mxu0 %v1078
        %1123 = vmatprep.subr.bf16.mxu0 %v1082
        %1124 = vmatpush1.bf16.msra.mxu0 %v1081
        %1125 = vmatprep.subr.bf16.mxu0 %v1085
        %1126 = vmatpush1.bf16.msra.mxu0 %v1084
        %1127 = vmatprep.subr.bf16.mxu0 0
        %1128 = vmatpush1.bf16.msra.mxu0 0
        %1129 = vmatprep.subr.bf16.mxu0 0
        %1130 = vmatpush1.bf16.msra.mxu0 0
        %1131 = vmatprep.subr.bf16.mxu0 0
        %1132 = vmatpush1.bf16.msra.mxu0 0
        %1133 = vmatprep.subr.bf16.mxu0 0
        %1134 = vmatpush1.bf16.msra.mxu0 0
        %1135 = vmatprep.subr.bf16.mxu0 0
        %1136 = vmatpush1.bf16.msra.mxu0 0
        %1137 = vmatprep.subr.bf16.mxu0 0
        %1138 = vmatpush1.bf16.msra.mxu0 0
        %1139 = vmatprep.subr.bf16.mxu0 0
        %1140 = vmatpush1.bf16.msra.mxu0 0
        %1141 = vmatprep.subr.bf16.mxu0 0
        %1142 = vmatpush1.bf16.msra.mxu0 0
        %1143 = vmatprep.mubr.bf16.mxu0 0
        %1144 = vmatmul.mubr.bf16.gmra.mrb[0].mxu0 %v965
        %v1145 = vpop.f32.mrb[0].mxu0
        %v1146 = vadd.f32 %v971, %v1145
        %v1147 = vpop.f32.mrb[0].mxu0
        %v1148 = vadd.f32 %v975, %v1147
        %v1149 = vpop.f32.mrb[0].mxu0
        %v1150 = vpop.f32.mrb[0].mxu0
        %1151 = vdwg.mxu0
        %1152 = vmatprep.subr.bf16.mxu0 0
        %1153 = vmatpush1.bf16.msra.mxu0 %v1065
        %1154 = vmatprep.subr.bf16.mxu0 0
        %1155 = vmatpush1.bf16.msra.mxu0 %v1068
        %1156 = vmatprep.subr.bf16.mxu0 0
        %1157 = vmatpush1.bf16.msra.mxu0 %v1071
        %1158 = vmatprep.subr.bf16.mxu0 0
        %1159 = vmatpush1.bf16.msra.mxu0 %v1074
        %1160 = vmatprep.subr.bf16.mxu0 0
        %1161 = vmatpush1.bf16.msra.mxu0 %v1077
        %1162 = vmatprep.subr.bf16.mxu0 0
        %1163 = vmatpush1.bf16.msra.mxu0 %v1080
        %1164 = vmatprep.subr.bf16.mxu0 0
        %1165 = vmatpush1.bf16.msra.mxu0 %v1083
        %1166 = vmatprep.subr.bf16.mxu0 0
        %1167 = vmatpush1.bf16.msra.mxu0 %v1086
        %1168 = vmatprep.subr.bf16.mxu0 0
        %1169 = vmatpush1.bf16.msra.mxu0 0
        %1170 = vmatprep.subr.bf16.mxu0 0
        %1171 = vmatpush1.bf16.msra.mxu0 0
        %1172 = vmatprep.subr.bf16.mxu0 0
        %1173 = vmatpush1.bf16.msra.mxu0 0
        %1174 = vmatprep.subr.bf16.mxu0 0
        %1175 = vmatpush1.bf16.msra.mxu0 0
        %1176 = vmatprep.subr.bf16.mxu0 0
        %1177 = vmatpush1.bf16.msra.mxu0 0
        %1178 = vmatprep.subr.bf16.mxu0 0
        %1179 = vmatpush1.bf16.msra.mxu0 0
        %1180 = vmatprep.subr.bf16.mxu0 0
        %1181 = vmatpush1.bf16.msra.mxu0 0
        %1182 = vmatprep.subr.bf16.mxu0 0
        %1183 = vmatpush1.bf16.msra.mxu0 0
        %1184 = vmatprep.mubr.bf16.mxu0 0
        %1185 = vmatmul.mubr.bf16.gmra.mrb[0].mxu0 %v965
        %v1186 = vpop.f32.mrb[0].mxu0
        %v1187 = vadd.f32 %v979, %v1186
        %v1188 = vpop.f32.mrb[0].mxu0
        %v1189 = vpop.f32.mrb[0].mxu0
        %v1190 = vpop.f32.mrb[0].mxu0
        %1191 = vdwg.mxu0
        %v1192 = vmul.f32 %v1146, 0.17677669
        %v1193 = vld [vmem:[%s710] sm:$0xf]
        %v1194 = vld [vmem:[%s710 + $0x4] sm:$0xf]
        %v1195 = vld [vmem:[%s710 + $0x8] sm:$0xf]
        %v1196 = vld [vmem:[%s710 + $0xc] sm:$0xf]
        %v1197 = vld [vmem:[%s710 + $0x10] sm:$0xf]
        %v1198 = vld [vmem:[%s710 + $0x14] sm:$0xf]
        %v1199 = vld [vmem:[%s710 + $0x18] sm:$0xf]
        %v1200 = vld [vmem:[%s710 + $0x1c] sm:$0xf]
        %v1201 = vld [vmem:[%s710 + $0x20] sm:$0xf]
        %v1202 = vld [vmem:[%s710 + $0x24] sm:$0xf]
        %v1203 = vld [vmem:[%s710 + $0x28] sm:$0xf]
        %v1204 = vld [vmem:[%s710 + $0x2c] sm:$0xf]
        %v1205 = vld [vmem:[%s710 + $0x30] sm:$0xf]
        %v1206 = vld [vmem:[%s710 + $0x34] sm:$0xf]
        %v1207 = vld [vmem:[%s710 + $0x38] sm:$0xf]
        %v1208 = vld [vmem:[%s710 + $0x3c] sm:$0xf]
        %v1209 = vpack.c.bf16 %v1192, %v1192
        %v1210 = vpack.c.bf16 %v1148, %v1148
        %vm1211 = vcmask 261120
        %v1213 = vsel %vm1211, %v1209, 0
        %v1216 = vsel %vm1211, %v1210, 0
        %1218 = vmatprep.subr.bf16.mxu0 0
        %1219 = vmatpush1.bf16.xpose.msra.mxu0 %v1216
        %1220 = vmatprep.subr.bf16.mxu0 0
        %1221 = vmatpush1.bf16.xpose.msra.mxu0 0
        %1222 = vmatprep.subr.bf16.mxu0 0
        %1223 = vmatpush1.bf16.xpose.msra.mxu0 0
        %1224 = vmatprep.subr.bf16.mxu0 0
        %1225 = vmatpush1.bf16.xpose.msra.mxu0 0
        %1226 = vmatprep.subr.bf16.mxu0 0
        %1227 = vmatpush1.bf16.xpose.msra.mxu0 0
        %1228 = vmatprep.subr.bf16.mxu0 0
        %1229 = vmatpush1.bf16.xpose.msra.mxu0 0
        %1230 = vmatprep.subr.bf16.mxu0 0
        %1231 = vmatpush1.bf16.xpose.msra.mxu0 0
        %1232 = vmatprep.subr.bf16.mxu0 0
        %1233 = vmatpush1.bf16.xpose.msra.mxu0 0
        %1234 = vmatprep.subr.bf16.mxu0 0
        %1235 = vmatpush1.bf16.xpose.msra.mxu0 0
        %1236 = vmatprep.subr.bf16.mxu0 0
        %1237 = vmatpush1.bf16.xpose.msra.mxu0 0
        %1238 = vmatprep.subr.bf16.mxu0 0
        %1239 = vmatpush1.bf16.xpose.msra.mxu0 0
        %1240 = vmatprep.subr.bf16.mxu0 0
        %1241 = vmatpush1.bf16.xpose.msra.mxu0 0
        %1242 = vmatprep.subr.bf16.mxu0 0
        %1243 = vmatpush1.bf16.xpose.msra.mxu0 0
        %1244 = vmatprep.subr.bf16.mxu0 0
        %1245 = vmatpush1.bf16.xpose.msra.mxu0 0
        %1246 = vmatprep.subr.bf16.mxu0 0
        %1247 = vmatpush1.bf16.xpose.msra.mxu0 0
        %1248 = vmatprep.subr.bf16.mxu0 0
        %1249 = vmatpush1.bf16.xpose.msra.mxu0 0
        %1250 = vmatprep.mubr.bf16.mxu0 0
        %1251 = vmatmul.mubr.bf16.gmra.mrb[0].mxu0 %v1213
        %v1252 = vpop.f32.mrb[0].mxu0
        %v1253 = vadd.f32 0.0, %v1252
        %v1254 = vpop.f32.mrb[0].mxu0
        %v1255 = vpop.f32.mrb[0].mxu0
        %v1256 = vpop.f32.mrb[0].mxu0
        %1257 = vdwg.mxu0
        %vm1258 = vcmask 64512
        %v1259 = vsel %vm1258, %v1253, -inf
        %1260 = vmax.xlane.f32.xlu0 %v1259
        %v1261 = vpop.xlane.xlu0 %1260
        %v1262 = vsub.f32 %v1253, %v1261
        %v1263 = vmul.f32 %v1262, 1.442695
        %v1264 = vpow.pop %v1263
        %v1265 = vsel %vm1258, %v1264, 0.0
        %1266 = vadd.xlane.f32.xlu0 %v1265
        %v1267 = vpop.xlane.xlu0 %1266
        %v1268 = vrcp.pop %v1267
        %v1269 = vmul.f32 %v1264, %v1268
        %v1270 = vpack.c.bf16 %v1269, %v1269
        %v1271 = vpack.c.bf16 %v1187, %v1187
        %v1273 = vsel %vm1258, %v1270, 0
        %vm1275 = vcmask 1043456
        %v1277 = vsel %vm1275, %v1271, 0
        %1279 = vmatprep.subr.bf16.mxu0 0
        %1280 = vmatpush1.bf16.msra.mxu0 %v1277
        %1281 = vmatprep.subr.bf16.mxu0 0
        %1282 = vmatpush1.bf16.msra.mxu0 0
        %1283 = vmatprep.subr.bf16.mxu0 0
        %1284 = vmatpush1.bf16.msra.mxu0 0
        %1285 = vmatprep.subr.bf16.mxu0 0
        %1286 = vmatpush1.bf16.msra.mxu0 0
        %1287 = vmatprep.subr.bf16.mxu0 0
        %1288 = vmatpush1.bf16.msra.mxu0 0
        %1289 = vmatprep.subr.bf16.mxu0 0
        %1290 = vmatpush1.bf16.msra.mxu0 0
        %1291 = vmatprep.subr.bf16.mxu0 0
        %1292 = vmatpush1.bf16.msra.mxu0 0
        %1293 = vmatprep.subr.bf16.mxu0 0
        %1294 = vmatpush1.bf16.msra.mxu0 0
        %1295 = vmatprep.subr.bf16.mxu0 0
        %1296 = vmatpush1.bf16.msra.mxu0 0
        %1297 = vmatprep.subr.bf16.mxu0 0
        %1298 = vmatpush1.bf16.msra.mxu0 0
        %1299 = vmatprep.subr.bf16.mxu0 0
        %1300 = vmatpush1.bf16.msra.mxu0 0
        %1301 = vmatprep.subr.bf16.mxu0 0
        %1302 = vmatpush1.bf16.msra.mxu0 0
        %1303 = vmatprep.subr.bf16.mxu0 0
        %1304 = vmatpush1.bf16.msra.mxu0 0
        %1305 = vmatprep.subr.bf16.mxu0 0
        %1306 = vmatpush1.bf16.msra.mxu0 0
        %1307 = vmatprep.subr.bf16.mxu0 0
        %1308 = vmatpush1.bf16.msra.mxu0 0
        %1309 = vmatprep.subr.bf16.mxu0 0
        %1310 = vmatpush1.bf16.msra.mxu0 0
        %1311 = vmatprep.mubr.bf16.mxu0 0
        %1312 = vmatmul.mubr.bf16.gmra.mrb[0].mxu0 %v1273
        %v1313 = vpop.f32.mrb[0].mxu0
        %v1314 = vadd.f32 0.0, %v1313
        %v1315 = vpop.f32.mrb[0].mxu0
        %v1316 = vpop.f32.mrb[0].mxu0
        %v1317 = vpop.f32.mrb[0].mxu0
        %1318 = vdwg.mxu0
        %v1319 = vpack.c.bf16 %v1314, %v1314
        %1321 = vrot.lane.b32.xlu0 %v1209, 96
        %v1322 = vpop.permute.xlu0 %1321
        %1324 = vrot.lane.b32.xlu0 %v1210, 96
        %v1325 = vpop.permute.xlu0 %1324
        %v1327 = vsel %vm1211, %v1322, 0
        %v1330 = vsel %vm1211, %v1325, 0
        %1332 = vmatprep.subr.bf16.mxu0 0
        %1333 = vmatpush1.bf16.xpose.msra.mxu0 %v1330
        %1334 = vmatprep.subr.bf16.mxu0 0
        %1335 = vmatpush1.bf16.xpose.msra.mxu0 0
        %1336 = vmatprep.subr.bf16.mxu0 0
        %1337 = vmatpush1.bf16.xpose.msra.mxu0 0
        %1338 = vmatprep.subr.bf16.mxu0 0
        %1339 = vmatpush1.bf16.xpose.msra.mxu0 0
        %1340 = vmatprep.subr.bf16.mxu0 0
        %1341 = vmatpush1.bf16.xpose.msra.mxu0 0
        %1342 = vmatprep.subr.bf16.mxu0 0
        %1343 = vmatpush1.bf16.xpose.msra.mxu0 0
        %1344 = vmatprep.subr.bf16.mxu0 0
        %1345 = vmatpush1.bf16.xpose.msra.mxu0 0
        %1346 = vmatprep.subr.bf16.mxu0 0
        %1347 = vmatpush1.bf16.xpose.msra.mxu0 0
        %1348 = vmatprep.subr.bf16.mxu0 0
        %1349 = vmatpush1.bf16.xpose.msra.mxu0 0
        %1350 = vmatprep.subr.bf16.mxu0 0
        %1351 = vmatpush1.bf16.xpose.msra.mxu0 0
        %1352 = vmatprep.subr.bf16.mxu0 0
        %1353 = vmatpush1.bf16.xpose.msra.mxu0 0
        %1354 = vmatprep.subr.bf16.mxu0 0
        %1355 = vmatpush1.bf16.xpose.msra.mxu0 0
        %1356 = vmatprep.subr.bf16.mxu0 0
        %1357 = vmatpush1.bf16.xpose.msra.mxu0 0
        %1358 = vmatprep.subr.bf16.mxu0 0
        %1359 = vmatpush1.bf16.xpose.msra.mxu0 0
        %1360 = vmatprep.subr.bf16.mxu0 0
        %1361 = vmatpush1.bf16.xpose.msra.mxu0 0
        %1362 = vmatprep.subr.bf16.mxu0 0
        %1363 = vmatpush1.bf16.xpose.msra.mxu0 0
        %1364 = vmatprep.mubr.bf16.mxu0 0
        %1365 = vmatmul.mubr.bf16.gmra.mrb[0].mxu0 %v1327
        %v1366 = vpop.f32.mrb[0].mxu0
        %v1367 = vadd.f32 0.0, %v1366
        %v1368 = vpop.f32.mrb[0].mxu0
        %v1369 = vpop.f32.mrb[0].mxu0
        %v1370 = vpop.f32.mrb[0].mxu0
        %1371 = vdwg.mxu0
        %v1372 = vsel %vm1258, %v1367, -inf
        %1373 = vmax.xlane.f32.xlu0 %v1372
        %v1374 = vpop.xlane.xlu0 %1373
        %v1375 = vsub.f32 %v1367, %v1374
        %v1376 = vmul.f32 %v1375, 1.442695
        %v1377 = vpow.pop %v1376
        %v1378 = vsel %vm1258, %v1377, 0.0
        %1379 = vadd.xlane.f32.xlu0 %v1378
        %v1380 = vpop.xlane.xlu0 %1379
        %v1381 = vrcp.pop %v1380
        %v1382 = vmul.f32 %v1377, %v1381
        %v1383 = vpack.c.bf16 %v1382, %v1382
        %1385 = vrot.lane.b32.xlu0 %v1271, 96
        %v1386 = vpop.permute.xlu0 %1385
        %v1388 = vsel %vm1258, %v1383, 0
        %v1391 = vsel %vm1275, %v1386, 0
        %1393 = vmatprep.subr.bf16.mxu0 0
        %1394 = vmatpush1.bf16.msra.mxu0 %v1391
        %1395 = vmatprep.subr.bf16.mxu0 0
        %1396 = vmatpush1.bf16.msra.mxu0 0
        %1397 = vmatprep.subr.bf16.mxu0 0
        %1398 = vmatpush1.bf16.msra.mxu0 0
        %1399 = vmatprep.subr.bf16.mxu0 0
        %1400 = vmatpush1.bf16.msra.mxu0 0
        %1401 = vmatprep.subr.bf16.mxu0 0
        %1402 = vmatpush1.bf16.msra.mxu0 0
        %1403 = vmatprep.subr.bf16.mxu0 0
        %1404 = vmatpush1.bf16.msra.mxu0 0
        %1405 = vmatprep.subr.bf16.mxu0 0
        %1406 = vmatpush1.bf16.msra.mxu0 0
        %1407 = vmatprep.subr.bf16.mxu0 0
        %1408 = vmatpush1.bf16.msra.mxu0 0
        %1409 = vmatprep.subr.bf16.mxu0 0
        %1410 = vmatpush1.bf16.msra.mxu0 0
        %1411 = vmatprep.subr.bf16.mxu0 0
        %1412 = vmatpush1.bf16.msra.mxu0 0
        %1413 = vmatprep.subr.bf16.mxu0 0
        %1414 = vmatpush1.bf16.msra.mxu0 0
        %1415 = vmatprep.subr.bf16.mxu0 0
        %1416 = vmatpush1.bf16.msra.mxu0 0
        %1417 = vmatprep.subr.bf16.mxu0 0
        %1418 = vmatpush1.bf16.msra.mxu0 0
        %1419 = vmatprep.subr.bf16.mxu0 0
        %1420 = vmatpush1.bf16.msra.mxu0 0
        %1421 = vmatprep.subr.bf16.mxu0 0
        %1422 = vmatpush1.bf16.msra.mxu0 0
        %1423 = vmatprep.subr.bf16.mxu0 0
        %1424 = vmatpush1.bf16.msra.mxu0 0
        %1425 = vmatprep.mubr.bf16.mxu0 0
        %1426 = vmatmul.mubr.bf16.gmra.mrb[0].mxu0 %v1388
        %v1427 = vpop.f32.mrb[0].mxu0
        %v1428 = vadd.f32 0.0, %v1427
        %v1429 = vpop.f32.mrb[0].mxu0
        %v1430 = vpop.f32.mrb[0].mxu0
        %v1431 = vpop.f32.mrb[0].mxu0
        %1432 = vdwg.mxu0
        %v1433 = vpack.c.bf16 %v1428, %v1428
        %v1438 = vunpack.c.l.b16 %v1197
        %v1439 = vunpack.c.l.b16 %v1198
        %v1440 = vunpack.c.l.b16 %v1199
        %v1441 = vunpack.c.l.b16 %v1200
        %v1442 = vpack.c.b16 %v1439, %v1438
        %v1443 = vpack.c.b16 %v1441, %v1440
        %v1447 = vsel %vm1211, %v1433, 0
        %1449 = vmatprep.subr.bf16.mxu0 0
        %1450 = vmatpush1.bf16.msra.mxu0 %v1442
        %1451 = vmatprep.subr.bf16.mxu0 0
        %1452 = vmatpush1.bf16.msra.mxu0 %v1443
        %1453 = vmatprep.subr.bf16.mxu0 0
        %1454 = vmatpush1.bf16.msra.mxu0 0
        %1455 = vmatprep.subr.bf16.mxu0 0
        %1456 = vmatpush1.bf16.msra.mxu0 0
        %1457 = vmatprep.subr.bf16.mxu0 0
        %1458 = vmatpush1.bf16.msra.mxu0 0
        %1459 = vmatprep.subr.bf16.mxu0 0
        %1460 = vmatpush1.bf16.msra.mxu0 0
        %1461 = vmatprep.subr.bf16.mxu0 0
        %1462 = vmatpush1.bf16.msra.mxu0 0
        %1463 = vmatprep.subr.bf16.mxu0 0
        %1464 = vmatpush1.bf16.msra.mxu0 0
        %1465 = vmatprep.subr.bf16.mxu0 0
        %1466 = vmatpush1.bf16.msra.mxu0 0
        %1467 = vmatprep.subr.bf16.mxu0 0
        %1468 = vmatpush1.bf16.msra.mxu0 0
        %1469 = vmatprep.subr.bf16.mxu0 0
        %1470 = vmatpush1.bf16.msra.mxu0 0
        %1471 = vmatprep.subr.bf16.mxu0 0
        %1472 = vmatpush1.bf16.msra.mxu0 0
        %1473 = vmatprep.subr.bf16.mxu0 0
        %1474 = vmatpush1.bf16.msra.mxu0 0
        %1475 = vmatprep.subr.bf16.mxu0 0
        %1476 = vmatpush1.bf16.msra.mxu0 0
        %1477 = vmatprep.subr.bf16.mxu0 0
        %1478 = vmatpush1.bf16.msra.mxu0 0
        %1479 = vmatprep.subr.bf16.mxu0 0
        %1480 = vmatpush1.bf16.msra.mxu0 0
        %1481 = vmatprep.mubr.bf16.mxu0 0
        %1482 = vmatmul.mubr.bf16.gmra.mrb[0].mxu0 %v1447
        %v1483 = vpop.f32.mrb[0].mxu0
        %v1484 = vadd.f32 0.0, %v1483
        %v1485 = vpop.f32.mrb[0].mxu0
        %v1486 = vpop.f32.mrb[0].mxu0
        %v1487 = vpop.f32.mrb[0].mxu0
        %1488 = vdwg.mxu0
        %v1493 = vunpack.c.l.b16 %v1193
        %v1494 = vunpack.c.l.b16 %v1194
        %v1495 = vunpack.c.l.b16 %v1195
        %v1496 = vunpack.c.l.b16 %v1196
        %v1497 = vpack.c.b16 %v1494, %v1493
        %v1498 = vpack.c.b16 %v1496, %v1495
        %v1502 = vsel %vm1211, %v1319, 0
        %1504 = vmatprep.subr.bf16.mxu0 0
        %1505 = vmatpush1.bf16.msra.mxu0 %v1497
        %1506 = vmatprep.subr.bf16.mxu0 0
        %1507 = vmatpush1.bf16.msra.mxu0 %v1498
        %1508 = vmatprep.subr.bf16.mxu0 0
        %1509 = vmatpush1.bf16.msra.mxu0 0
        %1510 = vmatprep.subr.bf16.mxu0 0
        %1511 = vmatpush1.bf16.msra.mxu0 0
        %1512 = vmatprep.subr.bf16.mxu0 0
        %1513 = vmatpush1.bf16.msra.mxu0 0
        %1514 = vmatprep.subr.bf16.mxu0 0
        %1515 = vmatpush1.bf16.msra.mxu0 0
        %1516 = vmatprep.subr.bf16.mxu0 0
        %1517 = vmatpush1.bf16.msra.mxu0 0
        %1518 = vmatprep.subr.bf16.mxu0 0
        %1519 = vmatpush1.bf16.msra.mxu0 0
        %1520 = vmatprep.subr.bf16.mxu0 0
        %1521 = vmatpush1.bf16.msra.mxu0 0
        %1522 = vmatprep.subr.bf16.mxu0 0
        %1523 = vmatpush1.bf16.msra.mxu0 0
        %1524 = vmatprep.subr.bf16.mxu0 0
        %1525 = vmatpush1.bf16.msra.mxu0 0
        %1526 = vmatprep.subr.bf16.mxu0 0
        %1527 = vmatpush1.bf16.msra.mxu0 0
        %1528 = vmatprep.subr.bf16.mxu0 0
        %1529 = vmatpush1.bf16.msra.mxu0 0
        %1530 = vmatprep.subr.bf16.mxu0 0
        %1531 = vmatpush1.bf16.msra.mxu0 0
        %1532 = vmatprep.subr.bf16.mxu0 0
        %1533 = vmatpush1.bf16.msra.mxu0 0
        %1534 = vmatprep.subr.bf16.mxu0 0
        %1535 = vmatpush1.bf16.msra.mxu0 0
        %1536 = vmatprep.mubr.bf16.mxu0 0
        %1537 = vmatmul.mubr.bf16.gmra.mrb[0].mxu0 %v1502
        %v1538 = vpop.f32.mrb[0].mxu0
        %v1539 = vadd.f32 %v1484, %v1538
        %v1540 = vpop.f32.mrb[0].mxu0
        %v1541 = vpop.f32.mrb[0].mxu0
        %v1542 = vpop.f32.mrb[0].mxu0
        %1543 = vdwg.mxu0
        %1544 = vrot.lane.b32.xlu0 %v1209, 64
        %v1545 = vpop.permute.xlu0 %1544
        %1546 = vrot.lane.b32.xlu0 %v1210, 64
        %v1547 = vpop.permute.xlu0 %1546
        %v1549 = vsel %vm1211, %v1545, 0
        %v1552 = vsel %vm1211, %v1547, 0
        %1554 = vmatprep.subr.bf16.mxu0 0
        %1555 = vmatpush1.bf16.xpose.msra.mxu0 %v1552
        %1556 = vmatprep.subr.bf16.mxu0 0
        %1557 = vmatpush1.bf16.xpose.msra.mxu0 0
        %1558 = vmatprep.subr.bf16.mxu0 0
        %1559 = vmatpush1.bf16.xpose.msra.mxu0 0
        %1560 = vmatprep.subr.bf16.mxu0 0
        %1561 = vmatpush1.bf16.xpose.msra.mxu0 0
        %1562 = vmatprep.subr.bf16.mxu0 0
        %1563 = vmatpush1.bf16.xpose.msra.mxu0 0
        %1564 = vmatprep.subr.bf16.mxu0 0
        %1565 = vmatpush1.bf16.xpose.msra.mxu0 0
        %1566 = vmatprep.subr.bf16.mxu0 0
        %1567 = vmatpush1.bf16.xpose.msra.mxu0 0
        %1568 = vmatprep.subr.bf16.mxu0 0
        %1569 = vmatpush1.bf16.xpose.msra.mxu0 0
        %1570 = vmatprep.subr.bf16.mxu0 0
        %1571 = vmatpush1.bf16.xpose.msra.mxu0 0
        %1572 = vmatprep.subr.bf16.mxu0 0
        %1573 = vmatpush1.bf16.xpose.msra.mxu0 0
        %1574 = vmatprep.subr.bf16.mxu0 0
        %1575 = vmatpush1.bf16.xpose.msra.mxu0 0
        %1576 = vmatprep.subr.bf16.mxu0 0
        %1577 = vmatpush1.bf16.xpose.msra.mxu0 0
        %1578 = vmatprep.subr.bf16.mxu0 0
        %1579 = vmatpush1.bf16.xpose.msra.mxu0 0
        %1580 = vmatprep.subr.bf16.mxu0 0
        %1581 = vmatpush1.bf16.xpose.msra.mxu0 0
        %1582 = vmatprep.subr.bf16.mxu0 0
        %1583 = vmatpush1.bf16.xpose.msra.mxu0 0
        %1584 = vmatprep.subr.bf16.mxu0 0
        %1585 = vmatpush1.bf16.xpose.msra.mxu0 0
        %1586 = vmatprep.mubr.bf16.mxu0 0
        %1587 = vmatmul.mubr.bf16.gmra.mrb[0].mxu0 %v1549
        %v1588 = vpop.f32.mrb[0].mxu0
        %v1589 = vadd.f32 0.0, %v1588
        %v1590 = vpop.f32.mrb[0].mxu0
        %v1591 = vpop.f32.mrb[0].mxu0
        %v1592 = vpop.f32.mrb[0].mxu0
        %1593 = vdwg.mxu0
        %v1594 = vsel %vm1258, %v1589, -inf
        %1595 = vmax.xlane.f32.xlu0 %v1594
        %v1596 = vpop.xlane.xlu0 %1595
        %v1597 = vsub.f32 %v1589, %v1596
        %v1598 = vmul.f32 %v1597, 1.442695
        %v1599 = vpow.pop %v1598
        %v1600 = vsel %vm1258, %v1599, 0.0
        %1601 = vadd.xlane.f32.xlu0 %v1600
        %v1602 = vpop.xlane.xlu0 %1601
        %v1603 = vrcp.pop %v1602
        %v1604 = vmul.f32 %v1599, %v1603
        %v1605 = vpack.c.bf16 %v1604, %v1604
        %1606 = vrot.lane.b32.xlu0 %v1271, 64
        %v1607 = vpop.permute.xlu0 %1606
        %v1609 = vsel %vm1258, %v1605, 0
        %v1612 = vsel %vm1275, %v1607, 0
        %1614 = vmatprep.subr.bf16.mxu0 0
        %1615 = vmatpush1.bf16.msra.mxu0 %v1612
        %1616 = vmatprep.subr.bf16.mxu0 0
        %1617 = vmatpush1.bf16.msra.mxu0 0
        %1618 = vmatprep.subr.bf16.mxu0 0
        %1619 = vmatpush1.bf16.msra.mxu0 0
        %1620 = vmatprep.subr.bf16.mxu0 0
        %1621 = vmatpush1.bf16.msra.mxu0 0
        %1622 = vmatprep.subr.bf16.mxu0 0
        %1623 = vmatpush1.bf16.msra.mxu0 0
        %1624 = vmatprep.subr.bf16.mxu0 0
        %1625 = vmatpush1.bf16.msra.mxu0 0
        %1626 = vmatprep.subr.bf16.mxu0 0
        %1627 = vmatpush1.bf16.msra.mxu0 0
        %1628 = vmatprep.subr.bf16.mxu0 0
        %1629 = vmatpush1.bf16.msra.mxu0 0
        %1630 = vmatprep.subr.bf16.mxu0 0
        %1631 = vmatpush1.bf16.msra.mxu0 0
        %1632 = vmatprep.subr.bf16.mxu0 0
        %1633 = vmatpush1.bf16.msra.mxu0 0
        %1634 = vmatprep.subr.bf16.mxu0 0
        %1635 = vmatpush1.bf16.msra.mxu0 0
        %1636 = vmatprep.subr.bf16.mxu0 0
        %1637 = vmatpush1.bf16.msra.mxu0 0
        %1638 = vmatprep.subr.bf16.mxu0 0
        %1639 = vmatpush1.bf16.msra.mxu0 0
        %1640 = vmatprep.subr.bf16.mxu0 0
        %1641 = vmatpush1.bf16.msra.mxu0 0
        %1642 = vmatprep.subr.bf16.mxu0 0
        %1643 = vmatpush1.bf16.msra.mxu0 0
        %1644 = vmatprep.subr.bf16.mxu0 0
        %1645 = vmatpush1.bf16.msra.mxu0 0
        %1646 = vmatprep.mubr.bf16.mxu0 0
        %1647 = vmatmul.mubr.bf16.gmra.mrb[0].mxu0 %v1609
        %v1648 = vpop.f32.mrb[0].mxu0
        %v1649 = vadd.f32 0.0, %v1648
        %v1650 = vpop.f32.mrb[0].mxu0
        %v1651 = vpop.f32.mrb[0].mxu0
        %v1652 = vpop.f32.mrb[0].mxu0
        %1653 = vdwg.mxu0
        %v1654 = vpack.c.bf16 %v1649, %v1649
        %v1659 = vunpack.c.l.b16 %v1201
        %v1660 = vunpack.c.l.b16 %v1202
        %v1661 = vunpack.c.l.b16 %v1203
        %v1662 = vunpack.c.l.b16 %v1204
        %v1663 = vpack.c.b16 %v1660, %v1659
        %v1664 = vpack.c.b16 %v1662, %v1661
        %v1668 = vsel %vm1211, %v1654, 0
        %1670 = vmatprep.subr.bf16.mxu0 0
        %1671 = vmatpush1.bf16.msra.mxu0 %v1663
        %1672 = vmatprep.subr.bf16.mxu0 0
        %1673 = vmatpush1.bf16.msra.mxu0 %v1664
        %1674 = vmatprep.subr.bf16.mxu0 0
        %1675 = vmatpush1.bf16.msra.mxu0 0
        %1676 = vmatprep.subr.bf16.mxu0 0
        %1677 = vmatpush1.bf16.msra.mxu0 0
        %1678 = vmatprep.subr.bf16.mxu0 0
        %1679 = vmatpush1.bf16.msra.mxu0 0
        %1680 = vmatprep.subr.bf16.mxu0 0
        %1681 = vmatpush1.bf16.msra.mxu0 0
        %1682 = vmatprep.subr.bf16.mxu0 0
        %1683 = vmatpush1.bf16.msra.mxu0 0
        %1684 = vmatprep.subr.bf16.mxu0 0
        %1685 = vmatpush1.bf16.msra.mxu0 0
        %1686 = vmatprep.subr.bf16.mxu0 0
        %1687 = vmatpush1.bf16.msra.mxu0 0
        %1688 = vmatprep.subr.bf16.mxu0 0
        %1689 = vmatpush1.bf16.msra.mxu0 0
        %1690 = vmatprep.subr.bf16.mxu0 0
        %1691 = vmatpush1.bf16.msra.mxu0 0
        %1692 = vmatprep.subr.bf16.mxu0 0
        %1693 = vmatpush1.bf16.msra.mxu0 0
        %1694 = vmatprep.subr.bf16.mxu0 0
        %1695 = vmatpush1.bf16.msra.mxu0 0
        %1696 = vmatprep.subr.bf16.mxu0 0
        %1697 = vmatpush1.bf16.msra.mxu0 0
        %1698 = vmatprep.subr.bf16.mxu0 0
        %1699 = vmatpush1.bf16.msra.mxu0 0
        %1700 = vmatprep.subr.bf16.mxu0 0
        %1701 = vmatpush1.bf16.msra.mxu0 0
        %1702 = vmatprep.mubr.bf16.mxu0 0
        %1703 = vmatmul.mubr.bf16.gmra.mrb[0].mxu0 %v1668
        %v1704 = vpop.f32.mrb[0].mxu0
        %v1705 = vadd.f32 0.0, %v1704
        %v1706 = vpop.f32.mrb[0].mxu0
        %v1707 = vpop.f32.mrb[0].mxu0
        %v1708 = vpop.f32.mrb[0].mxu0
        %1709 = vdwg.mxu0
        %v1710 = vadd.f32 %v1539, %v1705
        %1711 = vrot.lane.b32.xlu0 %v1209, 32
        %v1712 = vpop.permute.xlu0 %1711
        %1713 = vrot.lane.b32.xlu0 %v1210, 32
        %v1714 = vpop.permute.xlu0 %1713
        %v1716 = vsel %vm1211, %v1712, 0
        %v1719 = vsel %vm1211, %v1714, 0
        %1721 = vmatprep.subr.bf16.mxu0 0
        %1722 = vmatpush1.bf16.xpose.msra.mxu0 %v1719
        %1723 = vmatprep.subr.bf16.mxu0 0
        %1724 = vmatpush1.bf16.xpose.msra.mxu0 0
        %1725 = vmatprep.subr.bf16.mxu0 0
        %1726 = vmatpush1.bf16.xpose.msra.mxu0 0
        %1727 = vmatprep.subr.bf16.mxu0 0
        %1728 = vmatpush1.bf16.xpose.msra.mxu0 0
        %1729 = vmatprep.subr.bf16.mxu0 0
        %1730 = vmatpush1.bf16.xpose.msra.mxu0 0
        %1731 = vmatprep.subr.bf16.mxu0 0
        %1732 = vmatpush1.bf16.xpose.msra.mxu0 0
        %1733 = vmatprep.subr.bf16.mxu0 0
        %1734 = vmatpush1.bf16.xpose.msra.mxu0 0
        %1735 = vmatprep.subr.bf16.mxu0 0
        %1736 = vmatpush1.bf16.xpose.msra.mxu0 0
        %1737 = vmatprep.subr.bf16.mxu0 0
        %1738 = vmatpush1.bf16.xpose.msra.mxu0 0
        %1739 = vmatprep.subr.bf16.mxu0 0
        %1740 = vmatpush1.bf16.xpose.msra.mxu0 0
        %1741 = vmatprep.subr.bf16.mxu0 0
        %1742 = vmatpush1.bf16.xpose.msra.mxu0 0
        %1743 = vmatprep.subr.bf16.mxu0 0
        %1744 = vmatpush1.bf16.xpose.msra.mxu0 0
        %1745 = vmatprep.subr.bf16.mxu0 0
        %1746 = vmatpush1.bf16.xpose.msra.mxu0 0
        %1747 = vmatprep.subr.bf16.mxu0 0
        %1748 = vmatpush1.bf16.xpose.msra.mxu0 0
        %1749 = vmatprep.subr.bf16.mxu0 0
        %1750 = vmatpush1.bf16.xpose.msra.mxu0 0
        %1751 = vmatprep.subr.bf16.mxu0 0
        %1752 = vmatpush1.bf16.xpose.msra.mxu0 0
        %1753 = vmatprep.mubr.bf16.mxu0 0
        %1754 = vmatmul.mubr.bf16.gmra.mrb[0].mxu0 %v1716
        %v1755 = vpop.f32.mrb[0].mxu0
        %v1756 = vadd.f32 0.0, %v1755
        %v1757 = vpop.f32.mrb[0].mxu0
        %v1758 = vpop.f32.mrb[0].mxu0
        %v1759 = vpop.f32.mrb[0].mxu0
        %1760 = vdwg.mxu0
        %v1761 = vsel %vm1258, %v1756, -inf
        %1762 = vmax.xlane.f32.xlu0 %v1761
        %v1763 = vpop.xlane.xlu0 %1762
        %v1764 = vsub.f32 %v1756, %v1763
        %v1765 = vmul.f32 %v1764, 1.442695
        %v1766 = vpow.pop %v1765
        %v1767 = vsel %vm1258, %v1766, 0.0
        %1768 = vadd.xlane.f32.xlu0 %v1767
        %v1769 = vpop.xlane.xlu0 %1768
        %v1770 = vrcp.pop %v1769
        %v1771 = vmul.f32 %v1766, %v1770
        %v1772 = vpack.c.bf16 %v1771, %v1771
        %1773 = vrot.lane.b32.xlu0 %v1271, 32
        %v1774 = vpop.permute.xlu0 %1773
        %v1776 = vsel %vm1258, %v1772, 0
        %v1779 = vsel %vm1275, %v1774, 0
        %1781 = vmatprep.subr.bf16.mxu0 0
        %1782 = vmatpush1.bf16.msra.mxu0 %v1779
        %1783 = vmatprep.subr.bf16.mxu0 0
        %1784 = vmatpush1.bf16.msra.mxu0 0
        %1785 = vmatprep.subr.bf16.mxu0 0
        %1786 = vmatpush1.bf16.msra.mxu0 0
        %1787 = vmatprep.subr.bf16.mxu0 0
        %1788 = vmatpush1.bf16.msra.mxu0 0
        %1789 = vmatprep.subr.bf16.mxu0 0
        %1790 = vmatpush1.bf16.msra.mxu0 0
        %1791 = vmatprep.subr.bf16.mxu0 0
        %1792 = vmatpush1.bf16.msra.mxu0 0
        %1793 = vmatprep.subr.bf16.mxu0 0
        %1794 = vmatpush1.bf16.msra.mxu0 0
        %1795 = vmatprep.subr.bf16.mxu0 0
        %1796 = vmatpush1.bf16.msra.mxu0 0
        %1797 = vmatprep.subr.bf16.mxu0 0
        %1798 = vmatpush1.bf16.msra.mxu0 0
        %1799 = vmatprep.subr.bf16.mxu0 0
        %1800 = vmatpush1.bf16.msra.mxu0 0
        %1801 = vmatprep.subr.bf16.mxu0 0
        %1802 = vmatpush1.bf16.msra.mxu0 0
        %1803 = vmatprep.subr.bf16.mxu0 0
        %1804 = vmatpush1.bf16.msra.mxu0 0
        %1805 = vmatprep.subr.bf16.mxu0 0
        %1806 = vmatpush1.bf16.msra.mxu0 0
        %1807 = vmatprep.subr.bf16.mxu0 0
        %1808 = vmatpush1.bf16.msra.mxu0 0
        %1809 = vmatprep.subr.bf16.mxu0 0
        %1810 = vmatpush1.bf16.msra.mxu0 0
        %1811 = vmatprep.subr.bf16.mxu0 0
        %1812 = vmatpush1.bf16.msra.mxu0 0
        %1813 = vmatprep.mubr.bf16.mxu0 0
        %1814 = vmatmul.mubr.bf16.gmra.mrb[0].mxu0 %v1776
        %v1815 = vpop.f32.mrb[0].mxu0
        %v1816 = vadd.f32 0.0, %v1815
        %v1817 = vpop.f32.mrb[0].mxu0
        %v1818 = vpop.f32.mrb[0].mxu0
        %v1819 = vpop.f32.mrb[0].mxu0
        %1820 = vdwg.mxu0
        %v1821 = vpack.c.bf16 %v1816, %v1816
        %v1826 = vunpack.c.l.b16 %v1205
        %v1827 = vunpack.c.l.b16 %v1206
        %v1828 = vunpack.c.l.b16 %v1207
        %v1829 = vunpack.c.l.b16 %v1208
        %v1830 = vpack.c.b16 %v1827, %v1826
        %v1831 = vpack.c.b16 %v1829, %v1828
        %v1835 = vsel %vm1211, %v1821, 0
        %1837 = vmatprep.subr.bf16.mxu0 0
        %1838 = vmatpush1.bf16.msra.mxu0 %v1830
        %1839 = vmatprep.subr.bf16.mxu0 0
        %1840 = vmatpush1.bf16.msra.mxu0 %v1831
        %1841 = vmatprep.subr.bf16.mxu0 0
        %1842 = vmatpush1.bf16.msra.mxu0 0
        %1843 = vmatprep.subr.bf16.mxu0 0
        %1844 = vmatpush1.bf16.msra.mxu0 0
        %1845 = vmatprep.subr.bf16.mxu0 0
        %1846 = vmatpush1.bf16.msra.mxu0 0
        %1847 = vmatprep.subr.bf16.mxu0 0
        %1848 = vmatpush1.bf16.msra.mxu0 0
        %1849 = vmatprep.subr.bf16.mxu0 0
        %1850 = vmatpush1.bf16.msra.mxu0 0
        %1851 = vmatprep.subr.bf16.mxu0 0
        %1852 = vmatpush1.bf16.msra.mxu0 0
        %1853 = vmatprep.subr.bf16.mxu0 0
        %1854 = vmatpush1.bf16.msra.mxu0 0
        %1855 = vmatprep.subr.bf16.mxu0 0
        %1856 = vmatpush1.bf16.msra.mxu0 0
        %1857 = vmatprep.subr.bf16.mxu0 0
        %1858 = vmatpush1.bf16.msra.mxu0 0
        %1859 = vmatprep.subr.bf16.mxu0 0
        %1860 = vmatpush1.bf16.msra.mxu0 0
        %1861 = vmatprep.subr.bf16.mxu0 0
        %1862 = vmatpush1.bf16.msra.mxu0 0
        %1863 = vmatprep.subr.bf16.mxu0 0
        %1864 = vmatpush1.bf16.msra.mxu0 0
        %1865 = vmatprep.subr.bf16.mxu0 0
        %1866 = vmatpush1.bf16.msra.mxu0 0
        %1867 = vmatprep.subr.bf16.mxu0 0
        %1868 = vmatpush1.bf16.msra.mxu0 0
        %1869 = vmatprep.mubr.bf16.mxu0 0
        %1870 = vmatmul.mubr.bf16.gmra.mrb[0].mxu0 %v1835
        %v1871 = vpop.f32.mrb[0].mxu0
        %v1872 = vadd.f32 0.0, %v1871
        %v1873 = vpop.f32.mrb[0].mxu0
        %v1874 = vpop.f32.mrb[0].mxu0
        %v1875 = vpop.f32.mrb[0].mxu0
        %1876 = vdwg.mxu0
        %v1877 = vadd.f32 %v1710, %v1872
        %v1878 = vld [vmem:[%s843] sm:$0x1]
        %v1880 = vlaneseq
        %v1881 = vshrl.u32 %v1880, 7
        %v1882 = vsub.s32 0, %v1881
        %v1883 = vrot.slane %v1878, %v1882
        %v1885 = vadd.f32 %v1877, %v1883
        %v1886 = vadd.f32 %v932, %v1885
        %v1887 = vld [vmem:[%s846] sm:$0x1]
        %v1888 = vld [vmem:[%s849] sm:$0x1]
        %1889 = vadd.xlane.f32.xlu0 %v1886
        %v1890 = vpop.xlane.xlu0 %1889
        %v1891 = vrcp.pop 128.0
        %v1892 = vmul.f32 %v1890, %v1891
        %v1893 = vsub.f32 %v1886, %v1892
        %v1894 = vmul.f32 %v1893, %v1893
        %1895 = vadd.xlane.f32.xlu0 %v1894
        %v1896 = vpop.xlane.xlu0 %1895
        %v1897 = vmul.f32 %v1896, %v1891
        %v1898 = vadd.f32 %v1897, 1e-05
        %v1899 = vrsqrt.pop %v1898
        %v1900 = vmul.f32 %v1893, %v1899
        %v1902 = vlaneseq
        %v1903 = vshrl.u32 %v1902, 7
        %v1904 = vsub.s32 0, %v1903
        %v1905 = vrot.slane %v1887, %v1904
        %v1907 = vmul.f32 %v1900, %v1905
        %v1909 = vlaneseq
        %v1910 = vshrl.u32 %v1909, 7
        %v1911 = vsub.s32 0, %v1910
        %v1912 = vrot.slane %v1888, %v1911
        %v1914 = vadd.f32 %v1907, %v1912
        %v1915 = vld [vmem:[%s735] sm:$0xff]
        %v1916 = vld [vmem:[%s735 + $0x8] sm:$0xff]
        %v1917 = vld [vmem:[%s735 + $0x10] sm:$0xff]
        %v1918 = vld [vmem:[%s735 + $0x18] sm:$0xff]
        %v1919 = vld [vmem:[%s735 + $0x20] sm:$0xff]
        %v1920 = vld [vmem:[%s735 + $0x28] sm:$0xff]
        %v1921 = vld [vmem:[%s735 + $0x30] sm:$0xff]
        %v1922 = vld [vmem:[%s735 + $0x38] sm:$0xff]
        %v1923 = vld [vmem:[%s735 + $0x40] sm:$0xff]
        %v1924 = vld [vmem:[%s735 + $0x48] sm:$0xff]
        %v1925 = vld [vmem:[%s735 + $0x50] sm:$0xff]
        %v1926 = vld [vmem:[%s735 + $0x58] sm:$0xff]
        %v1927 = vld [vmem:[%s735 + $0x60] sm:$0xff]
        %v1928 = vld [vmem:[%s735 + $0x68] sm:$0xff]
        %v1929 = vld [vmem:[%s735 + $0x70] sm:$0xff]
        %v1930 = vld [vmem:[%s735 + $0x78] sm:$0xff]
        %v1931 = vld [vmem:[%s735 + $0x80] sm:$0xff]
        %v1932 = vld [vmem:[%s735 + $0x88] sm:$0xff]
        %v1933 = vld [vmem:[%s735 + $0x90] sm:$0xff]
        %v1934 = vld [vmem:[%s735 + $0x98] sm:$0xff]
        %v1935 = vld [vmem:[%s735 + $0xa0] sm:$0xff]
        %v1936 = vld [vmem:[%s735 + $0xa8] sm:$0xff]
        %v1937 = vld [vmem:[%s735 + $0xb0] sm:$0xff]
        %v1938 = vld [vmem:[%s735 + $0xb8] sm:$0xff]
        %v1939 = vld [vmem:[%s735 + $0xc0] sm:$0xff]
        %v1940 = vld [vmem:[%s735 + $0xc8] sm:$0xff]
        %v1941 = vld [vmem:[%s735 + $0xd0] sm:$0xff]
        %v1942 = vld [vmem:[%s735 + $0xd8] sm:$0xff]
        %v1943 = vld [vmem:[%s735 + $0xe0] sm:$0xff]
        %v1944 = vld [vmem:[%s735 + $0xe8] sm:$0xff]
        %v1945 = vld [vmem:[%s735 + $0xf0] sm:$0xff]
        %v1946 = vld [vmem:[%s735 + $0xf8] sm:$0xff]
        %v1947 = vld [vmem:[%s735 + $0x100] sm:$0xff]
        %v1948 = vld [vmem:[%s735 + $0x108] sm:$0xff]
        %v1949 = vld [vmem:[%s735 + $0x110] sm:$0xff]
        %v1950 = vld [vmem:[%s735 + $0x118] sm:$0xff]
        %v1951 = vld [vmem:[%s735 + $0x120] sm:$0xff]
        %v1952 = vld [vmem:[%s735 + $0x128] sm:$0xff]
        %v1953 = vld [vmem:[%s735 + $0x130] sm:$0xff]
        %v1954 = vld [vmem:[%s735 + $0x138] sm:$0xff]
        %v1955 = vld [vmem:[%s735 + $0x140] sm:$0xff]
        %v1956 = vld [vmem:[%s735 + $0x148] sm:$0xff]
        %v1957 = vld [vmem:[%s735 + $0x150] sm:$0xff]
        %v1958 = vld [vmem:[%s735 + $0x158] sm:$0xff]
        %v1959 = vld [vmem:[%s735 + $0x160] sm:$0xff]
        %v1960 = vld [vmem:[%s735 + $0x168] sm:$0xff]
        %v1961 = vld [vmem:[%s735 + $0x170] sm:$0xff]
        %v1962 = vld [vmem:[%s735 + $0x178] sm:$0xff]
        %v1963 = vld [vmem:[%s735 + $0x180] sm:$0xff]
        %v1964 = vld [vmem:[%s735 + $0x188] sm:$0xff]
        %v1965 = vld [vmem:[%s735 + $0x190] sm:$0xff]
        %v1966 = vld [vmem:[%s735 + $0x198] sm:$0xff]
        %v1967 = vld [vmem:[%s735 + $0x1a0] sm:$0xff]
        %v1968 = vld [vmem:[%s735 + $0x1a8] sm:$0xff]
        %v1969 = vld [vmem:[%s735 + $0x1b0] sm:$0xff]
        %v1970 = vld [vmem:[%s735 + $0x1b8] sm:$0xff]
        %v1971 = vld [vmem:[%s735 + $0x1c0] sm:$0xff]
        %v1972 = vld [vmem:[%s735 + $0x1c8] sm:$0xff]
        %v1973 = vld [vmem:[%s735 + $0x1d0] sm:$0xff]
        %v1974 = vld [vmem:[%s735 + $0x1d8] sm:$0xff]
        %v1975 = vld [vmem:[%s735 + $0x1e0] sm:$0xff]
        %v1976 = vld [vmem:[%s735 + $0x1e8] sm:$0xff]
        %v1977 = vld [vmem:[%s735 + $0x1f0] sm:$0xff]
        %v1978 = vld [vmem:[%s735 + $0x1f8] sm:$0xff]
        %v1979 = vld [vmem:[%s735 + $0x200] sm:$0xff]
        %v1980 = vld [vmem:[%s735 + $0x208] sm:$0xff]
        %v1981 = vld [vmem:[%s735 + $0x210] sm:$0xff]
        %v1982 = vld [vmem:[%s735 + $0x218] sm:$0xff]
        %v1983 = vld [vmem:[%s735 + $0x220] sm:$0xff]
        %v1984 = vld [vmem:[%s735 + $0x228] sm:$0xff]
        %v1985 = vld [vmem:[%s735 + $0x230] sm:$0xff]
        %v1986 = vld [vmem:[%s735 + $0x238] sm:$0xff]
        %v1987 = vld [vmem:[%s735 + $0x240] sm:$0xff]
        %v1988 = vld [vmem:[%s735 + $0x248] sm:$0xff]
        %v1989 = vld [vmem:[%s735 + $0x250] sm:$0xff]
        %v1990 = vld [vmem:[%s735 + $0x258] sm:$0xff]
        %v1991 = vld [vmem:[%s735 + $0x260] sm:$0xff]
        %v1992 = vld [vmem:[%s735 + $0x268] sm:$0xff]
        %v1993 = vld [vmem:[%s735 + $0x270] sm:$0xff]
        %v1994 = vld [vmem:[%s735 + $0x278] sm:$0xff]
        %v1995 = vld [vmem:[%s735 + $0x280] sm:$0xff]
        %v1996 = vld [vmem:[%s735 + $0x288] sm:$0xff]
        %v1997 = vld [vmem:[%s735 + $0x290] sm:$0xff]
        %v1998 = vld [vmem:[%s735 + $0x298] sm:$0xff]
        %v1999 = vld [vmem:[%s735 + $0x2a0] sm:$0xff]
        %v2000 = vld [vmem:[%s735 + $0x2a8] sm:$0xff]
        %v2001 = vld [vmem:[%s735 + $0x2b0] sm:$0xff]
        %v2002 = vld [vmem:[%s735 + $0x2b8] sm:$0xff]
        %v2003 = vld [vmem:[%s735 + $0x2c0] sm:$0xff]
        %v2004 = vld [vmem:[%s735 + $0x2c8] sm:$0xff]
        %v2005 = vld [vmem:[%s735 + $0x2d0] sm:$0xff]
        %v2006 = vld [vmem:[%s735 + $0x2d8] sm:$0xff]
        %v2007 = vld [vmem:[%s735 + $0x2e0] sm:$0xff]
        %v2008 = vld [vmem:[%s735 + $0x2e8] sm:$0xff]
        %v2009 = vld [vmem:[%s735 + $0x2f0] sm:$0xff]
        %v2010 = vld [vmem:[%s735 + $0x2f8] sm:$0xff]
        %v2011 = vld [vmem:[%s735 + $0x300] sm:$0xff]
        %v2012 = vld [vmem:[%s735 + $0x308] sm:$0xff]
        %v2013 = vld [vmem:[%s735 + $0x310] sm:$0xff]
        %v2014 = vld [vmem:[%s735 + $0x318] sm:$0xff]
        %v2015 = vld [vmem:[%s735 + $0x320] sm:$0xff]
        %v2016 = vld [vmem:[%s735 + $0x328] sm:$0xff]
        %v2017 = vld [vmem:[%s735 + $0x330] sm:$0xff]
        %v2018 = vld [vmem:[%s735 + $0x338] sm:$0xff]
        %v2019 = vld [vmem:[%s735 + $0x340] sm:$0xff]
        %v2020 = vld [vmem:[%s735 + $0x348] sm:$0xff]
        %v2021 = vld [vmem:[%s735 + $0x350] sm:$0xff]
        %v2022 = vld [vmem:[%s735 + $0x358] sm:$0xff]
        %v2023 = vld [vmem:[%s735 + $0x360] sm:$0xff]
        %v2024 = vld [vmem:[%s735 + $0x368] sm:$0xff]
        %v2025 = vld [vmem:[%s735 + $0x370] sm:$0xff]
        %v2026 = vld [vmem:[%s735 + $0x378] sm:$0xff]
        %v2027 = vld [vmem:[%s735 + $0x380] sm:$0xff]
        %v2028 = vld [vmem:[%s735 + $0x388] sm:$0xff]
        %v2029 = vld [vmem:[%s735 + $0x390] sm:$0xff]
        %v2030 = vld [vmem:[%s735 + $0x398] sm:$0xff]
        %v2031 = vld [vmem:[%s735 + $0x3a0] sm:$0xff]
        %v2032 = vld [vmem:[%s735 + $0x3a8] sm:$0xff]
        %v2033 = vld [vmem:[%s735 + $0x3b0] sm:$0xff]
        %v2034 = vld [vmem:[%s735 + $0x3b8] sm:$0xff]
        %v2035 = vld [vmem:[%s735 + $0x3c0] sm:$0xff]
        %v2036 = vld [vmem:[%s735 + $0x3c8] sm:$0xff]
        %v2037 = vld [vmem:[%s735 + $0x3d0] sm:$0xff]
        %v2038 = vld [vmem:[%s735 + $0x3d8] sm:$0xff]
        %v2039 = vld [vmem:[%s735 + $0x3e0] sm:$0xff]
        %v2040 = vld [vmem:[%s735 + $0x3e8] sm:$0xff]
        %v2041 = vld [vmem:[%s735 + $0x3f0] sm:$0xff]
        %v2042 = vld [vmem:[%s735 + $0x3f8] sm:$0xff]
        %v2043 = vpack.c.bf16 %v1914, %v1914
        %v2044 = vld [vmem:[%s853] sm:$0xff]
        %v2045 = vld [vmem:[%s853 + $0x8] sm:$0xff]
        %v2048 = vlaneseq
        %v2049 = vshrl.u32 %v2048, 7
        %v2050 = vsub.s32 0, %v2049
        %v2051 = vrot.slane %v2044, %v2050
        %v2052 = vlaneseq
        %v2053 = vshrl.u32 %v2052, 7
        %v2054 = vsub.s32 1, %v2053
        %v2055 = vrot.slane %v2044, %v2054
        %v2056 = vlaneseq
        %v2057 = vshrl.u32 %v2056, 7
        %v2058 = vsub.s32 2, %v2057
        %v2059 = vrot.slane %v2044, %v2058
        %v2060 = vlaneseq
        %v2061 = vshrl.u32 %v2060, 7
        %v2062 = vsub.s32 3, %v2061
        %v2063 = vrot.slane %v2044, %v2062
        %v2064 = vlaneseq
        %v2065 = vshrl.u32 %v2064, 7
        %v2066 = vsub.s32 4, %v2065
        %v2067 = vrot.slane %v2044, %v2066
        %v2068 = vlaneseq
        %v2069 = vshrl.u32 %v2068, 7
        %v2070 = vsub.s32 5, %v2069
        %v2071 = vrot.slane %v2044, %v2070
        %v2072 = vlaneseq
        %v2073 = vshrl.u32 %v2072, 7
        %v2074 = vsub.s32 6, %v2073
        %v2075 = vrot.slane %v2044, %v2074
        %v2076 = vlaneseq
        %v2077 = vshrl.u32 %v2076, 7
        %v2078 = vsub.s32 7, %v2077
        %v2079 = vrot.slane %v2044, %v2078
        %v2080 = vlaneseq
        %v2081 = vshrl.u32 %v2080, 7
        %v2082 = vsub.s32 0, %v2081
        %v2083 = vrot.slane %v2045, %v2082
        %v2084 = vlaneseq
        %v2085 = vshrl.u32 %v2084, 7
        %v2086 = vsub.s32 1, %v2085
        %v2087 = vrot.slane %v2045, %v2086
        %v2088 = vlaneseq
        %v2089 = vshrl.u32 %v2088, 7
        %v2090 = vsub.s32 2, %v2089
        %v2091 = vrot.slane %v2045, %v2090
        %v2092 = vlaneseq
        %v2093 = vshrl.u32 %v2092, 7
        %v2094 = vsub.s32 3, %v2093
        %v2095 = vrot.slane %v2045, %v2094
        %v2096 = vlaneseq
        %v2097 = vshrl.u32 %v2096, 7
        %v2098 = vsub.s32 4, %v2097
        %v2099 = vrot.slane %v2045, %v2098
        %v2100 = vlaneseq
        %v2101 = vshrl.u32 %v2100, 7
        %v2102 = vsub.s32 5, %v2101
        %v2103 = vrot.slane %v2045, %v2102
        %v2104 = vlaneseq
        %v2105 = vshrl.u32 %v2104, 7
        %v2106 = vsub.s32 6, %v2105
        %v2107 = vrot.slane %v2045, %v2106
        %v2108 = vlaneseq
        %v2109 = vshrl.u32 %v2108, 7
        %v2110 = vsub.s32 7, %v2109
        %v2111 = vrot.slane %v2045, %v2110
        %v2256 = vunpack.c.l.b16 %v1915
        %v2257 = vunpack.c.h.b16 %v1915
        %v2258 = vunpack.c.l.b16 %v1916
        %v2259 = vunpack.c.h.b16 %v1916
        %v2260 = vunpack.c.l.b16 %v1917
        %v2261 = vunpack.c.h.b16 %v1917
        %v2262 = vunpack.c.l.b16 %v1918
        %v2263 = vunpack.c.h.b16 %v1918
        %v2264 = vunpack.c.l.b16 %v1919
        %v2265 = vunpack.c.h.b16 %v1919
        %v2266 = vunpack.c.l.b16 %v1920
        %v2267 = vunpack.c.h.b16 %v1920
        %v2268 = vunpack.c.l.b16 %v1921
        %v2269 = vunpack.c.h.b16 %v1921
        %v2270 = vunpack.c.l.b16 %v1922
        %v2271 = vunpack.c.h.b16 %v1922
        %v2272 = vunpack.c.l.b16 %v1923
        %v2273 = vunpack.c.h.b16 %v1923
        %v2274 = vunpack.c.l.b16 %v1924
        %v2275 = vunpack.c.h.b16 %v1924
        %v2276 = vunpack.c.l.b16 %v1925
        %v2277 = vunpack.c.h.b16 %v1925
        %v2278 = vunpack.c.l.b16 %v1926
        %v2279 = vunpack.c.h.b16 %v1926
        %v2280 = vunpack.c.l.b16 %v1927
        %v2281 = vunpack.c.h.b16 %v1927
        %v2282 = vunpack.c.l.b16 %v1928
        %v2283 = vunpack.c.h.b16 %v1928
        %v2284 = vunpack.c.l.b16 %v1929
        %v2285 = vunpack.c.h.b16 %v1929
        %v2286 = vunpack.c.l.b16 %v1930
        %v2287 = vunpack.c.h.b16 %v1930
        %v2288 = vunpack.c.l.b16 %v1931
        %v2289 = vunpack.c.h.b16 %v1931
        %v2290 = vunpack.c.l.b16 %v1932
        %v2291 = vunpack.c.h.b16 %v1932
        %v2292 = vunpack.c.l.b16 %v1933
        %v2293 = vunpack.c.h.b16 %v1933
        %v2294 = vunpack.c.l.b16 %v1934
        %v2295 = vunpack.c.h.b16 %v1934
        %v2296 = vunpack.c.l.b16 %v1935
        %v2297 = vunpack.c.h.b16 %v1935
        %v2298 = vunpack.c.l.b16 %v1936
        %v2299 = vunpack.c.h.b16 %v1936
        %v2300 = vunpack.c.l.b16 %v1937
        %v2301 = vunpack.c.h.b16 %v1937
        %v2302 = vunpack.c.l.b16 %v1938
        %v2303 = vunpack.c.h.b16 %v1938
        %v2304 = vunpack.c.l.b16 %v1939
        %v2305 = vunpack.c.h.b16 %v1939
        %v2306 = vunpack.c.l.b16 %v1940
        %v2307 = vunpack.c.h.b16 %v1940
        %v2308 = vunpack.c.l.b16 %v1941
        %v2309 = vunpack.c.h.b16 %v1941
        %v2310 = vunpack.c.l.b16 %v1942
        %v2311 = vunpack.c.h.b16 %v1942
        %v2312 = vunpack.c.l.b16 %v1943
        %v2313 = vunpack.c.h.b16 %v1943
        %v2314 = vunpack.c.l.b16 %v1944
        %v2315 = vunpack.c.h.b16 %v1944
        %v2316 = vunpack.c.l.b16 %v1945
        %v2317 = vunpack.c.h.b16 %v1945
        %v2318 = vunpack.c.l.b16 %v1946
        %v2319 = vunpack.c.h.b16 %v1946
        %v2320 = vunpack.c.l.b16 %v1947
        %v2321 = vunpack.c.h.b16 %v1947
        %v2322 = vunpack.c.l.b16 %v1948
        %v2323 = vunpack.c.h.b16 %v1948
        %v2324 = vunpack.c.l.b16 %v1949
        %v2325 = vunpack.c.h.b16 %v1949
        %v2326 = vunpack.c.l.b16 %v1950
        %v2327 = vunpack.c.h.b16 %v1950
        %v2328 = vunpack.c.l.b16 %v1951
        %v2329 = vunpack.c.h.b16 %v1951
        %v2330 = vunpack.c.l.b16 %v1952
        %v2331 = vunpack.c.h.b16 %v1952
        %v2332 = vunpack.c.l.b16 %v1953
        %v2333 = vunpack.c.h.b16 %v1953
        %v2334 = vunpack.c.l.b16 %v1954
        %v2335 = vunpack.c.h.b16 %v1954
        %v2336 = vunpack.c.l.b16 %v1955
        %v2337 = vunpack.c.h.b16 %v1955
        %v2338 = vunpack.c.l.b16 %v1956
        %v2339 = vunpack.c.h.b16 %v1956
        %v2340 = vunpack.c.l.b16 %v1957
        %v2341 = vunpack.c.h.b16 %v1957
        %v2342 = vunpack.c.l.b16 %v1958
        %v2343 = vunpack.c.h.b16 %v1958
        %v2344 = vunpack.c.l.b16 %v1959
        %v2345 = vunpack.c.h.b16 %v1959
        %v2346 = vunpack.c.l.b16 %v1960
        %v2347 = vunpack.c.h.b16 %v1960
        %v2348 = vunpack.c.l.b16 %v1961
        %v2349 = vunpack.c.h.b16 %v1961
        %v2350 = vunpack.c.l.b16 %v1962
        %v2351 = vunpack.c.h.b16 %v1962
        %v2352 = vunpack.c.l.b16 %v1963
        %v2353 = vunpack.c.h.b16 %v1963
        %v2354 = vunpack.c.l.b16 %v1964
        %v2355 = vunpack.c.h.b16 %v1964
        %v2356 = vunpack.c.l.b16 %v1965
        %v2357 = vunpack.c.h.b16 %v1965
        %v2358 = vunpack.c.l.b16 %v1966
        %v2359 = vunpack.c.h.b16 %v1966
        %v2360 = vunpack.c.l.b16 %v1967
        %v2361 = vunpack.c.h.b16 %v1967
        %v2362 = vunpack.c.l.b16 %v1968
        %v2363 = vunpack.c.h.b16 %v1968
        %v2364 = vunpack.c.l.b16 %v1969
        %v2365 = vunpack.c.h.b16 %v1969
        %v2366 = vunpack.c.l.b16 %v1970
        %v2367 = vunpack.c.h.b16 %v1970
        %v2368 = vunpack.c.l.b16 %v1971
        %v2369 = vunpack.c.h.b16 %v1971
        %v2370 = vunpack.c.l.b16 %v1972
        %v2371 = vunpack.c.h.b16 %v1972
        %v2372 = vunpack.c.l.b16 %v1973
        %v2373 = vunpack.c.h.b16 %v1973
        %v2374 = vunpack.c.l.b16 %v1974
        %v2375 = vunpack.c.h.b16 %v1974
        %v2376 = vunpack.c.l.b16 %v1975
        %v2377 = vunpack.c.h.b16 %v1975
        %v2378 = vunpack.c.l.b16 %v1976
        %v2379 = vunpack.c.h.b16 %v1976
        %v2380 = vunpack.c.l.b16 %v1977
        %v2381 = vunpack.c.h.b16 %v1977
        %v2382 = vunpack.c.l.b16 %v1978
        %v2383 = vunpack.c.h.b16 %v1978
        %v2384 = vunpack.c.l.b16 %v1979
        %v2385 = vunpack.c.h.b16 %v1979
        %v2386 = vunpack.c.l.b16 %v1980
        %v2387 = vunpack.c.h.b16 %v1980
        %v2388 = vunpack.c.l.b16 %v1981
        %v2389 = vunpack.c.h.b16 %v1981
        %v2390 = vunpack.c.l.b16 %v1982
        %v2391 = vunpack.c.h.b16 %v1982
        %v2392 = vunpack.c.l.b16 %v1983
        %v2393 = vunpack.c.h.b16 %v1983
        %v2394 = vunpack.c.l.b16 %v1984
        %v2395 = vunpack.c.h.b16 %v1984
        %v2396 = vunpack.c.l.b16 %v1985
        %v2397 = vunpack.c.h.b16 %v1985
        %v2398 = vunpack.c.l.b16 %v1986
        %v2399 = vunpack.c.h.b16 %v1986
        %v2400 = vunpack.c.l.b16 %v1987
        %v2401 = vunpack.c.h.b16 %v1987
        %v2402 = vunpack.c.l.b16 %v1988
        %v2403 = vunpack.c.h.b16 %v1988
        %v2404 = vunpack.c.l.b16 %v1989
        %v2405 = vunpack.c.h.b16 %v1989
        %v2406 = vunpack.c.l.b16 %v1990
        %v2407 = vunpack.c.h.b16 %v1990
        %v2408 = vunpack.c.l.b16 %v1991
        %v2409 = vunpack.c.h.b16 %v1991
        %v2410 = vunpack.c.l.b16 %v1992
        %v2411 = vunpack.c.h.b16 %v1992
        %v2412 = vunpack.c.l.b16 %v1993
        %v2413 = vunpack.c.h.b16 %v1993
        %v2414 = vunpack.c.l.b16 %v1994
        %v2415 = vunpack.c.h.b16 %v1994
        %v2416 = vunpack.c.l.b16 %v1995
        %v2417 = vunpack.c.h.b16 %v1995
        %v2418 = vunpack.c.l.b16 %v1996
        %v2419 = vunpack.c.h.b16 %v1996
        %v2420 = vunpack.c.l.b16 %v1997
        %v2421 = vunpack.c.h.b16 %v1997
        %v2422 = vunpack.c.l.b16 %v1998
        %v2423 = vunpack.c.h.b16 %v1998
        %v2424 = vunpack.c.l.b16 %v1999
        %v2425 = vunpack.c.h.b16 %v1999
        %v2426 = vunpack.c.l.b16 %v2000
        %v2427 = vunpack.c.h.b16 %v2000
        %v2428 = vunpack.c.l.b16 %v2001
        %v2429 = vunpack.c.h.b16 %v2001
        %v2430 = vunpack.c.l.b16 %v2002
        %v2431 = vunpack.c.h.b16 %v2002
        %v2432 = vunpack.c.l.b16 %v2003
        %v2433 = vunpack.c.h.b16 %v2003
        %v2434 = vunpack.c.l.b16 %v2004
        %v2435 = vunpack.c.h.b16 %v2004
        %v2436 = vunpack.c.l.b16 %v2005
        %v2437 = vunpack.c.h.b16 %v2005
        %v2438 = vunpack.c.l.b16 %v2006
        %v2439 = vunpack.c.h.b16 %v2006
        %v2440 = vunpack.c.l.b16 %v2007
        %v2441 = vunpack.c.h.b16 %v2007
        %v2442 = vunpack.c.l.b16 %v2008
        %v2443 = vunpack.c.h.b16 %v2008
        %v2444 = vunpack.c.l.b16 %v2009
        %v2445 = vunpack.c.h.b16 %v2009
        %v2446 = vunpack.c.l.b16 %v2010
        %v2447 = vunpack.c.h.b16 %v2010
        %v2448 = vunpack.c.l.b16 %v2011
        %v2449 = vunpack.c.h.b16 %v2011
        %v2450 = vunpack.c.l.b16 %v2012
        %v2451 = vunpack.c.h.b16 %v2012
        %v2452 = vunpack.c.l.b16 %v2013
        %v2453 = vunpack.c.h.b16 %v2013
        %v2454 = vunpack.c.l.b16 %v2014
        %v2455 = vunpack.c.h.b16 %v2014
        %v2456 = vunpack.c.l.b16 %v2015
        %v2457 = vunpack.c.h.b16 %v2015
        %v2458 = vunpack.c.l.b16 %v2016
        %v2459 = vunpack.c.h.b16 %v2016
        %v2460 = vunpack.c.l.b16 %v2017
        %v2461 = vunpack.c.h.b16 %v2017
        %v2462 = vunpack.c.l.b16 %v2018
        %v2463 = vunpack.c.h.b16 %v2018
        %v2464 = vunpack.c.l.b16 %v2019
        %v2465 = vunpack.c.h.b16 %v2019
        %v2466 = vunpack.c.l.b16 %v2020
        %v2467 = vunpack.c.h.b16 %v2020
        %v2468 = vunpack.c.l.b16 %v2021
        %v2469 = vunpack.c.h.b16 %v2021
        %v2470 = vunpack.c.l.b16 %v2022
        %v2471 = vunpack.c.h.b16 %v2022
        %v2472 = vunpack.c.l.b16 %v2023
        %v2473 = vunpack.c.h.b16 %v2023
        %v2474 = vunpack.c.l.b16 %v2024
        %v2475 = vunpack.c.h.b16 %v2024
        %v2476 = vunpack.c.l.b16 %v2025
        %v2477 = vunpack.c.h.b16 %v2025
        %v2478 = vunpack.c.l.b16 %v2026
        %v2479 = vunpack.c.h.b16 %v2026
        %v2480 = vunpack.c.l.b16 %v2027
        %v2481 = vunpack.c.h.b16 %v2027
        %v2482 = vunpack.c.l.b16 %v2028
        %v2483 = vunpack.c.h.b16 %v2028
        %v2484 = vunpack.c.l.b16 %v2029
        %v2485 = vunpack.c.h.b16 %v2029
        %v2486 = vunpack.c.l.b16 %v2030
        %v2487 = vunpack.c.h.b16 %v2030
        %v2488 = vunpack.c.l.b16 %v2031
        %v2489 = vunpack.c.h.b16 %v2031
        %v2490 = vunpack.c.l.b16 %v2032
        %v2491 = vunpack.c.h.b16 %v2032
        %v2492 = vunpack.c.l.b16 %v2033
        %v2493 = vunpack.c.h.b16 %v2033
        %v2494 = vunpack.c.l.b16 %v2034
        %v2495 = vunpack.c.h.b16 %v2034
        %v2496 = vunpack.c.l.b16 %v2035
        %v2497 = vunpack.c.h.b16 %v2035
        %v2498 = vunpack.c.l.b16 %v2036
        %v2499 = vunpack.c.h.b16 %v2036
        %v2500 = vunpack.c.l.b16 %v2037
        %v2501 = vunpack.c.h.b16 %v2037
        %v2502 = vunpack.c.l.b16 %v2038
        %v2503 = vunpack.c.h.b16 %v2038
        %v2504 = vunpack.c.l.b16 %v2039
        %v2505 = vunpack.c.h.b16 %v2039
        %v2506 = vunpack.c.l.b16 %v2040
        %v2507 = vunpack.c.h.b16 %v2040
        %v2508 = vunpack.c.l.b16 %v2041
        %v2509 = vunpack.c.h.b16 %v2041
        %v2510 = vunpack.c.l.b16 %v2042
        %v2511 = vunpack.c.h.b16 %v2042
        %v2512 = vpack.c.b16 %v2272, %v2256
        %v2513 = vpack.c.b16 %v2273, %v2257
        %v2514 = vpack.c.b16 %v2274, %v2258
        %v2515 = vpack.c.b16 %v2275, %v2259
        %v2516 = vpack.c.b16 %v2276, %v2260
        %v2517 = vpack.c.b16 %v2277, %v2261
        %v2518 = vpack.c.b16 %v2278, %v2262
        %v2519 = vpack.c.b16 %v2279, %v2263
        %v2520 = vpack.c.b16 %v2280, %v2264
        %v2521 = vpack.c.b16 %v2281, %v2265
        %v2522 = vpack.c.b16 %v2282, %v2266
        %v2523 = vpack.c.b16 %v2283, %v2267
        %v2524 = vpack.c.b16 %v2284, %v2268
        %v2525 = vpack.c.b16 %v2285, %v2269
        %v2526 = vpack.c.b16 %v2286, %v2270
        %v2527 = vpack.c.b16 %v2287, %v2271
        %v2528 = vpack.c.b16 %v2304, %v2288
        %v2529 = vpack.c.b16 %v2305, %v2289
        %v2530 = vpack.c.b16 %v2306, %v2290
        %v2531 = vpack.c.b16 %v2307, %v2291
        %v2532 = vpack.c.b16 %v2308, %v2292
        %v2533 = vpack.c.b16 %v2309, %v2293
        %v2534 = vpack.c.b16 %v2310, %v2294
        %v2535 = vpack.c.b16 %v2311, %v2295
        %v2536 = vpack.c.b16 %v2312, %v2296
        %v2537 = vpack.c.b16 %v2313, %v2297
        %v2538 = vpack.c.b16 %v2314, %v2298
        %v2539 = vpack.c.b16 %v2315, %v2299
        %v2540 = vpack.c.b16 %v2316, %v2300
        %v2541 = vpack.c.b16 %v2317, %v2301
        %v2542 = vpack.c.b16 %v2318, %v2302
        %v2543 = vpack.c.b16 %v2319, %v2303
        %v2544 = vpack.c.b16 %v2336, %v2320
        %v2545 = vpack.c.b16 %v2337, %v2321
        %v2546 = vpack.c.b16 %v2338, %v2322
        %v2547 = vpack.c.b16 %v2339, %v2323
        %v2548 = vpack.c.b16 %v2340, %v2324
        %v2549 = vpack.c.b16 %v2341, %v2325
        %v2550 = vpack.c.b16 %v2342, %v2326
        %v2551 = vpack.c.b16 %v2343, %v2327
        %v2552 = vpack.c.b16 %v2344, %v2328
        %v2553 = vpack.c.b16 %v2345, %v2329
        %v2554 = vpack.c.b16 %v2346, %v2330
        %v2555 = vpack.c.b16 %v2347, %v2331
        %v2556 = vpack.c.b16 %v2348, %v2332
        %v2557 = vpack.c.b16 %v2349, %v2333
        %v2558 = vpack.c.b16 %v2350, %v2334
        %v2559 = vpack.c.b16 %v2351, %v2335
        %v2560 = vpack.c.b16 %v2368, %v2352
        %v2561 = vpack.c.b16 %v2369, %v2353
        %v2562 = vpack.c.b16 %v2370, %v2354
        %v2563 = vpack.c.b16 %v2371, %v2355
        %v2564 = vpack.c.b16 %v2372, %v2356
        %v2565 = vpack.c.b16 %v2373, %v2357
        %v2566 = vpack.c.b16 %v2374, %v2358
        %v2567 = vpack.c.b16 %v2375, %v2359
        %v2568 = vpack.c.b16 %v2376, %v2360
        %v2569 = vpack.c.b16 %v2377, %v2361
        %v2570 = vpack.c.b16 %v2378, %v2362
        %v2571 = vpack.c.b16 %v2379, %v2363
        %v2572 = vpack.c.b16 %v2380, %v2364
        %v2573 = vpack.c.b16 %v2381, %v2365
        %v2574 = vpack.c.b16 %v2382, %v2366
        %v2575 = vpack.c.b16 %v2383, %v2367
        %v2576 = vpack.c.b16 %v2400, %v2384
        %v2577 = vpack.c.b16 %v2401, %v2385
        %v2578 = vpack.c.b16 %v2402, %v2386
        %v2579 = vpack.c.b16 %v2403, %v2387
        %v2580 = vpack.c.b16 %v2404, %v2388
        %v2581 = vpack.c.b16 %v2405, %v2389
        %v2582 = vpack.c.b16 %v2406, %v2390
        %v2583 = vpack.c.b16 %v2407, %v2391
        %v2584 = vpack.c.b16 %v2408, %v2392
        %v2585 = vpack.c.b16 %v2409, %v2393
        %v2586 = vpack.c.b16 %v2410, %v2394
        %v2587 = vpack.c.b16 %v2411, %v2395
        %v2588 = vpack.c.b16 %v2412, %v2396
        %v2589 = vpack.c.b16 %v2413, %v2397
        %v2590 = vpack.c.b16 %v2414, %v2398
        %v2591 = vpack.c.b16 %v2415, %v2399
        %v2592 = vpack.c.b16 %v2432, %v2416
        %v2593 = vpack.c.b16 %v2433, %v2417
        %v2594 = vpack.c.b16 %v2434, %v2418
        %v2595 = vpack.c.b16 %v2435, %v2419
        %v2596 = vpack.c.b16 %v2436, %v2420
        %v2597 = vpack.c.b16 %v2437, %v2421
        %v2598 = vpack.c.b16 %v2438, %v2422
        %v2599 = vpack.c.b16 %v2439, %v2423
        %v2600 = vpack.c.b16 %v2440, %v2424
        %v2601 = vpack.c.b16 %v2441, %v2425
        %v2602 = vpack.c.b16 %v2442, %v2426
        %v2603 = vpack.c.b16 %v2443, %v2427
        %v2604 = vpack.c.b16 %v2444, %v2428
        %v2605 = vpack.c.b16 %v2445, %v2429
        %v2606 = vpack.c.b16 %v2446, %v2430
        %v2607 = vpack.c.b16 %v2447, %v2431
        %v2608 = vpack.c.b16 %v2464, %v2448
        %v2609 = vpack.c.b16 %v2465, %v2449
        %v2610 = vpack.c.b16 %v2466, %v2450
        %v2611 = vpack.c.b16 %v2467, %v2451
        %v2612 = vpack.c.b16 %v2468, %v2452
        %v2613 = vpack.c.b16 %v2469, %v2453
        %v2614 = vpack.c.b16 %v2470, %v2454
        %v2615 = vpack.c.b16 %v2471, %v2455
        %v2616 = vpack.c.b16 %v2472, %v2456
        %v2617 = vpack.c.b16 %v2473, %v2457
        %v2618 = vpack.c.b16 %v2474, %v2458
        %v2619 = vpack.c.b16 %v2475, %v2459
        %v2620 = vpack.c.b16 %v2476, %v2460
        %v2621 = vpack.c.b16 %v2477, %v2461
        %v2622 = vpack.c.b16 %v2478, %v2462
        %v2623 = vpack.c.b16 %v2479, %v2463
        %v2624 = vpack.c.b16 %v2496, %v2480
        %v2625 = vpack.c.b16 %v2497, %v2481
        %v2626 = vpack.c.b16 %v2498, %v2482
        %v2627 = vpack.c.b16 %v2499, %v2483
        %v2628 = vpack.c.b16 %v2500, %v2484
        %v2629 = vpack.c.b16 %v2501, %v2485
        %v2630 = vpack.c.b16 %v2502, %v2486
        %v2631 = vpack.c.b16 %v2503, %v2487
        %v2632 = vpack.c.b16 %v2504, %v2488
        %v2633 = vpack.c.b16 %v2505, %v2489
        %v2634 = vpack.c.b16 %v2506, %v2490
        %v2635 = vpack.c.b16 %v2507, %v2491
        %v2636 = vpack.c.b16 %v2508, %v2492
        %v2637 = vpack.c.b16 %v2509, %v2493
        %v2638 = vpack.c.b16 %v2510, %v2494
        %v2639 = vpack.c.b16 %v2511, %v2495
        %2768 = vmatprep.subr.bf16.mxu0 %v2513
        %2769 = vmatpush1.bf16.msra.mxu0 %v2512
        %2770 = vmatprep.subr.bf16.mxu0 %v2529
        %2771 = vmatpush1.bf16.msra.mxu0 %v2528
        %2772 = vmatprep.subr.bf16.mxu0 %v2545
        %2773 = vmatpush1.bf16.msra.mxu0 %v2544
        %2774 = vmatprep.subr.bf16.mxu0 %v2561
        %2775 = vmatpush1.bf16.msra.mxu0 %v2560
        %2776 = vmatprep.subr.bf16.mxu0 %v2577
        %2777 = vmatpush1.bf16.msra.mxu0 %v2576
        %2778 = vmatprep.subr.bf16.mxu0 %v2593
        %2779 = vmatpush1.bf16.msra.mxu0 %v2592
        %2780 = vmatprep.subr.bf16.mxu0 %v2609
        %2781 = vmatpush1.bf16.msra.mxu0 %v2608
        %2782 = vmatprep.subr.bf16.mxu0 %v2625
        %2783 = vmatpush1.bf16.msra.mxu0 %v2624
        %2784 = vmatprep.subr.bf16.mxu0 0
        %2785 = vmatpush1.bf16.msra.mxu0 0
        %2786 = vmatprep.subr.bf16.mxu0 0
        %2787 = vmatpush1.bf16.msra.mxu0 0
        %2788 = vmatprep.subr.bf16.mxu0 0
        %2789 = vmatpush1.bf16.msra.mxu0 0
        %2790 = vmatprep.subr.bf16.mxu0 0
        %2791 = vmatpush1.bf16.msra.mxu0 0
        %2792 = vmatprep.subr.bf16.mxu0 0
        %2793 = vmatpush1.bf16.msra.mxu0 0
        %2794 = vmatprep.subr.bf16.mxu0 0
        %2795 = vmatpush1.bf16.msra.mxu0 0
        %2796 = vmatprep.subr.bf16.mxu0 0
        %2797 = vmatpush1.bf16.msra.mxu0 0
        %2798 = vmatprep.subr.bf16.mxu0 0
        %2799 = vmatpush1.bf16.msra.mxu0 0
        %2800 = vmatprep.mubr.bf16.mxu0 0
        %2801 = vmatmul.mubr.bf16.gmra.mrb[0].mxu0 %v2043
        %v2802 = vpop.f32.mrb[0].mxu0
        %v2803 = vadd.f32 %v2051, %v2802
        %v2804 = vpop.f32.mrb[0].mxu0
        %v2805 = vadd.f32 %v2055, %v2804
        %v2806 = vpop.f32.mrb[0].mxu0
        %v2807 = vpop.f32.mrb[0].mxu0
        %2808 = vdwg.mxu0
        %2809 = vmatprep.subr.bf16.mxu0 %v2515
        %2810 = vmatpush1.bf16.msra.mxu0 %v2514
        %2811 = vmatprep.subr.bf16.mxu0 %v2531
        %2812 = vmatpush1.bf16.msra.mxu0 %v2530
        %2813 = vmatprep.subr.bf16.mxu0 %v2547
        %2814 = vmatpush1.bf16.msra.mxu0 %v2546
        %2815 = vmatprep.subr.bf16.mxu0 %v2563
        %2816 = vmatpush1.bf16.msra.mxu0 %v2562
        %2817 = vmatprep.subr.bf16.mxu0 %v2579
        %2818 = vmatpush1.bf16.msra.mxu0 %v2578
        %2819 = vmatprep.subr.bf16.mxu0 %v2595
        %2820 = vmatpush1.bf16.msra.mxu0 %v2594
        %2821 = vmatprep.subr.bf16.mxu0 %v2611
        %2822 = vmatpush1.bf16.msra.mxu0 %v2610
        %2823 = vmatprep.subr.bf16.mxu0 %v2627
        %2824 = vmatpush1.bf16.msra.mxu0 %v2626
        %2825 = vmatprep.subr.bf16.mxu0 0
        %2826 = vmatpush1.bf16.msra.mxu0 0
        %2827 = vmatprep.subr.bf16.mxu0 0
        %2828 = vmatpush1.bf16.msra.mxu0 0
        %2829 = vmatprep.subr.bf16.mxu0 0
        %2830 = vmatpush1.bf16.msra.mxu0 0
        %2831 = vmatprep.subr.bf16.mxu0 0
        %2832 = vmatpush1.bf16.msra.mxu0 0
        %2833 = vmatprep.subr.bf16.mxu0 0
        %2834 = vmatpush1.bf16.msra.mxu0 0
        %2835 = vmatprep.subr.bf16.mxu0 0
        %2836 = vmatpush1.bf16.msra.mxu0 0
        %2837 = vmatprep.subr.bf16.mxu0 0
        %2838 = vmatpush1.bf16.msra.mxu0 0
        %2839 = vmatprep.subr.bf16.mxu0 0
        %2840 = vmatpush1.bf16.msra.mxu0 0
        %2841 = vmatprep.mubr.bf16.mxu0 0
        %2842 = vmatmul.mubr.bf16.gmra.mrb[0].mxu0 %v2043
        %v2843 = vpop.f32.mrb[0].mxu0
        %v2844 = vadd.f32 %v2059, %v2843
        %v2845 = vpop.f32.mrb[0].mxu0
        %v2846 = vadd.f32 %v2063, %v2845
        %v2847 = vpop.f32.mrb[0].mxu0
        %v2848 = vpop.f32.mrb[0].mxu0
        %2849 = vdwg.mxu0
        %2850 = vmatprep.subr.bf16.mxu0 %v2517
        %2851 = vmatpush1.bf16.msra.mxu0 %v2516
        %2852 = vmatprep.subr.bf16.mxu0 %v2533
        %2853 = vmatpush1.bf16.msra.mxu0 %v2532
        %2854 = vmatprep.subr.bf16.mxu0 %v2549
        %2855 = vmatpush1.bf16.msra.mxu0 %v2548
        %2856 = vmatprep.subr.bf16.mxu0 %v2565
        %2857 = vmatpush1.bf16.msra.mxu0 %v2564
        %2858 = vmatprep.subr.bf16.mxu0 %v2581
        %2859 = vmatpush1.bf16.msra.mxu0 %v2580
        %2860 = vmatprep.subr.bf16.mxu0 %v2597
        %2861 = vmatpush1.bf16.msra.mxu0 %v2596
        %2862 = vmatprep.subr.bf16.mxu0 %v2613
        %2863 = vmatpush1.bf16.msra.mxu0 %v2612
        %2864 = vmatprep.subr.bf16.mxu0 %v2629
        %2865 = vmatpush1.bf16.msra.mxu0 %v2628
        %2866 = vmatprep.subr.bf16.mxu0 0
        %2867 = vmatpush1.bf16.msra.mxu0 0
        %2868 = vmatprep.subr.bf16.mxu0 0
        %2869 = vmatpush1.bf16.msra.mxu0 0
        %2870 = vmatprep.subr.bf16.mxu0 0
        %2871 = vmatpush1.bf16.msra.mxu0 0
        %2872 = vmatprep.subr.bf16.mxu0 0
        %2873 = vmatpush1.bf16.msra.mxu0 0
        %2874 = vmatprep.subr.bf16.mxu0 0
        %2875 = vmatpush1.bf16.msra.mxu0 0
        %2876 = vmatprep.subr.bf16.mxu0 0
        %2877 = vmatpush1.bf16.msra.mxu0 0
        %2878 = vmatprep.subr.bf16.mxu0 0
        %2879 = vmatpush1.bf16.msra.mxu0 0
        %2880 = vmatprep.subr.bf16.mxu0 0
        %2881 = vmatpush1.bf16.msra.mxu0 0
        %2882 = vmatprep.mubr.bf16.mxu0 0
        %2883 = vmatmul.mubr.bf16.gmra.mrb[0].mxu0 %v2043
        %v2884 = vpop.f32.mrb[0].mxu0
        %v2885 = vadd.f32 %v2067, %v2884
        %v2886 = vpop.f32.mrb[0].mxu0
        %v2887 = vadd.f32 %v2071, %v2886
        %v2888 = vpop.f32.mrb[0].mxu0
        %v2889 = vpop.f32.mrb[0].mxu0
        %2890 = vdwg.mxu0
        %2891 = vmatprep.subr.bf16.mxu0 %v2519
        %2892 = vmatpush1.bf16.msra.mxu0 %v2518
        %2893 = vmatprep.subr.bf16.mxu0 %v2535
        %2894 = vmatpush1.bf16.msra.mxu0 %v2534
        %2895 = vmatprep.subr.bf16.mxu0 %v2551
        %2896 = vmatpush1.bf16.msra.mxu0 %v2550
        %2897 = vmatprep.subr.bf16.mxu0 %v2567
        %2898 = vmatpush1.bf16.msra.mxu0 %v2566
        %2899 = vmatprep.subr.bf16.mxu0 %v2583
        %2900 = vmatpush1.bf16.msra.mxu0 %v2582
        %2901 = vmatprep.subr.bf16.mxu0 %v2599
        %2902 = vmatpush1.bf16.msra.mxu0 %v2598
        %2903 = vmatprep.subr.bf16.mxu0 %v2615
        %2904 = vmatpush1.bf16.msra.mxu0 %v2614
        %2905 = vmatprep.subr.bf16.mxu0 %v2631
        %2906 = vmatpush1.bf16.msra.mxu0 %v2630
        %2907 = vmatprep.subr.bf16.mxu0 0
        %2908 = vmatpush1.bf16.msra.mxu0 0
        %2909 = vmatprep.subr.bf16.mxu0 0
        %2910 = vmatpush1.bf16.msra.mxu0 0
        %2911 = vmatprep.subr.bf16.mxu0 0
        %2912 = vmatpush1.bf16.msra.mxu0 0
        %2913 = vmatprep.subr.bf16.mxu0 0
        %2914 = vmatpush1.bf16.msra.mxu0 0
        %2915 = vmatprep.subr.bf16.mxu0 0
        %2916 = vmatpush1.bf16.msra.mxu0 0
        %2917 = vmatprep.subr.bf16.mxu0 0
        %2918 = vmatpush1.bf16.msra.mxu0 0
        %2919 = vmatprep.subr.bf16.mxu0 0
        %2920 = vmatpush1.bf16.msra.mxu0 0
        %2921 = vmatprep.subr.bf16.mxu0 0
        %2922 = vmatpush1.bf16.msra.mxu0 0
        %2923 = vmatprep.mubr.bf16.mxu0 0
        %2924 = vmatmul.mubr.bf16.gmra.mrb[0].mxu0 %v2043
        %v2925 = vpop.f32.mrb[0].mxu0
        %v2926 = vadd.f32 %v2075, %v2925
        %v2927 = vpop.f32.mrb[0].mxu0
        %v2928 = vadd.f32 %v2079, %v2927
        %v2929 = vpop.f32.mrb[0].mxu0
        %v2930 = vpop.f32.mrb[0].mxu0
        %2931 = vdwg.mxu0
        %2932 = vmatprep.subr.bf16.mxu0 %v2521
        %2933 = vmatpush1.bf16.msra.mxu0 %v2520
        %2934 = vmatprep.subr.bf16.mxu0 %v2537
        %2935 = vmatpush1.bf16.msra.mxu0 %v2536
        %2936 = vmatprep.subr.bf16.mxu0 %v2553
        %2937 = vmatpush1.bf16.msra.mxu0 %v2552
        %2938 = vmatprep.subr.bf16.mxu0 %v2569
        %2939 = vmatpush1.bf16.msra.mxu0 %v2568
        %2940 = vmatprep.subr.bf16.mxu0 %v2585
        %2941 = vmatpush1.bf16.msra.mxu0 %v2584
        %2942 = vmatprep.subr.bf16.mxu0 %v2601
        %2943 = vmatpush1.bf16.msra.mxu0 %v2600
        %2944 = vmatprep.subr.bf16.mxu0 %v2617
        %2945 = vmatpush1.bf16.msra.mxu0 %v2616
        %2946 = vmatprep.subr.bf16.mxu0 %v2633
        %2947 = vmatpush1.bf16.msra.mxu0 %v2632
        %2948 = vmatprep.subr.bf16.mxu0 0
        %2949 = vmatpush1.bf16.msra.mxu0 0
        %2950 = vmatprep.subr.bf16.mxu0 0
        %2951 = vmatpush1.bf16.msra.mxu0 0
        %2952 = vmatprep.subr.bf16.mxu0 0
        %2953 = vmatpush1.bf16.msra.mxu0 0
        %2954 = vmatprep.subr.bf16.mxu0 0
        %2955 = vmatpush1.bf16.msra.mxu0 0
        %2956 = vmatprep.subr.bf16.mxu0 0
        %2957 = vmatpush1.bf16.msra.mxu0 0
        %2958 = vmatprep.subr.bf16.mxu0 0
        %2959 = vmatpush1.bf16.msra.mxu0 0
        %2960 = vmatprep.subr.bf16.mxu0 0
        %2961 = vmatpush1.bf16.msra.mxu0 0
        %2962 = vmatprep.subr.bf16.mxu0 0
        %2963 = vmatpush1.bf16.msra.mxu0 0
        %2964 = vmatprep.mubr.bf16.mxu0 0
        %2965 = vmatmul.mubr.bf16.gmra.mrb[0].mxu0 %v2043
        %v2966 = vpop.f32.mrb[0].mxu0
        %v2967 = vadd.f32 %v2083, %v2966
        %v2968 = vpop.f32.mrb[0].mxu0
        %v2969 = vadd.f32 %v2087, %v2968
        %v2970 = vpop.f32.mrb[0].mxu0
        %v2971 = vpop.f32.mrb[0].mxu0
        %2972 = vdwg.mxu0
        %2973 = vmatprep.subr.bf16.mxu0 %v2523
        %2974 = vmatpush1.bf16.msra.mxu0 %v2522
        %2975 = vmatprep.subr.bf16.mxu0 %v2539
        %2976 = vmatpush1.bf16.msra.mxu0 %v2538
        %2977 = vmatprep.subr.bf16.mxu0 %v2555
        %2978 = vmatpush1.bf16.msra.mxu0 %v2554
        %2979 = vmatprep.subr.bf16.mxu0 %v2571
        %2980 = vmatpush1.bf16.msra.mxu0 %v2570
        %2981 = vmatprep.subr.bf16.mxu0 %v2587
        %2982 = vmatpush1.bf16.msra.mxu0 %v2586
        %2983 = vmatprep.subr.bf16.mxu0 %v2603
        %2984 = vmatpush1.bf16.msra.mxu0 %v2602
        %2985 = vmatprep.subr.bf16.mxu0 %v2619
        %2986 = vmatpush1.bf16.msra.mxu0 %v2618
        %2987 = vmatprep.subr.bf16.mxu0 %v2635
        %2988 = vmatpush1.bf16.msra.mxu0 %v2634
        %2989 = vmatprep.subr.bf16.mxu0 0
        %2990 = vmatpush1.bf16.msra.mxu0 0
        %2991 = vmatprep.subr.bf16.mxu0 0
        %2992 = vmatpush1.bf16.msra.mxu0 0
        %2993 = vmatprep.subr.bf16.mxu0 0
        %2994 = vmatpush1.bf16.msra.mxu0 0
        %2995 = vmatprep.subr.bf16.mxu0 0
        %2996 = vmatpush1.bf16.msra.mxu0 0
        %2997 = vmatprep.subr.bf16.mxu0 0
        %2998 = vmatpush1.bf16.msra.mxu0 0
        %2999 = vmatprep.subr.bf16.mxu0 0
        %3000 = vmatpush1.bf16.msra.mxu0 0
        %3001 = vmatprep.subr.bf16.mxu0 0
        %3002 = vmatpush1.bf16.msra.mxu0 0
        %3003 = vmatprep.subr.bf16.mxu0 0
        %3004 = vmatpush1.bf16.msra.mxu0 0
        %3005 = vmatprep.mubr.bf16.mxu0 0
        %3006 = vmatmul.mubr.bf16.gmra.mrb[0].mxu0 %v2043
        %v3007 = vpop.f32.mrb[0].mxu0
        %v3008 = vadd.f32 %v2091, %v3007
        %v3009 = vpop.f32.mrb[0].mxu0
        %v3010 = vadd.f32 %v2095, %v3009
        %v3011 = vpop.f32.mrb[0].mxu0
        %v3012 = vpop.f32.mrb[0].mxu0
        %3013 = vdwg.mxu0
        %3014 = vmatprep.subr.bf16.mxu0 %v2525
        %3015 = vmatpush1.bf16.msra.mxu0 %v2524
        %3016 = vmatprep.subr.bf16.mxu0 %v2541
        %3017 = vmatpush1.bf16.msra.mxu0 %v2540
        %3018 = vmatprep.subr.bf16.mxu0 %v2557
        %3019 = vmatpush1.bf16.msra.mxu0 %v2556
        %3020 = vmatprep.subr.bf16.mxu0 %v2573
        %3021 = vmatpush1.bf16.msra.mxu0 %v2572
        %3022 = vmatprep.subr.bf16.mxu0 %v2589
        %3023 = vmatpush1.bf16.msra.mxu0 %v2588
        %3024 = vmatprep.subr.bf16.mxu0 %v2605
        %3025 = vmatpush1.bf16.msra.mxu0 %v2604
        %3026 = vmatprep.subr.bf16.mxu0 %v2621
        %3027 = vmatpush1.bf16.msra.mxu0 %v2620
        %3028 = vmatprep.subr.bf16.mxu0 %v2637
        %3029 = vmatpush1.bf16.msra.mxu0 %v2636
        %3030 = vmatprep.subr.bf16.mxu0 0
        %3031 = vmatpush1.bf16.msra.mxu0 0
        %3032 = vmatprep.subr.bf16.mxu0 0
        %3033 = vmatpush1.bf16.msra.mxu0 0
        %3034 = vmatprep.subr.bf16.mxu0 0
        %3035 = vmatpush1.bf16.msra.mxu0 0
        %3036 = vmatprep.subr.bf16.mxu0 0
        %3037 = vmatpush1.bf16.msra.mxu0 0
        %3038 = vmatprep.subr.bf16.mxu0 0
        %3039 = vmatpush1.bf16.msra.mxu0 0
        %3040 = vmatprep.subr.bf16.mxu0 0
        %3041 = vmatpush1.bf16.msra.mxu0 0
        %3042 = vmatprep.subr.bf16.mxu0 0
        %3043 = vmatpush1.bf16.msra.mxu0 0
        %3044 = vmatprep.subr.bf16.mxu0 0
        %3045 = vmatpush1.bf16.msra.mxu0 0
        %3046 = vmatprep.mubr.bf16.mxu0 0
        %3047 = vmatmul.mubr.bf16.gmra.mrb[0].mxu0 %v2043
        %v3048 = vpop.f32.mrb[0].mxu0
        %v3049 = vadd.f32 %v2099, %v3048
        %v3050 = vpop.f32.mrb[0].mxu0
        %v3051 = vadd.f32 %v2103, %v3050
        %v3052 = vpop.f32.mrb[0].mxu0
        %v3053 = vpop.f32.mrb[0].mxu0
        %3054 = vdwg.mxu0
        %3055 = vmatprep.subr.bf16.mxu0 %v2527
        %3056 = vmatpush1.bf16.msra.mxu0 %v2526
        %3057 = vmatprep.subr.bf16.mxu0 %v2543
        %3058 = vmatpush1.bf16.msra.mxu0 %v2542
        %3059 = vmatprep.subr.bf16.mxu0 %v2559
        %3060 = vmatpush1.bf16.msra.mxu0 %v2558
        %3061 = vmatprep.subr.bf16.mxu0 %v2575
        %3062 = vmatpush1.bf16.msra.mxu0 %v2574
        %3063 = vmatprep.subr.bf16.mxu0 %v2591
        %3064 = vmatpush1.bf16.msra.mxu0 %v2590
        %3065 = vmatprep.subr.bf16.mxu0 %v2607
        %3066 = vmatpush1.bf16.msra.mxu0 %v2606
        %3067 = vmatprep.subr.bf16.mxu0 %v2623
        %3068 = vmatpush1.bf16.msra.mxu0 %v2622
        %3069 = vmatprep.subr.bf16.mxu0 %v2639
        %3070 = vmatpush1.bf16.msra.mxu0 %v2638
        %3071 = vmatprep.subr.bf16.mxu0 0
        %3072 = vmatpush1.bf16.msra.mxu0 0
        %3073 = vmatprep.subr.bf16.mxu0 0
        %3074 = vmatpush1.bf16.msra.mxu0 0
        %3075 = vmatprep.subr.bf16.mxu0 0
        %3076 = vmatpush1.bf16.msra.mxu0 0
        %3077 = vmatprep.subr.bf16.mxu0 0
        %3078 = vmatpush1.bf16.msra.mxu0 0
        %3079 = vmatprep.subr.bf16.mxu0 0
        %3080 = vmatpush1.bf16.msra.mxu0 0
        %3081 = vmatprep.subr.bf16.mxu0 0
        %3082 = vmatpush1.bf16.msra.mxu0 0
        %3083 = vmatprep.subr.bf16.mxu0 0
        %3084 = vmatpush1.bf16.msra.mxu0 0
        %3085 = vmatprep.subr.bf16.mxu0 0
        %3086 = vmatpush1.bf16.msra.mxu0 0
        %3087 = vmatprep.mubr.bf16.mxu0 0
        %3088 = vmatmul.mubr.bf16.gmra.mrb[0].mxu0 %v2043
        %v3089 = vpop.f32.mrb[0].mxu0
        %v3090 = vadd.f32 %v2107, %v3089
        %v3091 = vpop.f32.mrb[0].mxu0
        %v3092 = vadd.f32 %v2111, %v3091
        %v3093 = vpop.f32.mrb[0].mxu0
        %v3094 = vpop.f32.mrb[0].mxu0
        %3095 = vdwg.mxu0
        %v3096 = vmax.f32 %v2803, 0.0
        %v3097 = vmax.f32 %v2805, 0.0
        %v3098 = vmax.f32 %v2844, 0.0
        %v3099 = vmax.f32 %v2846, 0.0
        %v3100 = vmax.f32 %v2885, 0.0
        %v3101 = vmax.f32 %v2887, 0.0
        %v3102 = vmax.f32 %v2926, 0.0
        %v3103 = vmax.f32 %v2928, 0.0
        %v3104 = vmax.f32 %v2967, 0.0
        %v3105 = vmax.f32 %v2969, 0.0
        %v3106 = vmax.f32 %v3008, 0.0
        %v3107 = vmax.f32 %v3010, 0.0
        %v3108 = vmax.f32 %v3049, 0.0
        %v3109 = vmax.f32 %v3051, 0.0
        %v3110 = vmax.f32 %v3090, 0.0
        %v3111 = vmax.f32 %v3092, 0.0
        %v3112 = vld [vmem:[%s744] sm:$0xf]
        %v3113 = vld [vmem:[%s744 + $0x4] sm:$0xf]
        %v3114 = vld [vmem:[%s744 + $0x8] sm:$0xf]
        %v3115 = vld [vmem:[%s744 + $0xc] sm:$0xf]
        %v3116 = vld [vmem:[%s744 + $0x10] sm:$0xf]
        %v3117 = vld [vmem:[%s744 + $0x14] sm:$0xf]
        %v3118 = vld [vmem:[%s744 + $0x18] sm:$0xf]
        %v3119 = vld [vmem:[%s744 + $0x1c] sm:$0xf]
        %v3120 = vld [vmem:[%s744 + $0x20] sm:$0xf]
        %v3121 = vld [vmem:[%s744 + $0x24] sm:$0xf]
        %v3122 = vld [vmem:[%s744 + $0x28] sm:$0xf]
        %v3123 = vld [vmem:[%s744 + $0x2c] sm:$0xf]
        %v3124 = vld [vmem:[%s744 + $0x30] sm:$0xf]
        %v3125 = vld [vmem:[%s744 + $0x34] sm:$0xf]
        %v3126 = vld [vmem:[%s744 + $0x38] sm:$0xf]
        %v3127 = vld [vmem:[%s744 + $0x3c] sm:$0xf]
        %v3128 = vld [vmem:[%s744 + $0x40] sm:$0xf]
        %v3129 = vld [vmem:[%s744 + $0x44] sm:$0xf]
        %v3130 = vld [vmem:[%s744 + $0x48] sm:$0xf]
        %v3131 = vld [vmem:[%s744 + $0x4c] sm:$0xf]
        %v3132 = vld [vmem:[%s744 + $0x50] sm:$0xf]
        %v3133 = vld [vmem:[%s744 + $0x54] sm:$0xf]
        %v3134 = vld [vmem:[%s744 + $0x58] sm:$0xf]
        %v3135 = vld [vmem:[%s744 + $0x5c] sm:$0xf]
        %v3136 = vld [vmem:[%s744 + $0x60] sm:$0xf]
        %v3137 = vld [vmem:[%s744 + $0x64] sm:$0xf]
        %v3138 = vld [vmem:[%s744 + $0x68] sm:$0xf]
        %v3139 = vld [vmem:[%s744 + $0x6c] sm:$0xf]
        %v3140 = vld [vmem:[%s744 + $0x70] sm:$0xf]
        %v3141 = vld [vmem:[%s744 + $0x74] sm:$0xf]
        %v3142 = vld [vmem:[%s744 + $0x78] sm:$0xf]
        %v3143 = vld [vmem:[%s744 + $0x7c] sm:$0xf]
        %v3144 = vld [vmem:[%s744 + $0x80] sm:$0xf]
        %v3145 = vld [vmem:[%s744 + $0x84] sm:$0xf]
        %v3146 = vld [vmem:[%s744 + $0x88] sm:$0xf]
        %v3147 = vld [vmem:[%s744 + $0x8c] sm:$0xf]
        %v3148 = vld [vmem:[%s744 + $0x90] sm:$0xf]
        %v3149 = vld [vmem:[%s744 + $0x94] sm:$0xf]
        %v3150 = vld [vmem:[%s744 + $0x98] sm:$0xf]
        %v3151 = vld [vmem:[%s744 + $0x9c] sm:$0xf]
        %v3152 = vld [vmem:[%s744 + $0xa0] sm:$0xf]
        %v3153 = vld [vmem:[%s744 + $0xa4] sm:$0xf]
        %v3154 = vld [vmem:[%s744 + $0xa8] sm:$0xf]
        %v3155 = vld [vmem:[%s744 + $0xac] sm:$0xf]
        %v3156 = vld [vmem:[%s744 + $0xb0] sm:$0xf]
        %v3157 = vld [vmem:[%s744 + $0xb4] sm:$0xf]
        %v3158 = vld [vmem:[%s744 + $0xb8] sm:$0xf]
        %v3159 = vld [vmem:[%s744 + $0xbc] sm:$0xf]
        %v3160 = vld [vmem:[%s744 + $0xc0] sm:$0xf]
        %v3161 = vld [vmem:[%s744 + $0xc4] sm:$0xf]
        %v3162 = vld [vmem:[%s744 + $0xc8] sm:$0xf]
        %v3163 = vld [vmem:[%s744 + $0xcc] sm:$0xf]
        %v3164 = vld [vmem:[%s744 + $0xd0] sm:$0xf]
        %v3165 = vld [vmem:[%s744 + $0xd4] sm:$0xf]
        %v3166 = vld [vmem:[%s744 + $0xd8] sm:$0xf]
        %v3167 = vld [vmem:[%s744 + $0xdc] sm:$0xf]
        %v3168 = vld [vmem:[%s744 + $0xe0] sm:$0xf]
        %v3169 = vld [vmem:[%s744 + $0xe4] sm:$0xf]
        %v3170 = vld [vmem:[%s744 + $0xe8] sm:$0xf]
        %v3171 = vld [vmem:[%s744 + $0xec] sm:$0xf]
        %v3172 = vld [vmem:[%s744 + $0xf0] sm:$0xf]
        %v3173 = vld [vmem:[%s744 + $0xf4] sm:$0xf]
        %v3174 = vld [vmem:[%s744 + $0xf8] sm:$0xf]
        %v3175 = vld [vmem:[%s744 + $0xfc] sm:$0xf]
        %v3176 = vld [vmem:[%s744 + $0x100] sm:$0xf]
        %v3177 = vld [vmem:[%s744 + $0x104] sm:$0xf]
        %v3178 = vld [vmem:[%s744 + $0x108] sm:$0xf]
        %v3179 = vld [vmem:[%s744 + $0x10c] sm:$0xf]
        %v3180 = vld [vmem:[%s744 + $0x110] sm:$0xf]
        %v3181 = vld [vmem:[%s744 + $0x114] sm:$0xf]
        %v3182 = vld [vmem:[%s744 + $0x118] sm:$0xf]
        %v3183 = vld [vmem:[%s744 + $0x11c] sm:$0xf]
        %v3184 = vld [vmem:[%s744 + $0x120] sm:$0xf]
        %v3185 = vld [vmem:[%s744 + $0x124] sm:$0xf]
        %v3186 = vld [vmem:[%s744 + $0x128] sm:$0xf]
        %v3187 = vld [vmem:[%s744 + $0x12c] sm:$0xf]
        %v3188 = vld [vmem:[%s744 + $0x130] sm:$0xf]
        %v3189 = vld [vmem:[%s744 + $0x134] sm:$0xf]
        %v3190 = vld [vmem:[%s744 + $0x138] sm:$0xf]
        %v3191 = vld [vmem:[%s744 + $0x13c] sm:$0xf]
        %v3192 = vld [vmem:[%s744 + $0x140] sm:$0xf]
        %v3193 = vld [vmem:[%s744 + $0x144] sm:$0xf]
        %v3194 = vld [vmem:[%s744 + $0x148] sm:$0xf]
        %v3195 = vld [vmem:[%s744 + $0x14c] sm:$0xf]
        %v3196 = vld [vmem:[%s744 + $0x150] sm:$0xf]
        %v3197 = vld [vmem:[%s744 + $0x154] sm:$0xf]
        %v3198 = vld [vmem:[%s744 + $0x158] sm:$0xf]
        %v3199 = vld [vmem:[%s744 + $0x15c] sm:$0xf]
        %v3200 = vld [vmem:[%s744 + $0x160] sm:$0xf]
        %v3201 = vld [vmem:[%s744 + $0x164] sm:$0xf]
        %v3202 = vld [vmem:[%s744 + $0x168] sm:$0xf]
        %v3203 = vld [vmem:[%s744 + $0x16c] sm:$0xf]
        %v3204 = vld [vmem:[%s744 + $0x170] sm:$0xf]
        %v3205 = vld [vmem:[%s744 + $0x174] sm:$0xf]
        %v3206 = vld [vmem:[%s744 + $0x178] sm:$0xf]
        %v3207 = vld [vmem:[%s744 + $0x17c] sm:$0xf]
        %v3208 = vld [vmem:[%s744 + $0x180] sm:$0xf]
        %v3209 = vld [vmem:[%s744 + $0x184] sm:$0xf]
        %v3210 = vld [vmem:[%s744 + $0x188] sm:$0xf]
        %v3211 = vld [vmem:[%s744 + $0x18c] sm:$0xf]
        %v3212 = vld [vmem:[%s744 + $0x190] sm:$0xf]
        %v3213 = vld [vmem:[%s744 + $0x194] sm:$0xf]
        %v3214 = vld [vmem:[%s744 + $0x198] sm:$0xf]
        %v3215 = vld [vmem:[%s744 + $0x19c] sm:$0xf]
        %v3216 = vld [vmem:[%s744 + $0x1a0] sm:$0xf]
        %v3217 = vld [vmem:[%s744 + $0x1a4] sm:$0xf]
        %v3218 = vld [vmem:[%s744 + $0x1a8] sm:$0xf]
        %v3219 = vld [vmem:[%s744 + $0x1ac] sm:$0xf]
        %v3220 = vld [vmem:[%s744 + $0x1b0] sm:$0xf]
        %v3221 = vld [vmem:[%s744 + $0x1b4] sm:$0xf]
        %v3222 = vld [vmem:[%s744 + $0x1b8] sm:$0xf]
        %v3223 = vld [vmem:[%s744 + $0x1bc] sm:$0xf]
        %v3224 = vld [vmem:[%s744 + $0x1c0] sm:$0xf]
        %v3225 = vld [vmem:[%s744 + $0x1c4] sm:$0xf]
        %v3226 = vld [vmem:[%s744 + $0x1c8] sm:$0xf]
        %v3227 = vld [vmem:[%s744 + $0x1cc] sm:$0xf]
        %v3228 = vld [vmem:[%s744 + $0x1d0] sm:$0xf]
        %v3229 = vld [vmem:[%s744 + $0x1d4] sm:$0xf]
        %v3230 = vld [vmem:[%s744 + $0x1d8] sm:$0xf]
        %v3231 = vld [vmem:[%s744 + $0x1dc] sm:$0xf]
        %v3232 = vld [vmem:[%s744 + $0x1e0] sm:$0xf]
        %v3233 = vld [vmem:[%s744 + $0x1e4] sm:$0xf]
        %v3234 = vld [vmem:[%s744 + $0x1e8] sm:$0xf]
        %v3235 = vld [vmem:[%s744 + $0x1ec] sm:$0xf]
        %v3236 = vld [vmem:[%s744 + $0x1f0] sm:$0xf]
        %v3237 = vld [vmem:[%s744 + $0x1f4] sm:$0xf]
        %v3238 = vld [vmem:[%s744 + $0x1f8] sm:$0xf]
        %v3239 = vld [vmem:[%s744 + $0x1fc] sm:$0xf]
        %v3240 = vld [vmem:[%s744 + $0x200] sm:$0xf]
        %v3241 = vld [vmem:[%s744 + $0x204] sm:$0xf]
        %v3242 = vld [vmem:[%s744 + $0x208] sm:$0xf]
        %v3243 = vld [vmem:[%s744 + $0x20c] sm:$0xf]
        %v3244 = vld [vmem:[%s744 + $0x210] sm:$0xf]
        %v3245 = vld [vmem:[%s744 + $0x214] sm:$0xf]
        %v3246 = vld [vmem:[%s744 + $0x218] sm:$0xf]
        %v3247 = vld [vmem:[%s744 + $0x21c] sm:$0xf]
        %v3248 = vld [vmem:[%s744 + $0x220] sm:$0xf]
        %v3249 = vld [vmem:[%s744 + $0x224] sm:$0xf]
        %v3250 = vld [vmem:[%s744 + $0x228] sm:$0xf]
        %v3251 = vld [vmem:[%s744 + $0x22c] sm:$0xf]
        %v3252 = vld [vmem:[%s744 + $0x230] sm:$0xf]
        %v3253 = vld [vmem:[%s744 + $0x234] sm:$0xf]
        %v3254 = vld [vmem:[%s744 + $0x238] sm:$0xf]
        %v3255 = vld [vmem:[%s744 + $0x23c] sm:$0xf]
        %v3256 = vld [vmem:[%s744 + $0x240] sm:$0xf]
        %v3257 = vld [vmem:[%s744 + $0x244] sm:$0xf]
        %v3258 = vld [vmem:[%s744 + $0x248] sm:$0xf]
        %v3259 = vld [vmem:[%s744 + $0x24c] sm:$0xf]
        %v3260 = vld [vmem:[%s744 + $0x250] sm:$0xf]
        %v3261 = vld [vmem:[%s744 + $0x254] sm:$0xf]
        %v3262 = vld [vmem:[%s744 + $0x258] sm:$0xf]
        %v3263 = vld [vmem:[%s744 + $0x25c] sm:$0xf]
        %v3264 = vld [vmem:[%s744 + $0x260] sm:$0xf]
        %v3265 = vld [vmem:[%s744 + $0x264] sm:$0xf]
        %v3266 = vld [vmem:[%s744 + $0x268] sm:$0xf]
        %v3267 = vld [vmem:[%s744 + $0x26c] sm:$0xf]
        %v3268 = vld [vmem:[%s744 + $0x270] sm:$0xf]
        %v3269 = vld [vmem:[%s744 + $0x274] sm:$0xf]
        %v3270 = vld [vmem:[%s744 + $0x278] sm:$0xf]
        %v3271 = vld [vmem:[%s744 + $0x27c] sm:$0xf]
        %v3272 = vld [vmem:[%s744 + $0x280] sm:$0xf]
        %v3273 = vld [vmem:[%s744 + $0x284] sm:$0xf]
        %v3274 = vld [vmem:[%s744 + $0x288] sm:$0xf]
        %v3275 = vld [vmem:[%s744 + $0x28c] sm:$0xf]
        %v3276 = vld [vmem:[%s744 + $0x290] sm:$0xf]
        %v3277 = vld [vmem:[%s744 + $0x294] sm:$0xf]
        %v3278 = vld [vmem:[%s744 + $0x298] sm:$0xf]
        %v3279 = vld [vmem:[%s744 + $0x29c] sm:$0xf]
        %v3280 = vld [vmem:[%s744 + $0x2a0] sm:$0xf]
        %v3281 = vld [vmem:[%s744 + $0x2a4] sm:$0xf]
        %v3282 = vld [vmem:[%s744 + $0x2a8] sm:$0xf]
        %v3283 = vld [vmem:[%s744 + $0x2ac] sm:$0xf]
        %v3284 = vld [vmem:[%s744 + $0x2b0] sm:$0xf]
        %v3285 = vld [vmem:[%s744 + $0x2b4] sm:$0xf]
        %v3286 = vld [vmem:[%s744 + $0x2b8] sm:$0xf]
        %v3287 = vld [vmem:[%s744 + $0x2bc] sm:$0xf]
        %v3288 = vld [vmem:[%s744 + $0x2c0] sm:$0xf]
        %v3289 = vld [vmem:[%s744 + $0x2c4] sm:$0xf]
        %v3290 = vld [vmem:[%s744 + $0x2c8] sm:$0xf]
        %v3291 = vld [vmem:[%s744 + $0x2cc] sm:$0xf]
        %v3292 = vld [vmem:[%s744 + $0x2d0] sm:$0xf]
        %v3293 = vld [vmem:[%s744 + $0x2d4] sm:$0xf]
        %v3294 = vld [vmem:[%s744 + $0x2d8] sm:$0xf]
        %v3295 = vld [vmem:[%s744 + $0x2dc] sm:$0xf]
        %v3296 = vld [vmem:[%s744 + $0x2e0] sm:$0xf]
        %v3297 = vld [vmem:[%s744 + $0x2e4] sm:$0xf]
        %v3298 = vld [vmem:[%s744 + $0x2e8] sm:$0xf]
        %v3299 = vld [vmem:[%s744 + $0x2ec] sm:$0xf]
        %v3300 = vld [vmem:[%s744 + $0x2f0] sm:$0xf]
        %v3301 = vld [vmem:[%s744 + $0x2f4] sm:$0xf]
        %v3302 = vld [vmem:[%s744 + $0x2f8] sm:$0xf]
        %v3303 = vld [vmem:[%s744 + $0x2fc] sm:$0xf]
        %v3304 = vld [vmem:[%s744 + $0x300] sm:$0xf]
        %v3305 = vld [vmem:[%s744 + $0x304] sm:$0xf]
        %v3306 = vld [vmem:[%s744 + $0x308] sm:$0xf]
        %v3307 = vld [vmem:[%s744 + $0x30c] sm:$0xf]
        %v3308 = vld [vmem:[%s744 + $0x310] sm:$0xf]
        %v3309 = vld [vmem:[%s744 + $0x314] sm:$0xf]
        %v3310 = vld [vmem:[%s744 + $0x318] sm:$0xf]
        %v3311 = vld [vmem:[%s744 + $0x31c] sm:$0xf]
        %v3312 = vld [vmem:[%s744 + $0x320] sm:$0xf]
        %v3313 = vld [vmem:[%s744 + $0x324] sm:$0xf]
        %v3314 = vld [vmem:[%s744 + $0x328] sm:$0xf]
        %v3315 = vld [vmem:[%s744 + $0x32c] sm:$0xf]
        %v3316 = vld [vmem:[%s744 + $0x330] sm:$0xf]
        %v3317 = vld [vmem:[%s744 + $0x334] sm:$0xf]
        %v3318 = vld [vmem:[%s744 + $0x338] sm:$0xf]
        %v3319 = vld [vmem:[%s744 + $0x33c] sm:$0xf]
        %v3320 = vld [vmem:[%s744 + $0x340] sm:$0xf]
        %v3321 = vld [vmem:[%s744 + $0x344] sm:$0xf]
        %v3322 = vld [vmem:[%s744 + $0x348] sm:$0xf]
        %v3323 = vld [vmem:[%s744 + $0x34c] sm:$0xf]
        %v3324 = vld [vmem:[%s744 + $0x350] sm:$0xf]
        %v3325 = vld [vmem:[%s744 + $0x354] sm:$0xf]
        %v3326 = vld [vmem:[%s744 + $0x358] sm:$0xf]
        %v3327 = vld [vmem:[%s744 + $0x35c] sm:$0xf]
        %v3328 = vld [vmem:[%s744 + $0x360] sm:$0xf]
        %v3329 = vld [vmem:[%s744 + $0x364] sm:$0xf]
        %v3330 = vld [vmem:[%s744 + $0x368] sm:$0xf]
        %v3331 = vld [vmem:[%s744 + $0x36c] sm:$0xf]
        %v3332 = vld [vmem:[%s744 + $0x370] sm:$0xf]
        %v3333 = vld [vmem:[%s744 + $0x374] sm:$0xf]
        %v3334 = vld [vmem:[%s744 + $0x378] sm:$0xf]
        %v3335 = vld [vmem:[%s744 + $0x37c] sm:$0xf]
        %v3336 = vld [vmem:[%s744 + $0x380] sm:$0xf]
        %v3337 = vld [vmem:[%s744 + $0x384] sm:$0xf]
        %v3338 = vld [vmem:[%s744 + $0x388] sm:$0xf]
        %v3339 = vld [vmem:[%s744 + $0x38c] sm:$0xf]
        %v3340 = vld [vmem:[%s744 + $0x390] sm:$0xf]
        %v3341 = vld [vmem:[%s744 + $0x394] sm:$0xf]
        %v3342 = vld [vmem:[%s744 + $0x398] sm:$0xf]
        %v3343 = vld [vmem:[%s744 + $0x39c] sm:$0xf]
        %v3344 = vld [vmem:[%s744 + $0x3a0] sm:$0xf]
        %v3345 = vld [vmem:[%s744 + $0x3a4] sm:$0xf]
        %v3346 = vld [vmem:[%s744 + $0x3a8] sm:$0xf]
        %v3347 = vld [vmem:[%s744 + $0x3ac] sm:$0xf]
        %v3348 = vld [vmem:[%s744 + $0x3b0] sm:$0xf]
        %v3349 = vld [vmem:[%s744 + $0x3b4] sm:$0xf]
        %v3350 = vld [vmem:[%s744 + $0x3b8] sm:$0xf]
        %v3351 = vld [vmem:[%s744 + $0x3bc] sm:$0xf]
        %v3352 = vld [vmem:[%s744 + $0x3c0] sm:$0xf]
        %v3353 = vld [vmem:[%s744 + $0x3c4] sm:$0xf]
        %v3354 = vld [vmem:[%s744 + $0x3c8] sm:$0xf]
        %v3355 = vld [vmem:[%s744 + $0x3cc] sm:$0xf]
        %v3356 = vld [vmem:[%s744 + $0x3d0] sm:$0xf]
        %v3357 = vld [vmem:[%s744 + $0x3d4] sm:$0xf]
        %v3358 = vld [vmem:[%s744 + $0x3d8] sm:$0xf]
        %v3359 = vld [vmem:[%s744 + $0x3dc] sm:$0xf]
        %v3360 = vld [vmem:[%s744 + $0x3e0] sm:$0xf]
        %v3361 = vld [vmem:[%s744 + $0x3e4] sm:$0xf]
        %v3362 = vld [vmem:[%s744 + $0x3e8] sm:$0xf]
        %v3363 = vld [vmem:[%s744 + $0x3ec] sm:$0xf]
        %v3364 = vld [vmem:[%s744 + $0x3f0] sm:$0xf]
        %v3365 = vld [vmem:[%s744 + $0x3f4] sm:$0xf]
        %v3366 = vld [vmem:[%s744 + $0x3f8] sm:$0xf]
        %v3367 = vld [vmem:[%s744 + $0x3fc] sm:$0xf]
        %v3368 = vpack.c.bf16 %v3096, %v3096
        %v3369 = vpack.c.bf16 %v3097, %v3097
        %v3370 = vpack.c.bf16 %v3098, %v3098
        %v3371 = vpack.c.bf16 %v3099, %v3099
        %v3372 = vpack.c.bf16 %v3100, %v3100
        %v3373 = vpack.c.bf16 %v3101, %v3101
        %v3374 = vpack.c.bf16 %v3102, %v3102
        %v3375 = vpack.c.bf16 %v3103, %v3103
        %v3376 = vpack.c.bf16 %v3104, %v3104
        %v3377 = vpack.c.bf16 %v3105, %v3105
        %v3378 = vpack.c.bf16 %v3106, %v3106
        %v3379 = vpack.c.bf16 %v3107, %v3107
        %v3380 = vpack.c.bf16 %v3108, %v3108
        %v3381 = vpack.c.bf16 %v3109, %v3109
        %v3382 = vpack.c.bf16 %v3110, %v3110
        %v3383 = vpack.c.bf16 %v3111, %v3111
        %v3384 = vld [vmem:[%s856] sm:$0x1]
        %v3386 = vlaneseq
        %v3387 = vshrl.u32 %v3386, 7
        %v3388 = vsub.s32 0, %v3387
        %v3389 = vrot.slane %v3384, %v3388
        %v3647 = vunpack.c.l.b16 %v3112
        %v3648 = vunpack.c.l.b16 %v3113
        %v3649 = vunpack.c.l.b16 %v3114
        %v3650 = vunpack.c.l.b16 %v3115
        %v3651 = vunpack.c.l.b16 %v3116
        %v3652 = vunpack.c.l.b16 %v3117
        %v3653 = vunpack.c.l.b16 %v3118
        %v3654 = vunpack.c.l.b16 %v3119
        %v3655 = vunpack.c.l.b16 %v3120
        %v3656 = vunpack.c.l.b16 %v3121
        %v3657 = vunpack.c.l.b16 %v3122
        %v3658 = vunpack.c.l.b16 %v3123
        %v3659 = vunpack.c.l.b16 %v3124
        %v3660 = vunpack.c.l.b16 %v3125
        %v3661 = vunpack.c.l.b16 %v3126
        %v3662 = vunpack.c.l.b16 %v3127
        %v3663 = vunpack.c.l.b16 %v3128
        %v3664 = vunpack.c.l.b16 %v3129
        %v3665 = vunpack.c.l.b16 %v3130
        %v3666 = vunpack.c.l.b16 %v3131
        %v3667 = vunpack.c.l.b16 %v3132
        %v3668 = vunpack.c.l.b16 %v3133
        %v3669 = vunpack.c.l.b16 %v3134
        %v3670 = vunpack.c.l.b16 %v3135
        %v3671 = vunpack.c.l.b16 %v3136
        %v3672 = vunpack.c.l.b16 %v3137
        %v3673 = vunpack.c.l.b16 %v3138
        %v3674 = vunpack.c.l.b16 %v3139
        %v3675 = vunpack.c.l.b16 %v3140
        %v3676 = vunpack.c.l.b16 %v3141
        %v3677 = vunpack.c.l.b16 %v3142
        %v3678 = vunpack.c.l.b16 %v3143
        %v3679 = vunpack.c.l.b16 %v3144
        %v3680 = vunpack.c.l.b16 %v3145
        %v3681 = vunpack.c.l.b16 %v3146
        %v3682 = vunpack.c.l.b16 %v3147
        %v3683 = vunpack.c.l.b16 %v3148
        %v3684 = vunpack.c.l.b16 %v3149
        %v3685 = vunpack.c.l.b16 %v3150
        %v3686 = vunpack.c.l.b16 %v3151
        %v3687 = vunpack.c.l.b16 %v3152
        %v3688 = vunpack.c.l.b16 %v3153
        %v3689 = vunpack.c.l.b16 %v3154
        %v3690 = vunpack.c.l.b16 %v3155
        %v3691 = vunpack.c.l.b16 %v3156
        %v3692 = vunpack.c.l.b16 %v3157
        %v3693 = vunpack.c.l.b16 %v3158
        %v3694 = vunpack.c.l.b16 %v3159
        %v3695 = vunpack.c.l.b16 %v3160
        %v3696 = vunpack.c.l.b16 %v3161
        %v3697 = vunpack.c.l.b16 %v3162
        %v3698 = vunpack.c.l.b16 %v3163
        %v3699 = vunpack.c.l.b16 %v3164
        %v3700 = vunpack.c.l.b16 %v3165
        %v3701 = vunpack.c.l.b16 %v3166
        %v3702 = vunpack.c.l.b16 %v3167
        %v3703 = vunpack.c.l.b16 %v3168
        %v3704 = vunpack.c.l.b16 %v3169
        %v3705 = vunpack.c.l.b16 %v3170
        %v3706 = vunpack.c.l.b16 %v3171
        %v3707 = vunpack.c.l.b16 %v3172
        %v3708 = vunpack.c.l.b16 %v3173
        %v3709 = vunpack.c.l.b16 %v3174
        %v3710 = vunpack.c.l.b16 %v3175
        %v3711 = vunpack.c.l.b16 %v3176
        %v3712 = vunpack.c.l.b16 %v3177
        %v3713 = vunpack.c.l.b16 %v3178
        %v3714 = vunpack.c.l.b16 %v3179
        %v3715 = vunpack.c.l.b16 %v3180
        %v3716 = vunpack.c.l.b16 %v3181
        %v3717 = vunpack.c.l.b16 %v3182
        %v3718 = vunpack.c.l.b16 %v3183
        %v3719 = vunpack.c.l.b16 %v3184
        %v3720 = vunpack.c.l.b16 %v3185
        %v3721 = vunpack.c.l.b16 %v3186
        %v3722 = vunpack.c.l.b16 %v3187
        %v3723 = vunpack.c.l.b16 %v3188
        %v3724 = vunpack.c.l.b16 %v3189
        %v3725 = vunpack.c.l.b16 %v3190
        %v3726 = vunpack.c.l.b16 %v3191
        %v3727 = vunpack.c.l.b16 %v3192
        %v3728 = vunpack.c.l.b16 %v3193
        %v3729 = vunpack.c.l.b16 %v3194
        %v3730 = vunpack.c.l.b16 %v3195
        %v3731 = vunpack.c.l.b16 %v3196
        %v3732 = vunpack.c.l.b16 %v3197
        %v3733 = vunpack.c.l.b16 %v3198
        %v3734 = vunpack.c.l.b16 %v3199
        %v3735 = vunpack.c.l.b16 %v3200
        %v3736 = vunpack.c.l.b16 %v3201
        %v3737 = vunpack.c.l.b16 %v3202
        %v3738 = vunpack.c.l.b16 %v3203
        %v3739 = vunpack.c.l.b16 %v3204
        %v3740 = vunpack.c.l.b16 %v3205
        %v3741 = vunpack.c.l.b16 %v3206
        %v3742 = vunpack.c.l.b16 %v3207
        %v3743 = vunpack.c.l.b16 %v3208
        %v3744 = vunpack.c.l.b16 %v3209
        %v3745 = vunpack.c.l.b16 %v3210
        %v3746 = vunpack.c.l.b16 %v3211
        %v3747 = vunpack.c.l.b16 %v3212
        %v3748 = vunpack.c.l.b16 %v3213
        %v3749 = vunpack.c.l.b16 %v3214
        %v3750 = vunpack.c.l.b16 %v3215
        %v3751 = vunpack.c.l.b16 %v3216
        %v3752 = vunpack.c.l.b16 %v3217
        %v3753 = vunpack.c.l.b16 %v3218
        %v3754 = vunpack.c.l.b16 %v3219
        %v3755 = vunpack.c.l.b16 %v3220
        %v3756 = vunpack.c.l.b16 %v3221
        %v3757 = vunpack.c.l.b16 %v3222
        %v3758 = vunpack.c.l.b16 %v3223
        %v3759 = vunpack.c.l.b16 %v3224
        %v3760 = vunpack.c.l.b16 %v3225
        %v3761 = vunpack.c.l.b16 %v3226
        %v3762 = vunpack.c.l.b16 %v3227
        %v3763 = vunpack.c.l.b16 %v3228
        %v3764 = vunpack.c.l.b16 %v3229
        %v3765 = vunpack.c.l.b16 %v3230
        %v3766 = vunpack.c.l.b16 %v3231
        %v3767 = vunpack.c.l.b16 %v3232
        %v3768 = vunpack.c.l.b16 %v3233
        %v3769 = vunpack.c.l.b16 %v3234
        %v3770 = vunpack.c.l.b16 %v3235
        %v3771 = vunpack.c.l.b16 %v3236
        %v3772 = vunpack.c.l.b16 %v3237
        %v3773 = vunpack.c.l.b16 %v3238
        %v3774 = vunpack.c.l.b16 %v3239
        %v3775 = vunpack.c.l.b16 %v3240
        %v3776 = vunpack.c.l.b16 %v3241
        %v3777 = vunpack.c.l.b16 %v3242
        %v3778 = vunpack.c.l.b16 %v3243
        %v3779 = vunpack.c.l.b16 %v3244
        %v3780 = vunpack.c.l.b16 %v3245
        %v3781 = vunpack.c.l.b16 %v3246
        %v3782 = vunpack.c.l.b16 %v3247
        %v3783 = vunpack.c.l.b16 %v3248
        %v3784 = vunpack.c.l.b16 %v3249
        %v3785 = vunpack.c.l.b16 %v3250
        %v3786 = vunpack.c.l.b16 %v3251
        %v3787 = vunpack.c.l.b16 %v3252
        %v3788 = vunpack.c.l.b16 %v3253
        %v3789 = vunpack.c.l.b16 %v3254
        %v3790 = vunpack.c.l.b16 %v3255
        %v3791 = vunpack.c.l.b16 %v3256
        %v3792 = vunpack.c.l.b16 %v3257
        %v3793 = vunpack.c.l.b16 %v3258
        %v3794 = vunpack.c.l.b16 %v3259
        %v3795 = vunpack.c.l.b16 %v3260
        %v3796 = vunpack.c.l.b16 %v3261
        %v3797 = vunpack.c.l.b16 %v3262
        %v3798 = vunpack.c.l.b16 %v3263
        %v3799 = vunpack.c.l.b16 %v3264
        %v3800 = vunpack.c.l.b16 %v3265
        %v3801 = vunpack.c.l.b16 %v3266
        %v3802 = vunpack.c.l.b16 %v3267
        %v3803 = vunpack.c.l.b16 %v3268
        %v3804 = vunpack.c.l.b16 %v3269
        %v3805 = vunpack.c.l.b16 %v3270
        %v3806 = vunpack.c.l.b16 %v3271
        %v3807 = vunpack.c.l.b16 %v3272
        %v3808 = vunpack.c.l.b16 %v3273
        %v3809 = vunpack.c.l.b16 %v3274
        %v3810 = vunpack.c.l.b16 %v3275
        %v3811 = vunpack.c.l.b16 %v3276
        %v3812 = vunpack.c.l.b16 %v3277
        %v3813 = vunpack.c.l.b16 %v3278
        %v3814 = vunpack.c.l.b16 %v3279
        %v3815 = vunpack.c.l.b16 %v3280
        %v3816 = vunpack.c.l.b16 %v3281
        %v3817 = vunpack.c.l.b16 %v3282
        %v3818 = vunpack.c.l.b16 %v3283
        %v3819 = vunpack.c.l.b16 %v3284
        %v3820 = vunpack.c.l.b16 %v3285
        %v3821 = vunpack.c.l.b16 %v3286
        %v3822 = vunpack.c.l.b16 %v3287
        %v3823 = vunpack.c.l.b16 %v3288
        %v3824 = vunpack.c.l.b16 %v3289
        %v3825 = vunpack.c.l.b16 %v3290
        %v3826 = vunpack.c.l.b16 %v3291
        %v3827 = vunpack.c.l.b16 %v3292
        %v3828 = vunpack.c.l.b16 %v3293
        %v3829 = vunpack.c.l.b16 %v3294
        %v3830 = vunpack.c.l.b16 %v3295
        %v3831 = vunpack.c.l.b16 %v3296
        %v3832 = vunpack.c.l.b16 %v3297
        %v3833 = vunpack.c.l.b16 %v3298
        %v3834 = vunpack.c.l.b16 %v3299
        %v3835 = vunpack.c.l.b16 %v3300
        %v3836 = vunpack.c.l.b16 %v3301
        %v3837 = vunpack.c.l.b16 %v3302
        %v3838 = vunpack.c.l.b16 %v3303
        %v3839 = vunpack.c.l.b16 %v3304
        %v3840 = vunpack.c.l.b16 %v3305
        %v3841 = vunpack.c.l.b16 %v3306
        %v3842 = vunpack.c.l.b16 %v3307
        %v3843 = vunpack.c.l.b16 %v3308
        %v3844 = vunpack.c.l.b16 %v3309
        %v3845 = vunpack.c.l.b16 %v3310
        %v3846 = vunpack.c.l.b16 %v3311
        %v3847 = vunpack.c.l.b16 %v3312
        %v3848 = vunpack.c.l.b16 %v3313
        %v3849 = vunpack.c.l.b16 %v3314
        %v3850 = vunpack.c.l.b16 %v3315
        %v3851 = vunpack.c.l.b16 %v3316
        %v3852 = vunpack.c.l.b16 %v3317
        %v3853 = vunpack.c.l.b16 %v3318
        %v3854 = vunpack.c.l.b16 %v3319
        %v3855 = vunpack.c.l.b16 %v3320
        %v3856 = vunpack.c.l.b16 %v3321
        %v3857 = vunpack.c.l.b16 %v3322
        %v3858 = vunpack.c.l.b16 %v3323
        %v3859 = vunpack.c.l.b16 %v3324
        %v3860 = vunpack.c.l.b16 %v3325
        %v3861 = vunpack.c.l.b16 %v3326
        %v3862 = vunpack.c.l.b16 %v3327
        %v3863 = vunpack.c.l.b16 %v3328
        %v3864 = vunpack.c.l.b16 %v3329
        %v3865 = vunpack.c.l.b16 %v3330
        %v3866 = vunpack.c.l.b16 %v3331
        %v3867 = vunpack.c.l.b16 %v3332
        %v3868 = vunpack.c.l.b16 %v3333
        %v3869 = vunpack.c.l.b16 %v3334
        %v3870 = vunpack.c.l.b16 %v3335
        %v3871 = vunpack.c.l.b16 %v3336
        %v3872 = vunpack.c.l.b16 %v3337
        %v3873 = vunpack.c.l.b16 %v3338
        %v3874 = vunpack.c.l.b16 %v3339
        %v3875 = vunpack.c.l.b16 %v3340
        %v3876 = vunpack.c.l.b16 %v3341
        %v3877 = vunpack.c.l.b16 %v3342
        %v3878 = vunpack.c.l.b16 %v3343
        %v3879 = vunpack.c.l.b16 %v3344
        %v3880 = vunpack.c.l.b16 %v3345
        %v3881 = vunpack.c.l.b16 %v3346
        %v3882 = vunpack.c.l.b16 %v3347
        %v3883 = vunpack.c.l.b16 %v3348
        %v3884 = vunpack.c.l.b16 %v3349
        %v3885 = vunpack.c.l.b16 %v3350
        %v3886 = vunpack.c.l.b16 %v3351
        %v3887 = vunpack.c.l.b16 %v3352
        %v3888 = vunpack.c.l.b16 %v3353
        %v3889 = vunpack.c.l.b16 %v3354
        %v3890 = vunpack.c.l.b16 %v3355
        %v3891 = vunpack.c.l.b16 %v3356
        %v3892 = vunpack.c.l.b16 %v3357
        %v3893 = vunpack.c.l.b16 %v3358
        %v3894 = vunpack.c.l.b16 %v3359
        %v3895 = vunpack.c.l.b16 %v3360
        %v3896 = vunpack.c.l.b16 %v3361
        %v3897 = vunpack.c.l.b16 %v3362
        %v3898 = vunpack.c.l.b16 %v3363
        %v3899 = vunpack.c.l.b16 %v3364
        %v3900 = vunpack.c.l.b16 %v3365
        %v3901 = vunpack.c.l.b16 %v3366
        %v3902 = vunpack.c.l.b16 %v3367
        %v3903 = vpack.c.b16 %v3648, %v3647
        %v3904 = vpack.c.b16 %v3650, %v3649
        %v3905 = vpack.c.b16 %v3652, %v3651
        %v3906 = vpack.c.b16 %v3654, %v3653
        %v3907 = vpack.c.b16 %v3656, %v3655
        %v3908 = vpack.c.b16 %v3658, %v3657
        %v3909 = vpack.c.b16 %v3660, %v3659
        %v3910 = vpack.c.b16 %v3662, %v3661
        %v3911 = vpack.c.b16 %v3664, %v3663
        %v3912 = vpack.c.b16 %v3666, %v3665
        %v3913 = vpack.c.b16 %v3668, %v3667
        %v3914 = vpack.c.b16 %v3670, %v3669
        %v3915 = vpack.c.b16 %v3672, %v3671
        %v3916 = vpack.c.b16 %v3674, %v3673
        %v3917 = vpack.c.b16 %v3676, %v3675
        %v3918 = vpack.c.b16 %v3678, %v3677
        %v3919 = vpack.c.b16 %v3680, %v3679
        %v3920 = vpack.c.b16 %v3682, %v3681
        %v3921 = vpack.c.b16 %v3684, %v3683
        %v3922 = vpack.c.b16 %v3686, %v3685
        %v3923 = vpack.c.b16 %v3688, %v3687
        %v3924 = vpack.c.b16 %v3690, %v3689
        %v3925 = vpack.c.b16 %v3692, %v3691
        %v3926 = vpack.c.b16 %v3694, %v3693
        %v3927 = vpack.c.b16 %v3696, %v3695
        %v3928 = vpack.c.b16 %v3698, %v3697
        %v3929 = vpack.c.b16 %v3700, %v3699
        %v3930 = vpack.c.b16 %v3702, %v3701
        %v3931 = vpack.c.b16 %v3704, %v3703
        %v3932 = vpack.c.b16 %v3706, %v3705
        %v3933 = vpack.c.b16 %v3708, %v3707
        %v3934 = vpack.c.b16 %v3710, %v3709
        %v3935 = vpack.c.b16 %v3712, %v3711
        %v3936 = vpack.c.b16 %v3714, %v3713
        %v3937 = vpack.c.b16 %v3716, %v3715
        %v3938 = vpack.c.b16 %v3718, %v3717
        %v3939 = vpack.c.b16 %v3720, %v3719
        %v3940 = vpack.c.b16 %v3722, %v3721
        %v3941 = vpack.c.b16 %v3724, %v3723
        %v3942 = vpack.c.b16 %v3726, %v3725
        %v3943 = vpack.c.b16 %v3728, %v3727
        %v3944 = vpack.c.b16 %v3730, %v3729
        %v3945 = vpack.c.b16 %v3732, %v3731
        %v3946 = vpack.c.b16 %v3734, %v3733
        %v3947 = vpack.c.b16 %v3736, %v3735
        %v3948 = vpack.c.b16 %v3738, %v3737
        %v3949 = vpack.c.b16 %v3740, %v3739
        %v3950 = vpack.c.b16 %v3742, %v3741
        %v3951 = vpack.c.b16 %v3744, %v3743
        %v3952 = vpack.c.b16 %v3746, %v3745
        %v3953 = vpack.c.b16 %v3748, %v3747
        %v3954 = vpack.c.b16 %v3750, %v3749
        %v3955 = vpack.c.b16 %v3752, %v3751
        %v3956 = vpack.c.b16 %v3754, %v3753
        %v3957 = vpack.c.b16 %v3756, %v3755
        %v3958 = vpack.c.b16 %v3758, %v3757
        %v3959 = vpack.c.b16 %v3760, %v3759
        %v3960 = vpack.c.b16 %v3762, %v3761
        %v3961 = vpack.c.b16 %v3764, %v3763
        %v3962 = vpack.c.b16 %v3766, %v3765
        %v3963 = vpack.c.b16 %v3768, %v3767
        %v3964 = vpack.c.b16 %v3770, %v3769
        %v3965 = vpack.c.b16 %v3772, %v3771
        %v3966 = vpack.c.b16 %v3774, %v3773
        %v3967 = vpack.c.b16 %v3776, %v3775
        %v3968 = vpack.c.b16 %v3778, %v3777
        %v3969 = vpack.c.b16 %v3780, %v3779
        %v3970 = vpack.c.b16 %v3782, %v3781
        %v3971 = vpack.c.b16 %v3784, %v3783
        %v3972 = vpack.c.b16 %v3786, %v3785
        %v3973 = vpack.c.b16 %v3788, %v3787
        %v3974 = vpack.c.b16 %v3790, %v3789
        %v3975 = vpack.c.b16 %v3792, %v3791
        %v3976 = vpack.c.b16 %v3794, %v3793
        %v3977 = vpack.c.b16 %v3796, %v3795
        %v3978 = vpack.c.b16 %v3798, %v3797
        %v3979 = vpack.c.b16 %v3800, %v3799
        %v3980 = vpack.c.b16 %v3802, %v3801
        %v3981 = vpack.c.b16 %v3804, %v3803
        %v3982 = vpack.c.b16 %v3806, %v3805
        %v3983 = vpack.c.b16 %v3808, %v3807
        %v3984 = vpack.c.b16 %v3810, %v3809
        %v3985 = vpack.c.b16 %v3812, %v3811
        %v3986 = vpack.c.b16 %v3814, %v3813
        %v3987 = vpack.c.b16 %v3816, %v3815
        %v3988 = vpack.c.b16 %v3818, %v3817
        %v3989 = vpack.c.b16 %v3820, %v3819
        %v3990 = vpack.c.b16 %v3822, %v3821
        %v3991 = vpack.c.b16 %v3824, %v3823
        %v3992 = vpack.c.b16 %v3826, %v3825
        %v3993 = vpack.c.b16 %v3828, %v3827
        %v3994 = vpack.c.b16 %v3830, %v3829
        %v3995 = vpack.c.b16 %v3832, %v3831
        %v3996 = vpack.c.b16 %v3834, %v3833
        %v3997 = vpack.c.b16 %v3836, %v3835
        %v3998 = vpack.c.b16 %v3838, %v3837
        %v3999 = vpack.c.b16 %v3840, %v3839
        %v4000 = vpack.c.b16 %v3842, %v3841
        %v4001 = vpack.c.b16 %v3844, %v3843
        %v4002 = vpack.c.b16 %v3846, %v3845
        %v4003 = vpack.c.b16 %v3848, %v3847
        %v4004 = vpack.c.b16 %v3850, %v3849
        %v4005 = vpack.c.b16 %v3852, %v3851
        %v4006 = vpack.c.b16 %v3854, %v3853
        %v4007 = vpack.c.b16 %v3856, %v3855
        %v4008 = vpack.c.b16 %v3858, %v3857
        %v4009 = vpack.c.b16 %v3860, %v3859
        %v4010 = vpack.c.b16 %v3862, %v3861
        %v4011 = vpack.c.b16 %v3864, %v3863
        %v4012 = vpack.c.b16 %v3866, %v3865
        %v4013 = vpack.c.b16 %v3868, %v3867
        %v4014 = vpack.c.b16 %v3870, %v3869
        %v4015 = vpack.c.b16 %v3872, %v3871
        %v4016 = vpack.c.b16 %v3874, %v3873
        %v4017 = vpack.c.b16 %v3876, %v3875
        %v4018 = vpack.c.b16 %v3878, %v3877
        %v4019 = vpack.c.b16 %v3880, %v3879
        %v4020 = vpack.c.b16 %v3882, %v3881
        %v4021 = vpack.c.b16 %v3884, %v3883
        %v4022 = vpack.c.b16 %v3886, %v3885
        %v4023 = vpack.c.b16 %v3888, %v3887
        %v4024 = vpack.c.b16 %v3890, %v3889
        %v4025 = vpack.c.b16 %v3892, %v3891
        %v4026 = vpack.c.b16 %v3894, %v3893
        %v4027 = vpack.c.b16 %v3896, %v3895
        %v4028 = vpack.c.b16 %v3898, %v3897
        %v4029 = vpack.c.b16 %v3900, %v3899
        %v4030 = vpack.c.b16 %v3902, %v3901
        %4159 = vmatprep.subr.bf16.mxu0 0
        %4160 = vmatpush1.bf16.msra.mxu0 %v3903
        %4161 = vmatprep.subr.bf16.mxu0 0
        %4162 = vmatpush1.bf16.msra.mxu0 %v3904
        %4163 = vmatprep.subr.bf16.mxu0 0
        %4164 = vmatpush1.bf16.msra.mxu0 %v3905
        %4165 = vmatprep.subr.bf16.mxu0 0
        %4166 = vmatpush1.bf16.msra.mxu0 %v3906
        %4167 = vmatprep.subr.bf16.mxu0 0
        %4168 = vmatpush1.bf16.msra.mxu0 %v3907
        %4169 = vmatprep.subr.bf16.mxu0 0
        %4170 = vmatpush1.bf16.msra.mxu0 %v3908
        %4171 = vmatprep.subr.bf16.mxu0 0
        %4172 = vmatpush1.bf16.msra.mxu0 %v3909
        %4173 = vmatprep.subr.bf16.mxu0 0
        %4174 = vmatpush1.bf16.msra.mxu0 %v3910
        %4175 = vmatprep.subr.bf16.mxu0 0
        %4176 = vmatpush1.bf16.msra.mxu0 %v3911
        %4177 = vmatprep.subr.bf16.mxu0 0
        %4178 = vmatpush1.bf16.msra.mxu0 %v3912
        %4179 = vmatprep.subr.bf16.mxu0 0
        %4180 = vmatpush1.bf16.msra.mxu0 %v3913
        %4181 = vmatprep.subr.bf16.mxu0 0
        %4182 = vmatpush1.bf16.msra.mxu0 %v3914
        %4183 = vmatprep.subr.bf16.mxu0 0
        %4184 = vmatpush1.bf16.msra.mxu0 %v3915
        %4185 = vmatprep.subr.bf16.mxu0 0
        %4186 = vmatpush1.bf16.msra.mxu0 %v3916
        %4187 = vmatprep.subr.bf16.mxu0 0
        %4188 = vmatpush1.bf16.msra.mxu0 %v3917
        %4189 = vmatprep.subr.bf16.mxu0 0
        %4190 = vmatpush1.bf16.msra.mxu0 %v3918
        %4191 = vmatprep.mubr.bf16.mxu0 %v3369
        %4192 = vmatmul.mubr.bf16.gmra.mrb[0].mxu0 %v3368
        %v4193 = vpop.f32.mrb[0].mxu0
        %v4194 = vadd.f32 %v3389, %v4193
        %v4195 = vpop.f32.mrb[0].mxu0
        %v4196 = vpop.f32.mrb[0].mxu0
        %v4197 = vpop.f32.mrb[0].mxu0
        %4198 = vdwg.mxu0
        %4199 = vmatprep.subr.bf16.mxu0 0
        %4200 = vmatpush1.bf16.msra.mxu0 %v3919
        %4201 = vmatprep.subr.bf16.mxu0 0
        %4202 = vmatpush1.bf16.msra.mxu0 %v3920
        %4203 = vmatprep.subr.bf16.mxu0 0
        %4204 = vmatpush1.bf16.msra.mxu0 %v3921
        %4205 = vmatprep.subr.bf16.mxu0 0
        %4206 = vmatpush1.bf16.msra.mxu0 %v3922
        %4207 = vmatprep.subr.bf16.mxu0 0
        %4208 = vmatpush1.bf16.msra.mxu0 %v3923
        %4209 = vmatprep.subr.bf16.mxu0 0
        %4210 = vmatpush1.bf16.msra.mxu0 %v3924
        %4211 = vmatprep.subr.bf16.mxu0 0
        %4212 = vmatpush1.bf16.msra.mxu0 %v3925
        %4213 = vmatprep.subr.bf16.mxu0 0
        %4214 = vmatpush1.bf16.msra.mxu0 %v3926
        %4215 = vmatprep.subr.bf16.mxu0 0
        %4216 = vmatpush1.bf16.msra.mxu0 %v3927
        %4217 = vmatprep.subr.bf16.mxu0 0
        %4218 = vmatpush1.bf16.msra.mxu0 %v3928
        %4219 = vmatprep.subr.bf16.mxu0 0
        %4220 = vmatpush1.bf16.msra.mxu0 %v3929
        %4221 = vmatprep.subr.bf16.mxu0 0
        %4222 = vmatpush1.bf16.msra.mxu0 %v3930
        %4223 = vmatprep.subr.bf16.mxu0 0
        %4224 = vmatpush1.bf16.msra.mxu0 %v3931
        %4225 = vmatprep.subr.bf16.mxu0 0
        %4226 = vmatpush1.bf16.msra.mxu0 %v3932
        %4227 = vmatprep.subr.bf16.mxu0 0
        %4228 = vmatpush1.bf16.msra.mxu0 %v3933
        %4229 = vmatprep.subr.bf16.mxu0 0
        %4230 = vmatpush1.bf16.msra.mxu0 %v3934
        %4231 = vmatprep.mubr.bf16.mxu0 %v3371
        %4232 = vmatmul.mubr.bf16.gmra.mrb[0].mxu0 %v3370
        %v4233 = vpop.f32.mrb[0].mxu0
        %v4234 = vadd.f32 %v4194, %v4233
        %v4235 = vpop.f32.mrb[0].mxu0
        %v4236 = vpop.f32.mrb[0].mxu0
        %v4237 = vpop.f32.mrb[0].mxu0
        %4238 = vdwg.mxu0
        %4239 = vmatprep.subr.bf16.mxu0 0
        %4240 = vmatpush1.bf16.msra.mxu0 %v3935
        %4241 = vmatprep.subr.bf16.mxu0 0
        %4242 = vmatpush1.bf16.msra.mxu0 %v3936
        %4243 = vmatprep.subr.bf16.mxu0 0
        %4244 = vmatpush1.bf16.msra.mxu0 %v3937
        %4245 = vmatprep.subr.bf16.mxu0 0
        %4246 = vmatpush1.bf16.msra.mxu0 %v3938
        %4247 = vmatprep.subr.bf16.mxu0 0
        %4248 = vmatpush1.bf16.msra.mxu0 %v3939
        %4249 = vmatprep.subr.bf16.mxu0 0
        %4250 = vmatpush1.bf16.msra.mxu0 %v3940
        %4251 = vmatprep.subr.bf16.mxu0 0
        %4252 = vmatpush1.bf16.msra.mxu0 %v3941
        %4253 = vmatprep.subr.bf16.mxu0 0
        %4254 = vmatpush1.bf16.msra.mxu0 %v3942
        %4255 = vmatprep.subr.bf16.mxu0 0
        %4256 = vmatpush1.bf16.msra.mxu0 %v3943
        %4257 = vmatprep.subr.bf16.mxu0 0
        %4258 = vmatpush1.bf16.msra.mxu0 %v3944
        %4259 = vmatprep.subr.bf16.mxu0 0
        %4260 = vmatpush1.bf16.msra.mxu0 %v3945
        %4261 = vmatprep.subr.bf16.mxu0 0
        %4262 = vmatpush1.bf16.msra.mxu0 %v3946
        %4263 = vmatprep.subr.bf16.mxu0 0
        %4264 = vmatpush1.bf16.msra.mxu0 %v3947
        %4265 = vmatprep.subr.bf16.mxu0 0
        %4266 = vmatpush1.bf16.msra.mxu0 %v3948
        %4267 = vmatprep.subr.bf16.mxu0 0
        %4268 = vmatpush1.bf16.msra.mxu0 %v3949
        %4269 = vmatprep.subr.bf16.mxu0 0
        %4270 = vmatpush1.bf16.msra.mxu0 %v3950
        %4271 = vmatprep.mubr.bf16.mxu0 %v3373
        %4272 = vmatmul.mubr.bf16.gmra.mrb[0].mxu0 %v3372
        %v4273 = vpop.f32.mrb[0].mxu0
        %v4274 = vadd.f32 %v4234, %v4273
        %v4275 = vpop.f32.mrb[0].mxu0
        %v4276 = vpop.f32.mrb[0].mxu0
        %v4277 = vpop.f32.mrb[0].mxu0
        %4278 = vdwg.mxu0
        %4279 = vmatprep.subr.bf16.mxu0 0
        %4280 = vmatpush1.bf16.msra.mxu0 %v3951
        %4281 = vmatprep.subr.bf16.mxu0 0
        %4282 = vmatpush1.bf16.msra.mxu0 %v3952
        %4283 = vmatprep.subr.bf16.mxu0 0
        %4284 = vmatpush1.bf16.msra.mxu0 %v3953
        %4285 = vmatprep.subr.bf16.mxu0 0
        %4286 = vmatpush1.bf16.msra.mxu0 %v3954
        %4287 = vmatprep.subr.bf16.mxu0 0
        %4288 = vmatpush1.bf16.msra.mxu0 %v3955
        %4289 = vmatprep.subr.bf16.mxu0 0
        %4290 = vmatpush1.bf16.msra.mxu0 %v3956
        %4291 = vmatprep.subr.bf16.mxu0 0
        %4292 = vmatpush1.bf16.msra.mxu0 %v3957
        %4293 = vmatprep.subr.bf16.mxu0 0
        %4294 = vmatpush1.bf16.msra.mxu0 %v3958
        %4295 = vmatprep.subr.bf16.mxu0 0
        %4296 = vmatpush1.bf16.msra.mxu0 %v3959
        %4297 = vmatprep.subr.bf16.mxu0 0
        %4298 = vmatpush1.bf16.msra.mxu0 %v3960
        %4299 = vmatprep.subr.bf16.mxu0 0
        %4300 = vmatpush1.bf16.msra.mxu0 %v3961
        %4301 = vmatprep.subr.bf16.mxu0 0
        %4302 = vmatpush1.bf16.msra.mxu0 %v3962
        %4303 = vmatprep.subr.bf16.mxu0 0
        %4304 = vmatpush1.bf16.msra.mxu0 %v3963
        %4305 = vmatprep.subr.bf16.mxu0 0
        %4306 = vmatpush1.bf16.msra.mxu0 %v3964
        %4307 = vmatprep.subr.bf16.mxu0 0
        %4308 = vmatpush1.bf16.msra.mxu0 %v3965
        %4309 = vmatprep.subr.bf16.mxu0 0
        %4310 = vmatpush1.bf16.msra.mxu0 %v3966
        %4311 = vmatprep.mubr.bf16.mxu0 %v3375
        %4312 = vmatmul.mubr.bf16.gmra.mrb[0].mxu0 %v3374
        %v4313 = vpop.f32.mrb[0].mxu0
        %v4314 = vadd.f32 %v4274, %v4313
        %v4315 = vpop.f32.mrb[0].mxu0
        %v4316 = vpop.f32.mrb[0].mxu0
        %v4317 = vpop.f32.mrb[0].mxu0
        %4318 = vdwg.mxu0
        %4319 = vmatprep.subr.bf16.mxu0 0
        %4320 = vmatpush1.bf16.msra.mxu0 %v3967
        %4321 = vmatprep.subr.bf16.mxu0 0
        %4322 = vmatpush1.bf16.msra.mxu0 %v3968
        %4323 = vmatprep.subr.bf16.mxu0 0
        %4324 = vmatpush1.bf16.msra.mxu0 %v3969
        %4325 = vmatprep.subr.bf16.mxu0 0
        %4326 = vmatpush1.bf16.msra.mxu0 %v3970
        %4327 = vmatprep.subr.bf16.mxu0 0
        %4328 = vmatpush1.bf16.msra.mxu0 %v3971
        %4329 = vmatprep.subr.bf16.mxu0 0
        %4330 = vmatpush1.bf16.msra.mxu0 %v3972
        %4331 = vmatprep.subr.bf16.mxu0 0
        %4332 = vmatpush1.bf16.msra.mxu0 %v3973
        %4333 = vmatprep.subr.bf16.mxu0 0
        %4334 = vmatpush1.bf16.msra.mxu0 %v3974
        %4335 = vmatprep.subr.bf16.mxu0 0
        %4336 = vmatpush1.bf16.msra.mxu0 %v3975
        %4337 = vmatprep.subr.bf16.mxu0 0
        %4338 = vmatpush1.bf16.msra.mxu0 %v3976
        %4339 = vmatprep.subr.bf16.mxu0 0
        %4340 = vmatpush1.bf16.msra.mxu0 %v3977
        %4341 = vmatprep.subr.bf16.mxu0 0
        %4342 = vmatpush1.bf16.msra.mxu0 %v3978
        %4343 = vmatprep.subr.bf16.mxu0 0
        %4344 = vmatpush1.bf16.msra.mxu0 %v3979
        %4345 = vmatprep.subr.bf16.mxu0 0
        %4346 = vmatpush1.bf16.msra.mxu0 %v3980
        %4347 = vmatprep.subr.bf16.mxu0 0
        %4348 = vmatpush1.bf16.msra.mxu0 %v3981
        %4349 = vmatprep.subr.bf16.mxu0 0
        %4350 = vmatpush1.bf16.msra.mxu0 %v3982
        %4351 = vmatprep.mubr.bf16.mxu0 %v3377
        %4352 = vmatmul.mubr.bf16.gmra.mrb[0].mxu0 %v3376
        %v4353 = vpop.f32.mrb[0].mxu0
        %v4354 = vadd.f32 %v4314, %v4353
        %v4355 = vpop.f32.mrb[0].mxu0
        %v4356 = vpop.f32.mrb[0].mxu0
        %v4357 = vpop.f32.mrb[0].mxu0
        %4358 = vdwg.mxu0
        %4359 = vmatprep.subr.bf16.mxu0 0
        %4360 = vmatpush1.bf16.msra.mxu0 %v3983
        %4361 = vmatprep.subr.bf16.mxu0 0
        %4362 = vmatpush1.bf16.msra.mxu0 %v3984
        %4363 = vmatprep.subr.bf16.mxu0 0
        %4364 = vmatpush1.bf16.msra.mxu0 %v3985
        %4365 = vmatprep.subr.bf16.mxu0 0
        %4366 = vmatpush1.bf16.msra.mxu0 %v3986
        %4367 = vmatprep.subr.bf16.mxu0 0
        %4368 = vmatpush1.bf16.msra.mxu0 %v3987
        %4369 = vmatprep.subr.bf16.mxu0 0
        %4370 = vmatpush1.bf16.msra.mxu0 %v3988
        %4371 = vmatprep.subr.bf16.mxu0 0
        %4372 = vmatpush1.bf16.msra.mxu0 %v3989
        %4373 = vmatprep.subr.bf16.mxu0 0
        %4374 = vmatpush1.bf16.msra.mxu0 %v3990
        %4375 = vmatprep.subr.bf16.mxu0 0
        %4376 = vmatpush1.bf16.msra.mxu0 %v3991
        %4377 = vmatprep.subr.bf16.mxu0 0
        %4378 = vmatpush1.bf16.msra.mxu0 %v3992
        %4379 = vmatprep.subr.bf16.mxu0 0
        %4380 = vmatpush1.bf16.msra.mxu0 %v3993
        %4381 = vmatprep.subr.bf16.mxu0 0
        %4382 = vmatpush1.bf16.msra.mxu0 %v3994
        %4383 = vmatprep.subr.bf16.mxu0 0
        %4384 = vmatpush1.bf16.msra.mxu0 %v3995
        %4385 = vmatprep.subr.bf16.mxu0 0
        %4386 = vmatpush1.bf16.msra.mxu0 %v3996
        %4387 = vmatprep.subr.bf16.mxu0 0
        %4388 = vmatpush1.bf16.msra.mxu0 %v3997
        %4389 = vmatprep.subr.bf16.mxu0 0
        %4390 = vmatpush1.bf16.msra.mxu0 %v3998
        %4391 = vmatprep.mubr.bf16.mxu0 %v3379
        %4392 = vmatmul.mubr.bf16.gmra.mrb[0].mxu0 %v3378
        %v4393 = vpop.f32.mrb[0].mxu0
        %v4394 = vadd.f32 %v4354, %v4393
        %v4395 = vpop.f32.mrb[0].mxu0
        %v4396 = vpop.f32.mrb[0].mxu0
        %v4397 = vpop.f32.mrb[0].mxu0
        %4398 = vdwg.mxu0
        %4399 = vmatprep.subr.bf16.mxu0 0
        %4400 = vmatpush1.bf16.msra.mxu0 %v3999
        %4401 = vmatprep.subr.bf16.mxu0 0
        %4402 = vmatpush1.bf16.msra.mxu0 %v4000
        %4403 = vmatprep.subr.bf16.mxu0 0
        %4404 = vmatpush1.bf16.msra.mxu0 %v4001
        %4405 = vmatprep.subr.bf16.mxu0 0
        %4406 = vmatpush1.bf16.msra.mxu0 %v4002
        %4407 = vmatprep.subr.bf16.mxu0 0
        %4408 = vmatpush1.bf16.msra.mxu0 %v4003
        %4409 = vmatprep.subr.bf16.mxu0 0
        %4410 = vmatpush1.bf16.msra.mxu0 %v4004
        %4411 = vmatprep.subr.bf16.mxu0 0
        %4412 = vmatpush1.bf16.msra.mxu0 %v4005
        %4413 = vmatprep.subr.bf16.mxu0 0
        %4414 = vmatpush1.bf16.msra.mxu0 %v4006
        %4415 = vmatprep.subr.bf16.mxu0 0
        %4416 = vmatpush1.bf16.msra.mxu0 %v4007
        %4417 = vmatprep.subr.bf16.mxu0 0
        %4418 = vmatpush1.bf16.msra.mxu0 %v4008
        %4419 = vmatprep.subr.bf16.mxu0 0
        %4420 = vmatpush1.bf16.msra.mxu0 %v4009
        %4421 = vmatprep.subr.bf16.mxu0 0
        %4422 = vmatpush1.bf16.msra.mxu0 %v4010
        %4423 = vmatprep.subr.bf16.mxu0 0
        %4424 = vmatpush1.bf16.msra.mxu0 %v4011
        %4425 = vmatprep.subr.bf16.mxu0 0
        %4426 = vmatpush1.bf16.msra.mxu0 %v4012
        %4427 = vmatprep.subr.bf16.mxu0 0
        %4428 = vmatpush1.bf16.msra.mxu0 %v4013
        %4429 = vmatprep.subr.bf16.mxu0 0
        %4430 = vmatpush1.bf16.msra.mxu0 %v4014
        %4431 = vmatprep.mubr.bf16.mxu0 %v3381
        %4432 = vmatmul.mubr.bf16.gmra.mrb[0].mxu0 %v3380
        %v4433 = vpop.f32.mrb[0].mxu0
        %v4434 = vadd.f32 %v4394, %v4433
        %v4435 = vpop.f32.mrb[0].mxu0
        %v4436 = vpop.f32.mrb[0].mxu0
        %v4437 = vpop.f32.mrb[0].mxu0
        %4438 = vdwg.mxu0
        %4439 = vmatprep.subr.bf16.mxu0 0
        %4440 = vmatpush1.bf16.msra.mxu0 %v4015
        %4441 = vmatprep.subr.bf16.mxu0 0
        %4442 = vmatpush1.bf16.msra.mxu0 %v4016
        %4443 = vmatprep.subr.bf16.mxu0 0
        %4444 = vmatpush1.bf16.msra.mxu0 %v4017
        %4445 = vmatprep.subr.bf16.mxu0 0
        %4446 = vmatpush1.bf16.msra.mxu0 %v4018
        %4447 = vmatprep.subr.bf16.mxu0 0
        %4448 = vmatpush1.bf16.msra.mxu0 %v4019
        %4449 = vmatprep.subr.bf16.mxu0 0
        %4450 = vmatpush1.bf16.msra.mxu0 %v4020
        %4451 = vmatprep.subr.bf16.mxu0 0
        %4452 = vmatpush1.bf16.msra.mxu0 %v4021
        %4453 = vmatprep.subr.bf16.mxu0 0
        %4454 = vmatpush1.bf16.msra.mxu0 %v4022
        %4455 = vmatprep.subr.bf16.mxu0 0
        %4456 = vmatpush1.bf16.msra.mxu0 %v4023
        %4457 = vmatprep.subr.bf16.mxu0 0
        %4458 = vmatpush1.bf16.msra.mxu0 %v4024
        %4459 = vmatprep.subr.bf16.mxu0 0
        %4460 = vmatpush1.bf16.msra.mxu0 %v4025
        %4461 = vmatprep.subr.bf16.mxu0 0
        %4462 = vmatpush1.bf16.msra.mxu0 %v4026
        %4463 = vmatprep.subr.bf16.mxu0 0
        %4464 = vmatpush1.bf16.msra.mxu0 %v4027
        %4465 = vmatprep.subr.bf16.mxu0 0
        %4466 = vmatpush1.bf16.msra.mxu0 %v4028
        %4467 = vmatprep.subr.bf16.mxu0 0
        %4468 = vmatpush1.bf16.msra.mxu0 %v4029
        %4469 = vmatprep.subr.bf16.mxu0 0
        %4470 = vmatpush1.bf16.msra.mxu0 %v4030
        %4471 = vmatprep.mubr.bf16.mxu0 %v3383
        %4472 = vmatmul.mubr.bf16.gmra.mrb[0].mxu0 %v3382
        %v4473 = vpop.f32.mrb[0].mxu0
        %v4474 = vadd.f32 %v4434, %v4473
        %v4475 = vpop.f32.mrb[0].mxu0
        %v4476 = vpop.f32.mrb[0].mxu0
        %v4477 = vpop.f32.mrb[0].mxu0
        %4478 = vdwg.mxu0
        %v4479 = vadd.f32 %v1914, %v4474
        %v4480 = vld [vmem:[%s718] sm:$0x1]
        %v4481 = vld [vmem:[%s726] sm:$0x1]
        %4482 = vadd.xlane.f32.xlu0 %v4479
        %v4483 = vpop.xlane.xlu0 %4482
        %v4484 = vmul.f32 %v4483, %v1891
        %v4485 = vsub.f32 %v4479, %v4484
        %v4486 = vmul.f32 %v4485, %v4485
        %4487 = vadd.xlane.f32.xlu0 %v4486
        %v4488 = vpop.xlane.xlu0 %4487
        %v4489 = vmul.f32 %v4488, %v1891
        %v4490 = vadd.f32 %v4489, 1e-05
        %v4491 = vrsqrt.pop %v4490
        %v4492 = vmul.f32 %v4485, %v4491
        %v4494 = vlaneseq
        %v4495 = vshrl.u32 %v4494, 7
        %v4496 = vsub.s32 0, %v4495
        %v4497 = vrot.slane %v4480, %v4496
        %v4499 = vmul.f32 %v4492, %v4497
        %v4501 = vlaneseq
        %v4502 = vshrl.u32 %v4501, 7
        %v4503 = vsub.s32 0, %v4502
        %v4504 = vrot.slane %v4481, %v4503
        %v4506 = vadd.f32 %v4499, %v4504
        %4507 = vst [vmem:[#allocation2] sm:$0xff] %v4506
        %p4508 = scmp.eq.s32.totalorder %s31, 1
        // Predicated region
        $region129: #{tpu_custom_call.1} parent=87 // pred_check
          %p4509 = pneg %p4508
        $region130: #{tpu_custom_call.1} parent=87 // pred_check_branch
          %4511 = sbr.rel (%p4509) target = $region132
        $region131: #{tpu_custom_call.1} parent=87 // pred_region
          %v4512 = vld [vmem:[#allocation14] sm:$0xf]
          %v4513 = vld [vmem:[#allocation14 + $0x4] sm:$0xf]
          %v4514 = vld [vmem:[#allocation14 + $0x8] sm:$0xf]
          %v4515 = vld [vmem:[#allocation14 + $0xc] sm:$0xf]
          %v4516 = vld [vmem:[#allocation14 + $0x10] sm:$0xf]
          %v4517 = vld [vmem:[#allocation14 + $0x14] sm:$0xf]
          %v4518 = vld [vmem:[#allocation14 + $0x18] sm:$0xf]
          %v4519 = vld [vmem:[#allocation14 + $0x1c] sm:$0xf]
          %v4520 = vld [vmem:[#allocation14 + $0x20] sm:$0xf]
          %v4521 = vld [vmem:[#allocation14 + $0x24] sm:$0xf]
          %v4522 = vld [vmem:[#allocation14 + $0x28] sm:$0xf]
          %v4523 = vld [vmem:[#allocation14 + $0x2c] sm:$0xf]
          %v4524 = vld [vmem:[#allocation14 + $0x30] sm:$0xf]
          %v4525 = vld [vmem:[#allocation14 + $0x34] sm:$0xf]
          %v4526 = vld [vmem:[#allocation14 + $0x38] sm:$0xf]
          %v4527 = vld [vmem:[#allocation14 + $0x3c] sm:$0xf]
          %v4528 = vpack.c.bf16 %v4506, %v4506
          %v4529 = vld [vmem:[%s16] sm:$0x1]
          %v4531 = vlaneseq
          %v4532 = vshrl.u32 %v4531, 7
          %v4533 = vsub.s32 0, %v4532
          %v4534 = vrot.slane %v4529, %v4533
          %v4552 = vunpack.c.l.b16 %v4512
          %v4553 = vunpack.c.l.b16 %v4513
          %v4554 = vunpack.c.l.b16 %v4514
          %v4555 = vunpack.c.l.b16 %v4515
          %v4556 = vunpack.c.l.b16 %v4516
          %v4557 = vunpack.c.l.b16 %v4517
          %v4558 = vunpack.c.l.b16 %v4518
          %v4559 = vunpack.c.l.b16 %v4519
          %v4560 = vunpack.c.l.b16 %v4520
          %v4561 = vunpack.c.l.b16 %v4521
          %v4562 = vunpack.c.l.b16 %v4522
          %v4563 = vunpack.c.l.b16 %v4523
          %v4564 = vunpack.c.l.b16 %v4524
          %v4565 = vunpack.c.l.b16 %v4525
          %v4566 = vunpack.c.l.b16 %v4526
          %v4567 = vunpack.c.l.b16 %v4527
          %v4568 = vpack.c.b16 %v4553, %v4552
          %v4569 = vpack.c.b16 %v4555, %v4554
          %v4570 = vpack.c.b16 %v4557, %v4556
          %v4571 = vpack.c.b16 %v4559, %v4558
          %v4572 = vpack.c.b16 %v4561, %v4560
          %v4573 = vpack.c.b16 %v4563, %v4562
          %v4574 = vpack.c.b16 %v4565, %v4564
          %v4575 = vpack.c.b16 %v4567, %v4566
          %4584 = vmatprep.subr.bf16.mxu0 0
          %4585 = vmatpush1.bf16.msra.mxu0 %v4568
          %4586 = vmatprep.subr.bf16.mxu0 0
          %4587 = vmatpush1.bf16.msra.mxu0 %v4569
          %4588 = vmatprep.subr.bf16.mxu0 0
          %4589 = vmatpush1.bf16.msra.mxu0 %v4570
          %4590 = vmatprep.subr.bf16.mxu0 0
          %4591 = vmatpush1.bf16.msra.mxu0 %v4571
          %4592 = vmatprep.subr.bf16.mxu0 0
          %4593 = vmatpush1.bf16.msra.mxu0 %v4572
          %4594 = vmatprep.subr.bf16.mxu0 0
          %4595 = vmatpush1.bf16.msra.mxu0 %v4573
          %4596 = vmatprep.subr.bf16.mxu0 0
          %4597 = vmatpush1.bf16.msra.mxu0 %v4574
          %4598 = vmatprep.subr.bf16.mxu0 0
          %4599 = vmatpush1.bf16.msra.mxu0 %v4575
          %4600 = vmatprep.subr.bf16.mxu0 0
          %4601 = vmatpush1.bf16.msra.mxu0 0
          %4602 = vmatprep.subr.bf16.mxu0 0
          %4603 = vmatpush1.bf16.msra.mxu0 0
          %4604 = vmatprep.subr.bf16.mxu0 0
          %4605 = vmatpush1.bf16.msra.mxu0 0
          %4606 = vmatprep.subr.bf16.mxu0 0
          %4607 = vmatpush1.bf16.msra.mxu0 0
          %4608 = vmatprep.subr.bf16.mxu0 0
          %4609 = vmatpush1.bf16.msra.mxu0 0
          %4610 = vmatprep.subr.bf16.mxu0 0
          %4611 = vmatpush1.bf16.msra.mxu0 0
          %4612 = vmatprep.subr.bf16.mxu0 0
          %4613 = vmatpush1.bf16.msra.mxu0 0
          %4614 = vmatprep.subr.bf16.mxu0 0
          %4615 = vmatpush1.bf16.msra.mxu0 0
          %4616 = vmatprep.mubr.bf16.mxu0 0
          %4617 = vmatmul.mubr.bf16.gmra.mrb[0].mxu0 %v4528
          %v4618 = vpop.f32.mrb[0].mxu0
          %v4619 = vadd.f32 %v4534, %v4618
          %v4620 = vpop.f32.mrb[0].mxu0
          %v4621 = vpop.f32.mrb[0].mxu0
          %v4622 = vpop.f32.mrb[0].mxu0
          %4623 = vdwg.mxu0
          %4624 = vst [vmem:[#allocation15] sm:$0xff] %v4619
        $region132: #{tpu_custom_call.1} parent=87 // pred_fallthru
          _
        // Predicated region
        $region133: #{tpu_custom_call.1} parent=87 // pred_check
          %p4625 = pneg %p461
        $region134: #{tpu_custom_call.1} parent=87 // pred_check_branch
          %4627 = sbr.rel (%p4625) target = $region136
        $region135: #{tpu_custom_call.1} parent=87 // pred_region
          %s4629 = ssub.s32 128, 128
          %4630 = vsyncadd [#allocation5], %s4629
          %s4632 = sshll.u32 [#allocation15], 4
          %s4633 = int_to_ptr.vmem [resolvable:$true] %s4632
          %4635 = dma.vmem_to_hbm [thread:$0]  %s4633, 128, %s17, [#allocation5]
        $region136: #{tpu_custom_call.1} parent=87 // pred_fallthru
          _
        // Predicated region
        $region137: #{tpu_custom_call.1} parent=87 // pred_check
          %p4636 = pneg %p461
        $region138: #{tpu_custom_call.1} parent=87 // pred_check_branch
          %4638 = sbr.rel (%p4636) target = $region140
        $region139: #{tpu_custom_call.1} parent=87 // pred_region
          %4639 = dma.done [#allocation5], 128
        $region140: #{tpu_custom_call.1} parent=87 // pred_fallthru
          _
      $region88: #{tpu_custom_call.1} parent=5 // pred_fallthru
        _
      %p4640 = scmp.le.s32.totalorder 2, %s26
      // Predicated region
      $region141: #{tpu_custom_call.1} parent=5 // pred_check
        %p4641 = pneg %p4640
      $region142: #{tpu_custom_call.1} parent=5 // pred_check_branch
        %4643 = sbr.rel (%p4641) target = $region144
      $region143: #{tpu_custom_call.1} parent=5 // pred_region
        %s4644 = ssub.s32 %s26, 2
      $region144: #{tpu_custom_call.1} parent=5 // pred_fallthru
        _
    $region6: #{tpu_custom_call.1} parent=1 // loop_footer
      %s30 = sadd.s32 1, %s26
    $region7: #{tpu_custom_call.1} parent=1 // loop_footer_branch
      %25 = sbr.rel target = $region3
    $region8: #{tpu_custom_call.1} parent=1 // loop_exit
      _
    %4645 = vsyncpa [#allocation4], 1
    %s4646 = scalar_lea.sflag [#allocation4], 1
    %4647 = vsyncpa %s4646, 1
    %4648 = vsyncpa [#allocation7], 1
    %4649 = vsyncpa [#allocation5], 1
    %s4650 = scalar_lea.sflag [#allocation5], 1
    %4651 = vsyncpa %s4650, 1

</llo_original>
